<compile_context>
chip_gen: v7x
topology: tpu7x:2x2x1
jax: 0.10.0
libtpu: 0.0.40
codegen_flags: <defaults>
</compile_context>

<pallas_src>
import math

import jax
import jax.numpy as jnp
from jax.experimental import pallas as pl
from jax.experimental.pallas import tpu as pltpu


MAX_TILE_B = 32768   # lanes per grid step; ~1.5 MiB x/out DMA, ~18 MiB VMEM peak


def _round_up(n, m):
    return ((n + m - 1) // m) * m


def _default_tile_b(batch, max_tile=MAX_TILE_B):
    """Lane-tile heuristic: big enough to amortize the ~0.35us/grid-step cost,
    aiming for >=2 grid steps (v7x dual-TC 'parallel' sharding), capped so
    per-step VMEM stays well inside the 32 MiB scoped limit on v5e/v6e/v7x."""
    tile = _round_up(max(pl.cdiv(batch, 2), 1), 512)
    return max(512, min(max_tile, tile))


# ----------------------------------------------------------------------------
# Pallas kernel: fused 3-layer MLP forward, batch-in-lanes, all-f32 MXU matmuls.
#   x_ref : (IN, TB) f32      w0 : (H0, IN) f32   b0 : (H0, 1) f32
#   w1    : (H1, H0) f32      b1 : (H1, 1) f32
#   w2    : (DO, H1) f32      b2 : (DO, 1) f32
#   o_ref : (DO, TB) f32
# ----------------------------------------------------------------------------
def _mlp_kernel(x_ref, w0_ref, b0_ref, w1_ref, b1_ref, w2_ref, b2_ref, o_ref):
    hp = jax.lax.Precision.HIGHEST

    # layer 0: K=4 contraction on the (otherwise idle) MXU + tanh.
    h0 = jnp.dot(w0_ref[...], x_ref[...],
                 preferred_element_type=jnp.float32, precision=hp)
    h0 = jnp.tanh(h0 + b0_ref[...])                       # (H0, TB) f32

    # layer 1: relu(W1 @ h0 + b1)
    h1 = jnp.dot(w1_ref[...], h0,
                 preferred_element_type=jnp.float32, precision=hp)
    h1 = jnp.maximum(h1 + b1_ref[...], 0.0)               # (H1, TB) f32

    # output layer: tanh(W2 @ h1 + b2)   (out_function = tanh)
    h2 = jnp.dot(w2_ref[...], h1,
                 preferred_element_type=jnp.float32, precision=hp)
    o_ref[...] = jnp.tanh(h2 + b2_ref[...]).astype(o_ref.dtype)


def mlp_forward(x, params, *, tile_b=None):
    """x: (B, input_dim). params: [(W (out,in), b (out,))]*3. Returns (B, d_out)."""
    (w0, b0), (w1, b1), (w2, b2) = params
    B, in_dim = x.shape
    h0_dim, h1_dim, d_out = w0.shape[0], w1.shape[0], w2.shape[0]

    if tile_b is None:
        tile_b = _default_tile_b(B)
    grid = (pl.cdiv(B, tile_b),)

    # Feature-major input: one small XLA transpose, NO zero-padded copy (the
    # ragged last batch block reads past B; garbage lanes are sliced off by the
    # partial writeback of the boundary output block).
    x_t = x.T.astype(jnp.float32)                         # (in_dim, B)

    # Column biases: broadcast along the lane (batch) axis inside the kernel.
    b0c = b0.reshape(h0_dim, 1).astype(jnp.float32)
    b1c = b1.reshape(h1_dim, 1).astype(jnp.float32)
    b2c = b2.reshape(d_out, 1).astype(jnp.float32)
    w0f = w0.astype(jnp.float32)
    w1f = w1.astype(jnp.float32)
    w2f = w2.astype(jnp.float32)

    whole = lambda shape: pl.BlockSpec(shape, lambda i: (0, 0))

    flops = 2 * B * (in_dim * h0_dim + h0_dim * h1_dim + h1_dim * d_out)
    # Kernel-side traffic only (f32 everywhere); wrapper transposes are separate
    # XLA ops outside this custom call.
    bytes_accessed = 4 * (x_t.size + d_out * B + w0f.size + w1f.size + w2f.size
                          + h0_dim + h1_dim + d_out)

    out_t = pl.pallas_call(
        _mlp_kernel,
        out_shape=jax.ShapeDtypeStruct((d_out, B), jnp.float32),
        grid=grid,
        in_specs=[
            pl.BlockSpec((in_dim, tile_b), lambda i: (0, i)),   # x batch tile
            whole((h0_dim, in_dim)),                            # W0
            whole((h0_dim, 1)),                                 # b0
            whole((h1_dim, h0_dim)),                            # W1
            whole((h1_dim, 1)),                                 # b1
            whole((d_out, h1_dim)),                             # W2
            whole((d_out, 1)),                                  # b2
        ],
        out_specs=pl.BlockSpec((d_out, tile_b), lambda i: (0, i)),
        compiler_params=pltpu.CompilerParams(
            dimension_semantics=("parallel",),       # v7x: shard batch steps
            vmem_limit_bytes=32 * 1024 * 1024),      # safe on v5e/v6e/v7x
        cost_estimate=pl.CostEstimate(
            flops=int(flops),
            transcendentals=int(B * (h0_dim + d_out)),
            bytes_accessed=int(bytes_accessed)),
    )(x_t, w0f, b0c, w1f, b1c, w2f, b2c)

    # (d_out, B) -> (B, d_out), matching the PyTorch forward's return layout.
    return out_t.T


# ----------------------------------------------------------------------------
# Deterministic parameter init (mirrors nn.init.xavier_uniform_ semantics).
# ----------------------------------------------------------------------------
def xavier_uniform(key, shape):
    # PyTorch convention for a 2D tensor (a, b): fan_out = a, fan_in = b.
    fan_out, fan_in = shape
    bound = math.sqrt(6.0 / (fan_in + fan_out))
    return jax.random.uniform(key, shape, jnp.float32, -bound, bound)


def init_params(key, input_dim, h_layers):
    sizes = [input_dim] + list(h_layers)
    params = []
    for i, (d_in, d_out) in enumerate(zip(sizes[:-1], sizes[1:])):
        kw, kb = jax.random.split(jax.random.fold_in(key, i))
        w = xavier_uniform(kw, (d_out, d_in))        # PyTorch (out, in) layout
        b = xavier_uniform(kb, (1, d_out))[0]        # xavier_uniform_(bias[None])
        params.append((w, b))
    return params


# Pure-JAX f32 reference of the PyTorch forward, for correctness checking.
def mlp_reference(x, params):
    (w0, b0), (w1, b1), (w2, b2) = params
    x = jnp.tanh(x @ w0.T + b0)
    x = jnp.maximum(x @ w1.T + b1, 0.0)
    x = jnp.tanh(x @ w2.T + b2)
    return x


if __name__ == "__main__":
    key = jax.random.PRNGKey(0)
    k_x, k_p = jax.random.split(key)

    batch = 600              # default tiling -> tile_b=512, 2 grid steps, ragged tail
    input_dim = 4            # sum(inputs) with inputs=[4]
    h_layers = [32, 32, 8]

    x = jax.random.normal(k_x, (batch, input_dim), dtype=jnp.float32)
    params = init_params(k_p, input_dim, h_layers)

    out = jax.block_until_ready(mlp_forward(x, params))
    ref = mlp_reference(x, params)

    assert out.shape == (batch, h_layers[-1]), out.shape
    # All-f32 MXU matmuls (precision=HIGHEST): expected error ~1e-6 vs the f32
    # reference; 2e-3 is a guard band that still catches layout/padding bugs.
    max_err = float(jnp.max(jnp.abs(out - ref)))
    assert jnp.allclose(out, ref, atol=2e-3, rtol=2e-3), max_err

    print("KERNEL_OK")
</pallas_src>

<mosaic_0001>
module attributes {stable_mosaic.version = 11 : i64} {
  func.func @_mlp_kernel(%arg0: i32, %arg1: memref<4x512xf32, #tpu.memory_space<vmem>>, %arg2: memref<32x4xf32, #tpu.memory_space<vmem>>, %arg3: memref<32x1xf32, #tpu.memory_space<vmem>>, %arg4: memref<32x32xf32, #tpu.memory_space<vmem>>, %arg5: memref<32x1xf32, #tpu.memory_space<vmem>>, %arg6: memref<8x32xf32, #tpu.memory_space<vmem>>, %arg7: memref<8x1xf32, #tpu.memory_space<vmem>>, %arg8: memref<8x512xf32, #tpu.memory_space<vmem>>) attributes {dimension_semantics = [#tpu.dimension_semantics<parallel>], iteration_bounds = array<i64: 2>, scalar_prefetch = 0 : i64, scratch_operands = 0 : i64, tpu.core_type = #tpu.core_type<tc>, window_params = [{transform_indices = @transform_0, window_bounds = array<i64: 4, 512>}, {pipeline_mode = #tpu.pipeline_mode<synchronous>, transform_indices = @transform_1, window_bounds = array<i64: 32, 4>}, {pipeline_mode = #tpu.pipeline_mode<synchronous>, transform_indices = @transform_2, window_bounds = array<i64: 32, 1>}, {pipeline_mode = #tpu.pipeline_mode<synchronous>, transform_indices = @transform_3, window_bounds = array<i64: 32, 32>}, {pipeline_mode = #tpu.pipeline_mode<synchronous>, transform_indices = @transform_4, window_bounds = array<i64: 32, 1>}, {pipeline_mode = #tpu.pipeline_mode<synchronous>, transform_indices = @transform_5, window_bounds = array<i64: 8, 32>}, {pipeline_mode = #tpu.pipeline_mode<synchronous>, transform_indices = @transform_6, window_bounds = array<i64: 8, 1>}, {transform_indices = @transform_7, window_bounds = array<i64: 8, 512>}]} {
    %c0 = arith.constant 0 : index
    %c0_0 = arith.constant 0 : index
    %0 = vector.load %arg2[%c0, %c0_0] : memref<32x4xf32, #tpu.memory_space<vmem>>, vector<32x4xf32>
    %c0_1 = arith.constant 0 : index
    %c0_2 = arith.constant 0 : index
    %1 = vector.load %arg1[%c0_1, %c0_2] : memref<4x512xf32, #tpu.memory_space<vmem>>, vector<4x512xf32>
    %cst = arith.constant dense<0.000000e+00> : vector<32x512xf32>
    %2 = tpu.matmul %0, %1, %cst {dimension_numbers = #tpu.dot_dimension_numbers<[1], [0], [0], [1], [0, 0, 1, 1], [], []>, precision = #tpu.contract_precision<fp32>} : vector<32x4xf32>, vector<4x512xf32>, vector<32x512xf32> -> vector<32x512xf32>
    %c0_3 = arith.constant 0 : index
    %c0_4 = arith.constant 0 : index
    %3 = vector.load %arg3[%c0_3, %c0_4] : memref<32x1xf32, #tpu.memory_space<vmem>>, vector<32x1xf32>
    %4 = vector.broadcast %3 : vector<32x1xf32> to vector<32x512xf32>
    %5 = arith.addf %2, %4 : vector<32x512xf32>
    %6 = math.tanh %5 : vector<32x512xf32>
    %c0_5 = arith.constant 0 : index
    %c0_6 = arith.constant 0 : index
    %7 = vector.load %arg4[%c0_5, %c0_6] : memref<32x32xf32, #tpu.memory_space<vmem>>, vector<32x32xf32>
    %cst_7 = arith.constant dense<0.000000e+00> : vector<32x512xf32>
    %8 = tpu.matmul %7, %6, %cst_7 {dimension_numbers = #tpu.dot_dimension_numbers<[1], [0], [0], [1], [0, 0, 1, 1], [], []>, precision = #tpu.contract_precision<fp32>} : vector<32x32xf32>, vector<32x512xf32>, vector<32x512xf32> -> vector<32x512xf32>
    %c0_8 = arith.constant 0 : index
    %c0_9 = arith.constant 0 : index
    %9 = vector.load %arg5[%c0_8, %c0_9] : memref<32x1xf32, #tpu.memory_space<vmem>>, vector<32x1xf32>
    %10 = vector.broadcast %9 : vector<32x1xf32> to vector<32x512xf32>
    %11 = arith.addf %8, %10 : vector<32x512xf32>
    %cst_10 = arith.constant 0.000000e+00 : f32
    %12 = vector.broadcast %cst_10 : f32 to vector<32x512xf32>
    %13 = arith.maximumf %11, %12 : vector<32x512xf32>
    %c0_11 = arith.constant 0 : index
    %c0_12 = arith.constant 0 : index
    %14 = vector.load %arg6[%c0_11, %c0_12] : memref<8x32xf32, #tpu.memory_space<vmem>>, vector<8x32xf32>
    %cst_13 = arith.constant dense<0.000000e+00> : vector<8x512xf32>
    %15 = tpu.matmul %14, %13, %cst_13 {dimension_numbers = #tpu.dot_dimension_numbers<[1], [0], [0], [1], [0, 0, 1, 1], [], []>, precision = #tpu.contract_precision<fp32>} : vector<8x32xf32>, vector<32x512xf32>, vector<8x512xf32> -> vector<8x512xf32>
    %c0_14 = arith.constant 0 : index
    %c0_15 = arith.constant 0 : index
    %16 = vector.load %arg7[%c0_14, %c0_15] : memref<8x1xf32, #tpu.memory_space<vmem>>, vector<8x1xf32>
    %17 = vector.broadcast %16 : vector<8x1xf32> to vector<8x512xf32>
    %18 = arith.addf %15, %17 : vector<8x512xf32>
    %19 = math.tanh %18 : vector<8x512xf32>
    %c0_16 = arith.constant 0 : index
    %c0_17 = arith.constant 0 : index
    %20 = vector.load %arg8[%c0_16, %c0_17] : memref<8x512xf32, #tpu.memory_space<vmem>>, vector<8x512xf32>
    tpu.vector_store %arg8[%c0_16, %c0_17], %19 {strides = array<i32>} : memref<8x512xf32, #tpu.memory_space<vmem>>, vector<8x512xf32>,
    return
  }
  func.func @transform_0(%arg0: i32) -> (i32, i32) {
    %c0_i32 = arith.constant 0 : i32
    %c0_i32_0 = arith.constant 0 : i32
    return %c0_i32, %arg0 : i32, i32
  }
  func.func @transform_1(%arg0: i32) -> (i32, i32) {
    %c0_i32 = arith.constant 0 : i32
    %c0_i32_0 = arith.constant 0 : i32
    %c0_i32_1 = arith.constant 0 : i32
    return %c0_i32, %c0_i32_0 : i32, i32
  }
  func.func @transform_2(%arg0: i32) -> (i32, i32) {
    %c0_i32 = arith.constant 0 : i32
    %c0_i32_0 = arith.constant 0 : i32
    %c0_i32_1 = arith.constant 0 : i32
    return %c0_i32, %c0_i32_0 : i32, i32
  }
  func.func @transform_3(%arg0: i32) -> (i32, i32) {
    %c0_i32 = arith.constant 0 : i32
    %c0_i32_0 = arith.constant 0 : i32
    %c0_i32_1 = arith.constant 0 : i32
    return %c0_i32, %c0_i32_0 : i32, i32
  }
  func.func @transform_4(%arg0: i32) -> (i32, i32) {
    %c0_i32 = arith.constant 0 : i32
    %c0_i32_0 = arith.constant 0 : i32
    %c0_i32_1 = arith.constant 0 : i32
    return %c0_i32, %c0_i32_0 : i32, i32
  }
  func.func @transform_5(%arg0: i32) -> (i32, i32) {
    %c0_i32 = arith.constant 0 : i32
    %c0_i32_0 = arith.constant 0 : i32
    %c0_i32_1 = arith.constant 0 : i32
    return %c0_i32, %c0_i32_0 : i32, i32
  }
  func.func @transform_6(%arg0: i32) -> (i32, i32) {
    %c0_i32 = arith.constant 0 : i32
    %c0_i32_0 = arith.constant 0 : i32
    %c0_i32_1 = arith.constant 0 : i32
    return %c0_i32, %c0_i32_0 : i32, i32
  }
  func.func @transform_7(%arg0: i32) -> (i32, i32) {
    %c0_i32 = arith.constant 0 : i32
    %c0_i32_0 = arith.constant 0 : i32
    return %c0_i32, %arg0 : i32, i32
  }
}

</mosaic_0001>

<llo_original>
// kernel: tpu_custom_call.1
$region0: #{tpu_custom_call.1}
  #allocation0 [shape = 'u32[]', space=smem, size = 0x4, offset = 0x4, fixed_abs, tag = 'smem constant byte address 0x4 - core index']
  #allocation1 [shape = 'u32[144,128]{1,0:T(1,128)}', space=vmem, size = 0x12000, scoped, tag = 'internal scratch']
  %s0 = inlined_call_operand.vmem [shape: f32[4,600], index: 0, kind: input, shape index: {}]
  %s1 = inlined_call_operand.vmem [shape: f32[32,4], index: 1, kind: input, shape index: {}]
  %s2 = inlined_call_operand.vmem [shape: f32[32,1], index: 2, kind: input, shape index: {}]
  %s3 = inlined_call_operand.vmem [shape: f32[32,32], index: 3, kind: input, shape index: {}]
  %s4 = inlined_call_operand.vmem [shape: f32[32,1], index: 4, kind: input, shape index: {}]
  %s5 = inlined_call_operand.vmem [shape: f32[8,32], index: 5, kind: input, shape index: {}]
  %s6 = inlined_call_operand.vmem [shape: f32[8,1], index: 6, kind: input, shape index: {}]
  %s7 = inlined_call_operand.hbm [shape: f32[8,600], index: 7, kind: output, shape index: {}]
  %s8 = sld [smem:[#allocation0]]
  $region61: #{tpu_custom_call.1} parent=0
    _
  %s10 = ssub.s32 1, %s8
  %s11 = scalar_select 0, %s10, %s8
  $region1: #{tpu_custom_call.1} parent=0
    #allocation2 [shape = 'u8[32768]{0}', space=vmem, size = 0x8000, scoped, tag = 'output window, operand 0']
    #allocation3 [shape = 's32[2]{0}', space=sflag, size = 0x8, scoped, tag = 'scoped memory for tpu_custom_call.1']
    %12 = vsyncpa [#allocation3], 0
    %s13 = scalar_lea.sflag [#allocation3], 1
    %14 = vsyncpa %s13, 0
    loop: start=0, step=1, limit=4
    $region2: #{tpu_custom_call.1} parent=1 // loop_pre_header
      _
    $region3: #{tpu_custom_call.1} parent=1 // loop_header
      %s16 = sphi 0, %s20
      %p17 = scmp.ge.s32.totalorder %s16, 4
      %s26 = sphi 0, %s28
      %s29 = sphi 0, %s26
      %s30 = sphi 0, %s29
      %s46 = sphi 0, %s30
      %s50 = sphi 0, %s50
      %s52 = sphi 0, %s50
      %s53 = sphi 0, %s52
      %s67 = sphi 0, %s53
      %s71 = sphi 0, %s71
      %s73 = sphi 0, %s71
      %s74 = sphi 0, %s73
      %s88 = sphi 0, %s74
      %s92 = sphi 0, %s92
      %s94 = sphi 0, %s92
      %s95 = sphi 0, %s94
      %s109 = sphi 0, %s95
      %s113 = sphi 0, %s113
      %s115 = sphi 0, %s113
      %s116 = sphi 0, %s115
      %s130 = sphi 0, %s116
      %s134 = sphi 0, %s134
      %s136 = sphi 0, %s134
      %s137 = sphi 0, %s136
      %s151 = sphi 0, %s137
      %s155 = sphi 0, %s155
      %s157 = sphi 0, %s155
      %s158 = sphi 0, %s157
      %s172 = sphi 0, %s158
      %s178 = sphi 0, %s180
      %s181 = sphi 0, %s178
      %s182 = sphi 0, %s181
      %s198 = sphi 0, %s182
    $region4: #{tpu_custom_call.1} parent=1 // loop_header_branch
      %19 = sbr.rel (%p17) target = $region8
    $region5: #{tpu_custom_call.1} parent=1 // loop_body
      %s21 = ssub.s32 %s16, 1
      %s22 = ssub.s32 %s16, 2
      %s23 = sadd.s32 %s16, 1
      %s24 = ssub.s32 %s16, %s23
      %p25 = scmp.eq.s32.totalorder %s24, 0
      %s27 = sadd.s32 %s26, 1
      %s28 = scalar_select %p25, %s26, %s27
      %p31 = pneg %p25
      %p32 = scmp.eq.s32.totalorder %s16, 1
      %p33 = por %p31, %p32
      %p34 = scmp.ne.s32.totalorder %s26, %s29
      %p35 = scmp.eq.s32.totalorder %s16, 0
      %p36 = por %p34, %p35
      %p37 = scmp.ne.s32.totalorder %s26, %s29
      %p38 = scmp.eq.s32.totalorder %s21, 1
      %p39 = por %p37, %p38
      %p40 = scmp.ne.s32.totalorder %s29, %s30
      %p41 = scmp.eq.s32.totalorder %s21, 0
      %p42 = por %p40, %p41
      %p43 = scmp.ne.s32.totalorder %s29, %s30
      %p44 = scmp.eq.s32.totalorder %s22, 1
      %p45 = por %p43, %p44
      %p47 = scmp.ne.s32.totalorder %s30, %s46
      %p48 = scmp.eq.s32.totalorder %s22, 0
      %p49 = por %p47, %p48
      %s51 = sadd.s32 %s50, 1
      %p54 = scmp.eq.s32.totalorder %s16, 1
      %p55 = scmp.ne.s32.totalorder %s50, %s52
      %p56 = scmp.eq.s32.totalorder %s16, 0
      %p57 = por %p55, %p56
      %p58 = scmp.ne.s32.totalorder %s50, %s52
      %p59 = scmp.eq.s32.totalorder %s21, 1
      %p60 = por %p58, %p59
      %p61 = scmp.ne.s32.totalorder %s52, %s53
      %p62 = scmp.eq.s32.totalorder %s21, 0
      %p63 = por %p61, %p62
      %p64 = scmp.ne.s32.totalorder %s52, %s53
      %p65 = scmp.eq.s32.totalorder %s22, 1
      %p66 = por %p64, %p65
      %p68 = scmp.ne.s32.totalorder %s53, %s67
      %p69 = scmp.eq.s32.totalorder %s22, 0
      %p70 = por %p68, %p69
      %s72 = sadd.s32 %s71, 1
      %p75 = scmp.eq.s32.totalorder %s16, 1
      %p76 = scmp.ne.s32.totalorder %s71, %s73
      %p77 = scmp.eq.s32.totalorder %s16, 0
      %p78 = por %p76, %p77
      %p79 = scmp.ne.s32.totalorder %s71, %s73
      %p80 = scmp.eq.s32.totalorder %s21, 1
      %p81 = por %p79, %p80
      %p82 = scmp.ne.s32.totalorder %s73, %s74
      %p83 = scmp.eq.s32.totalorder %s21, 0
      %p84 = por %p82, %p83
      %p85 = scmp.ne.s32.totalorder %s73, %s74
      %p86 = scmp.eq.s32.totalorder %s22, 1
      %p87 = por %p85, %p86
      %p89 = scmp.ne.s32.totalorder %s74, %s88
      %p90 = scmp.eq.s32.totalorder %s22, 0
      %p91 = por %p89, %p90
      %s93 = sadd.s32 %s92, 1
      %p96 = scmp.eq.s32.totalorder %s16, 1
      %p97 = scmp.ne.s32.totalorder %s92, %s94
      %p98 = scmp.eq.s32.totalorder %s16, 0
      %p99 = por %p97, %p98
      %p100 = scmp.ne.s32.totalorder %s92, %s94
      %p101 = scmp.eq.s32.totalorder %s21, 1
      %p102 = por %p100, %p101
      %p103 = scmp.ne.s32.totalorder %s94, %s95
      %p104 = scmp.eq.s32.totalorder %s21, 0
      %p105 = por %p103, %p104
      %p106 = scmp.ne.s32.totalorder %s94, %s95
      %p107 = scmp.eq.s32.totalorder %s22, 1
      %p108 = por %p106, %p107
      %p110 = scmp.ne.s32.totalorder %s95, %s109
      %p111 = scmp.eq.s32.totalorder %s22, 0
      %p112 = por %p110, %p111
      %s114 = sadd.s32 %s113, 1
      %p117 = scmp.eq.s32.totalorder %s16, 1
      %p118 = scmp.ne.s32.totalorder %s113, %s115
      %p119 = scmp.eq.s32.totalorder %s16, 0
      %p120 = por %p118, %p119
      %p121 = scmp.ne.s32.totalorder %s113, %s115
      %p122 = scmp.eq.s32.totalorder %s21, 1
      %p123 = por %p121, %p122
      %p124 = scmp.ne.s32.totalorder %s115, %s116
      %p125 = scmp.eq.s32.totalorder %s21, 0
      %p126 = por %p124, %p125
      %p127 = scmp.ne.s32.totalorder %s115, %s116
      %p128 = scmp.eq.s32.totalorder %s22, 1
      %p129 = por %p127, %p128
      %p131 = scmp.ne.s32.totalorder %s116, %s130
      %p132 = scmp.eq.s32.totalorder %s22, 0
      %p133 = por %p131, %p132
      %s135 = sadd.s32 %s134, 1
      %p138 = scmp.eq.s32.totalorder %s16, 1
      %p139 = scmp.ne.s32.totalorder %s134, %s136
      %p140 = scmp.eq.s32.totalorder %s16, 0
      %p141 = por %p139, %p140
      %p142 = scmp.ne.s32.totalorder %s134, %s136
      %p143 = scmp.eq.s32.totalorder %s21, 1
      %p144 = por %p142, %p143
      %p145 = scmp.ne.s32.totalorder %s136, %s137
      %p146 = scmp.eq.s32.totalorder %s21, 0
      %p147 = por %p145, %p146
      %p148 = scmp.ne.s32.totalorder %s136, %s137
      %p149 = scmp.eq.s32.totalorder %s22, 1
      %p150 = por %p148, %p149
      %p152 = scmp.ne.s32.totalorder %s137, %s151
      %p153 = scmp.eq.s32.totalorder %s22, 0
      %p154 = por %p152, %p153
      %s156 = sadd.s32 %s155, 1
      %p159 = scmp.eq.s32.totalorder %s16, 1
      %p160 = scmp.ne.s32.totalorder %s155, %s157
      %p161 = scmp.eq.s32.totalorder %s16, 0
      %p162 = por %p160, %p161
      %p163 = scmp.ne.s32.totalorder %s155, %s157
      %p164 = scmp.eq.s32.totalorder %s21, 1
      %p165 = por %p163, %p164
      %p166 = scmp.ne.s32.totalorder %s157, %s158
      %p167 = scmp.eq.s32.totalorder %s21, 0
      %p168 = por %p166, %p167
      %p169 = scmp.ne.s32.totalorder %s157, %s158
      %p170 = scmp.eq.s32.totalorder %s22, 1
      %p171 = por %p169, %p170
      %p173 = scmp.ne.s32.totalorder %s158, %s172
      %p174 = scmp.eq.s32.totalorder %s22, 0
      %p175 = por %p173, %p174
      %s176 = ssub.s32 %s16, %s23
      %p177 = scmp.eq.s32.totalorder %s176, 0
      %s179 = sadd.s32 %s178, 1
      %s180 = scalar_select %p177, %s178, %s179
      %p183 = pneg %p177
      %p184 = scmp.eq.s32.totalorder %s16, 1
      %p185 = por %p183, %p184
      %p186 = scmp.ne.s32.totalorder %s178, %s181
      %p187 = scmp.eq.s32.totalorder %s16, 0
      %p188 = por %p186, %p187
      %p189 = scmp.ne.s32.totalorder %s178, %s181
      %p190 = scmp.eq.s32.totalorder %s21, 1
      %p191 = por %p189, %p190
      %p192 = scmp.ne.s32.totalorder %s181, %s182
      %p193 = scmp.eq.s32.totalorder %s21, 0
      %p194 = por %p192, %p193
      %p195 = scmp.ne.s32.totalorder %s181, %s182
      %p196 = scmp.eq.s32.totalorder %s22, 1
      %p197 = por %p195, %p196
      %p199 = scmp.ne.s32.totalorder %s182, %s198
      %p200 = scmp.eq.s32.totalorder %s22, 0
      %p201 = por %p199, %p200
      %p202 = scmp.le.s32.totalorder 1, %s16
      %p203 = scmp.lt.s32.totalorder %s16, 3
      %p204 = pnand %p202, %p203
      %p205 = pneg %p204
      // Predicated region
      $region9: #{tpu_custom_call.1} parent=5 // pred_check
        _
      $region10: #{tpu_custom_call.1} parent=5 // pred_check_branch
        %207 = sbr.rel (%p204) target = $region12
      $region11: #{tpu_custom_call.1} parent=5 // pred_region
        %s208 = ssub.s32 %s16, 1
        // Predicated region
        $region13: #{tpu_custom_call.1} parent=11 // pred_check
          %p209 = pneg %p63
        $region14: #{tpu_custom_call.1} parent=11 // pred_check_branch
          %211 = sbr.rel (%p209) target = $region16
        $region15: #{tpu_custom_call.1} parent=11 // pred_region
          _
        $region16: #{tpu_custom_call.1} parent=11 // pred_fallthru
          _
        // Predicated region
        $region17: #{tpu_custom_call.1} parent=11 // pred_check
          %p212 = pneg %p84
        $region18: #{tpu_custom_call.1} parent=11 // pred_check_branch
          %214 = sbr.rel (%p212) target = $region20
        $region19: #{tpu_custom_call.1} parent=11 // pred_region
          _
        $region20: #{tpu_custom_call.1} parent=11 // pred_fallthru
          _
        // Predicated region
        $region21: #{tpu_custom_call.1} parent=11 // pred_check
          %p215 = pneg %p105
        $region22: #{tpu_custom_call.1} parent=11 // pred_check_branch
          %217 = sbr.rel (%p215) target = $region24
        $region23: #{tpu_custom_call.1} parent=11 // pred_region
          _
        $region24: #{tpu_custom_call.1} parent=11 // pred_fallthru
          _
        // Predicated region
        $region25: #{tpu_custom_call.1} parent=11 // pred_check
          %p218 = pneg %p126
        $region26: #{tpu_custom_call.1} parent=11 // pred_check_branch
          %220 = sbr.rel (%p218) target = $region28
        $region27: #{tpu_custom_call.1} parent=11 // pred_region
          _
        $region28: #{tpu_custom_call.1} parent=11 // pred_fallthru
          _
        // Predicated region
        $region29: #{tpu_custom_call.1} parent=11 // pred_check
          %p221 = pneg %p147
        $region30: #{tpu_custom_call.1} parent=11 // pred_check_branch
          %223 = sbr.rel (%p221) target = $region32
        $region31: #{tpu_custom_call.1} parent=11 // pred_region
          _
        $region32: #{tpu_custom_call.1} parent=11 // pred_fallthru
          _
        // Predicated region
        $region33: #{tpu_custom_call.1} parent=11 // pred_check
          %p224 = pneg %p168
        $region34: #{tpu_custom_call.1} parent=11 // pred_check_branch
          %226 = sbr.rel (%p224) target = $region36
        $region35: #{tpu_custom_call.1} parent=11 // pred_region
          _
        $region36: #{tpu_custom_call.1} parent=11 // pred_fallthru
          _
      $region12: #{tpu_custom_call.1} parent=5 // pred_fallthru
        _
      %p227 = scmp.lt.s32.totalorder %s16, 2
      // Predicated region
      $region37: #{tpu_custom_call.1} parent=5 // pred_check
        %p228 = pneg %p227
      $region38: #{tpu_custom_call.1} parent=5 // pred_check_branch
        %230 = sbr.rel (%p228) target = $region40
      $region39: #{tpu_custom_call.1} parent=5 // pred_region
        // Predicated region
        $region41: #{tpu_custom_call.1} parent=39 // pred_check
          %p231 = pneg %p36
        $region42: #{tpu_custom_call.1} parent=39 // pred_check_branch
          %233 = sbr.rel (%p231) target = $region44
        $region43: #{tpu_custom_call.1} parent=39 // pred_region
          %s234 = smul.u32 4, %s16
          %s235 = ssub.s32 5, %s234
          %p236 = scmp.lt.s32.totalorder %s235, 4
          %s237 = scalar_select %p236, %s235, 4
          %s238 = smul.u32 64, %s237
          %p239 = scmp.lt.s32.totalorder %s234, 4
          %s240 = scalar_select %p239, %s234, 4
          %s241 = smul.addr %s240, 4
          %s242 = scalar_lea.vmem %s0, %s241
          %s243 = smul.u32 4, %s16
          %s244 = ssub.s32 5, %s243
          %p245 = scmp.lt.s32.totalorder %s244, 4
          %s246 = scalar_select %p245, %s244, 4
          %s247 = smul.u32 64, %s246
        $region44: #{tpu_custom_call.1} parent=39 // pred_fallthru
          _
      $region40: #{tpu_custom_call.1} parent=5 // pred_fallthru
        _
      %p248 = scmp.le.s32.totalorder 1, %s16
      %p249 = scmp.lt.s32.totalorder %s16, 3
      %p250 = pnand %p248, %p249
      %p251 = pneg %p250
      // Predicated region
      $region45: #{tpu_custom_call.1} parent=5 // pred_check
        _
      $region46: #{tpu_custom_call.1} parent=5 // pred_check_branch
        %253 = sbr.rel (%p250) target = $region48
      $region47: #{tpu_custom_call.1} parent=5 // pred_region
        %s254 = ssub.s32 %s16, 1
        %s255 = smul.u32 4, %s21
        %s256 = ssub.s32 5, %s255
        %p257 = scmp.lt.s32.totalorder %s256, 4
        %s258 = scalar_select %p257, %s256, 4
        %s259 = smul.u32 64, %s258
        %p260 = scmp.lt.s32.totalorder %s255, 4
        %s261 = scalar_select %p260, %s255, 4
        %s262 = smul.addr %s261, 4
        %s263 = scalar_lea.vmem %s0, %s262
        %p264 = pneg %p42
        %p265 = pneg %p39
        %p266 = pneg %p63
        %p267 = pneg %p60
        %p268 = pneg %p84
        %p269 = pneg %p81
        %p270 = pneg %p105
        %p271 = pneg %p102
        %p272 = pneg %p126
        %p273 = pneg %p123
        %p274 = pneg %p147
        %p275 = pneg %p144
        %p276 = pneg %p168
        %p277 = pneg %p165
        %p278 = pneg %p194
        %p279 = pneg %p191
        %s280 = sand.u32 %s181, 1
        %s281 = scalar_lea.sflag [#allocation3], %s280
        %s282 = sand.u32 %s181, 1
        %s283 = smul.addr %s282, 32
        %s284 = scalar_lea.vmem [#allocation2], %s283
        %s285 = smul.u32 4, %s21
        %s286 = ssub.s32 5, %s285
        %p287 = scmp.lt.s32.totalorder %s286, 4
        %s288 = scalar_select %p287, %s286, 4
        %s289 = smul.u32 64, %s288
        %p290 = scmp.lt.s32.totalorder %s285, 4
        %s291 = scalar_select %p290, %s285, 4
        %s292 = smul.addr %s291, 4
        %s293 = scalar_lea.vmem %s0, %s292
        %s294 = smul.u32 4, %s21
        %s295 = ssub.s32 5, %s294
        %p296 = scmp.lt.s32.totalorder %s295, 4
        %s297 = scalar_select %p296, %s295, 4
        %s298 = smul.u32 64, %s297
        %s299 = smul.u32 4, %s21
        %s300 = ssub.s32 5, %s299
        %p301 = scmp.lt.s32.totalorder %s300, 4
        %s302 = scalar_select %p301, %s300, 4
        %s303 = smul.u32 128, %s302
        %v304 = vld [vmem:[%s1] sm:$0xff]
        %v305 = vld [vmem:[%s1 + $0x8] sm:$0xff]
        %v306 = vld [vmem:[%s1 + $0x10] sm:$0xff]
        %v307 = vld [vmem:[%s1 + $0x18] sm:$0xff]
        %v308 = vld [vmem:[%s293] sm:$0xff]
        %v309 = vld [vmem:[%s293 + $0x8] sm:$0xff]
        %v310 = vld [vmem:[%s2] sm:$0xff]
        %v311 = vld [vmem:[%s2 + $0x8] sm:$0xff]
        %v312 = vld [vmem:[%s2 + $0x10] sm:$0xff]
        %v313 = vld [vmem:[%s2 + $0x18] sm:$0xff]
        %315 = vset.pattern.permute.xlu0 0
        %316 = vperm.xlu0 %315, %v310
        %v317 = vpop.permute.xlu0 %316
        %320 = vset.pattern.permute.xlu0 0
        %321 = vperm.xlu0 %320, %v311
        %v322 = vpop.permute.xlu0 %321
        %325 = vset.pattern.permute.xlu0 0
        %326 = vperm.xlu0 %325, %v312
        %v327 = vpop.permute.xlu0 %326
        %330 = vset.pattern.permute.xlu0 0
        %331 = vperm.xlu0 %330, %v313
        %v332 = vpop.permute.xlu0 %331
        %v336 = vcombine.high %v308, %v308
        %v337 = vcombine.high %v309, %v309
        %vm338 = vcmask 31744
        %v340 = vsel %vm338, %v304, 0
        %v343 = vsel %vm338, %v305, 0
        %v346 = vsel %vm338, %v306, 0
        %v349 = vsel %vm338, %v307, 0
        %vm351 = vcmask 1043456
        %v352 = vsel %vm351, %v308, 0
        %v354 = vsel %vm351, %v336, 0
        %v356 = vsel %vm351, %v309, 0
        %v358 = vsel %vm351, %v337, 0
        %v360 = vand.u32 %v354, 4294901760
        %361 = vmatprep.subr.mxu0 %v360
        %v362 = vand.u32 %v352, 4294901760
        %363 = vmatpush1.msra.mxu0 %v362
        %364 = vmatprep.subr.mxu0 0.0
        %365 = vmatpush1.msra.mxu0 0.0
        %366 = vmatprep.subr.mxu0 0.0
        %367 = vmatpush1.msra.mxu0 0.0
        %368 = vmatprep.subr.mxu0 0.0
        %369 = vmatpush1.msra.mxu0 0.0
        %370 = vmatprep.subr.mxu0 0.0
        %371 = vmatpush1.msra.mxu0 0.0
        %372 = vmatprep.subr.mxu0 0.0
        %373 = vmatpush1.msra.mxu0 0.0
        %374 = vmatprep.subr.mxu0 0.0
        %375 = vmatpush1.msra.mxu0 0.0
        %376 = vmatprep.subr.mxu0 0.0
        %377 = vmatpush1.msra.mxu0 0.0
        %378 = vmatprep.subr.mxu0 0.0
        %379 = vmatpush1.msra.mxu0 0.0
        %380 = vmatprep.subr.mxu0 0.0
        %381 = vmatpush1.msra.mxu0 0.0
        %382 = vmatprep.subr.mxu0 0.0
        %383 = vmatpush1.msra.mxu0 0.0
        %384 = vmatprep.subr.mxu0 0.0
        %385 = vmatpush1.msra.mxu0 0.0
        %386 = vmatprep.subr.mxu0 0.0
        %387 = vmatpush1.msra.mxu0 0.0
        %388 = vmatprep.subr.mxu0 0.0
        %389 = vmatpush1.msra.mxu0 0.0
        %390 = vmatprep.subr.mxu0 0.0
        %391 = vmatpush1.msra.mxu0 0.0
        %392 = vmatprep.subr.mxu0 0.0
        %393 = vmatpush1.msra.mxu0 0.0
        %394 = vmatprep.subr.mxu0 0.0
        %395 = vmatpush1.msra.mxu0 0.0
        %396 = vmatprep.subr.mxu0 0.0
        %397 = vmatpush1.msra.mxu0 0.0
        %398 = vmatprep.subr.mxu0 0.0
        %399 = vmatpush1.msra.mxu0 0.0
        %400 = vmatprep.subr.mxu0 0.0
        %401 = vmatpush1.msra.mxu0 0.0
        %402 = vmatprep.subr.mxu0 0.0
        %403 = vmatpush1.msra.mxu0 0.0
        %404 = vmatprep.subr.mxu0 0.0
        %405 = vmatpush1.msra.mxu0 0.0
        %406 = vmatprep.subr.mxu0 0.0
        %407 = vmatpush1.msra.mxu0 0.0
        %408 = vmatprep.subr.mxu0 0.0
        %409 = vmatpush1.msra.mxu0 0.0
        %410 = vmatprep.subr.mxu0 0.0
        %411 = vmatpush1.msra.mxu0 0.0
        %412 = vmatprep.subr.mxu0 0.0
        %413 = vmatpush1.msra.mxu0 0.0
        %414 = vmatprep.subr.mxu0 0.0
        %415 = vmatpush1.msra.mxu0 0.0
        %416 = vmatprep.subr.mxu0 0.0
        %417 = vmatpush1.msra.mxu0 0.0
        %418 = vmatprep.subr.mxu0 0.0
        %419 = vmatpush1.msra.mxu0 0.0
        %420 = vmatprep.subr.mxu0 0.0
        %421 = vmatpush1.msra.mxu0 0.0
        %422 = vmatprep.subr.mxu0 0.0
        %423 = vmatpush1.msra.mxu0 0.0
        %424 = vmatprep.subr.mxu0 0.0
        %425 = vmatpush1.msra.mxu0 0.0
        %426 = vmatprep.mubr.f32.mxu0 0.0
        %v427 = vand.u32 %v340, 4294901760
        %v428 = vsub.f32 %v340, %v427
        %v429 = vand.u32 %v428, 4294901760
        %v430 = vsub.f32 %v428, %v429
        %v431 = vand.u32 %v430, 4294901760
        %432 = vmatmul.mubr.f32.gmra.mrb[0].mxu0 %v431
        %v433 = vpop.f32.mrb[0].mxu0
        %v434 = vadd.f32 %v317, %v433
        %v435 = vpop.f32.mrb[0].mxu0
        %v436 = vadd.f32 %v317, %v435
        %437 = vmatprep.mubr.f32.mxu0 0.0
        %v438 = vand.u32 %v343, 4294901760
        %v439 = vsub.f32 %v343, %v438
        %v440 = vand.u32 %v439, 4294901760
        %v441 = vsub.f32 %v439, %v440
        %v442 = vand.u32 %v441, 4294901760
        %443 = vmatmul.mubr.f32.gmra.mrb[0].mxu0 %v442
        %v444 = vpop.f32.mrb[0].mxu0
        %v445 = vadd.f32 %v322, %v444
        %v446 = vpop.f32.mrb[0].mxu0
        %v447 = vadd.f32 %v322, %v446
        %448 = vmatprep.mubr.f32.mxu0 0.0
        %v449 = vand.u32 %v346, 4294901760
        %v450 = vsub.f32 %v346, %v449
        %v451 = vand.u32 %v450, 4294901760
        %v452 = vsub.f32 %v450, %v451
        %v453 = vand.u32 %v452, 4294901760
        %454 = vmatmul.mubr.f32.gmra.mrb[0].mxu0 %v453
        %v455 = vpop.f32.mrb[0].mxu0
        %v456 = vadd.f32 %v327, %v455
        %v457 = vpop.f32.mrb[0].mxu0
        %v458 = vadd.f32 %v327, %v457
        %459 = vmatprep.mubr.f32.mxu0 0.0
        %v460 = vand.u32 %v349, 4294901760
        %v461 = vsub.f32 %v349, %v460
        %v462 = vand.u32 %v461, 4294901760
        %v463 = vsub.f32 %v461, %v462
        %v464 = vand.u32 %v463, 4294901760
        %465 = vmatmul.mubr.f32.gmra.mrb[0].mxu0 %v464
        %v466 = vpop.f32.mrb[0].mxu0
        %v467 = vadd.f32 %v332, %v466
        %v468 = vpop.f32.mrb[0].mxu0
        %v469 = vadd.f32 %v332, %v468
        %470 = vdwg.mxu0
        %v471 = vand.u32 %v354, 4294901760
        %v472 = vsub.f32 %v354, %v471
        %v473 = vand.u32 %v472, 4294901760
        %v474 = vsub.f32 %v472, %v473
        %v475 = vand.u32 %v474, 4294901760
        %476 = vmatprep.subr.mxu0 %v475
        %v477 = vand.u32 %v352, 4294901760
        %v478 = vsub.f32 %v352, %v477
        %v479 = vand.u32 %v478, 4294901760
        %v480 = vsub.f32 %v478, %v479
        %v481 = vand.u32 %v480, 4294901760
        %482 = vmatpush1.msra.mxu0 %v481
        %483 = vmatprep.subr.mxu0 0.0
        %484 = vmatpush1.msra.mxu0 0.0
        %485 = vmatprep.subr.mxu0 0.0
        %486 = vmatpush1.msra.mxu0 0.0
        %487 = vmatprep.subr.mxu0 0.0
        %488 = vmatpush1.msra.mxu0 0.0
        %489 = vmatprep.subr.mxu0 0.0
        %490 = vmatpush1.msra.mxu0 0.0
        %491 = vmatprep.subr.mxu0 0.0
        %492 = vmatpush1.msra.mxu0 0.0
        %493 = vmatprep.subr.mxu0 0.0
        %494 = vmatpush1.msra.mxu0 0.0
        %495 = vmatprep.subr.mxu0 0.0
        %496 = vmatpush1.msra.mxu0 0.0
        %497 = vmatprep.subr.mxu0 0.0
        %498 = vmatpush1.msra.mxu0 0.0
        %499 = vmatprep.subr.mxu0 0.0
        %500 = vmatpush1.msra.mxu0 0.0
        %501 = vmatprep.subr.mxu0 0.0
        %502 = vmatpush1.msra.mxu0 0.0
        %503 = vmatprep.subr.mxu0 0.0
        %504 = vmatpush1.msra.mxu0 0.0
        %505 = vmatprep.subr.mxu0 0.0
        %506 = vmatpush1.msra.mxu0 0.0
        %507 = vmatprep.subr.mxu0 0.0
        %508 = vmatpush1.msra.mxu0 0.0
        %509 = vmatprep.subr.mxu0 0.0
        %510 = vmatpush1.msra.mxu0 0.0
        %511 = vmatprep.subr.mxu0 0.0
        %512 = vmatpush1.msra.mxu0 0.0
        %513 = vmatprep.subr.mxu0 0.0
        %514 = vmatpush1.msra.mxu0 0.0
        %515 = vmatprep.subr.mxu0 0.0
        %516 = vmatpush1.msra.mxu0 0.0
        %517 = vmatprep.subr.mxu0 0.0
        %518 = vmatpush1.msra.mxu0 0.0
        %519 = vmatprep.subr.mxu0 0.0
        %520 = vmatpush1.msra.mxu0 0.0
        %521 = vmatprep.subr.mxu0 0.0
        %522 = vmatpush1.msra.mxu0 0.0
        %523 = vmatprep.subr.mxu0 0.0
        %524 = vmatpush1.msra.mxu0 0.0
        %525 = vmatprep.subr.mxu0 0.0
        %526 = vmatpush1.msra.mxu0 0.0
        %527 = vmatprep.subr.mxu0 0.0
        %528 = vmatpush1.msra.mxu0 0.0
        %529 = vmatprep.subr.mxu0 0.0
        %530 = vmatpush1.msra.mxu0 0.0
        %531 = vmatprep.subr.mxu0 0.0
        %532 = vmatpush1.msra.mxu0 0.0
        %533 = vmatprep.subr.mxu0 0.0
        %534 = vmatpush1.msra.mxu0 0.0
        %535 = vmatprep.subr.mxu0 0.0
        %536 = vmatpush1.msra.mxu0 0.0
        %537 = vmatprep.subr.mxu0 0.0
        %538 = vmatpush1.msra.mxu0 0.0
        %539 = vmatprep.subr.mxu0 0.0
        %540 = vmatpush1.msra.mxu0 0.0
        %541 = vmatprep.subr.mxu0 0.0
        %542 = vmatpush1.msra.mxu0 0.0
        %543 = vmatprep.subr.mxu0 0.0
        %544 = vmatpush1.msra.mxu0 0.0
        %545 = vmatprep.mubr.f32.mxu0 0.0
        %v546 = vand.u32 %v340, 4294901760
        %547 = vmatmul.mubr.f32.gmra.mrb[0].mxu0 %v546
        %v548 = vpop.f32.mrb[0].mxu0
        %v549 = vadd.f32 %v434, %v548
        %v550 = vpop.f32.mrb[0].mxu0
        %v551 = vadd.f32 %v436, %v550
        %552 = vmatprep.mubr.f32.mxu0 0.0
        %v553 = vand.u32 %v343, 4294901760
        %554 = vmatmul.mubr.f32.gmra.mrb[0].mxu0 %v553
        %v555 = vpop.f32.mrb[0].mxu0
        %v556 = vadd.f32 %v445, %v555
        %v557 = vpop.f32.mrb[0].mxu0
        %v558 = vadd.f32 %v447, %v557
        %559 = vmatprep.mubr.f32.mxu0 0.0
        %v560 = vand.u32 %v346, 4294901760
        %561 = vmatmul.mubr.f32.gmra.mrb[0].mxu0 %v560
        %v562 = vpop.f32.mrb[0].mxu0
        %v563 = vadd.f32 %v456, %v562
        %v564 = vpop.f32.mrb[0].mxu0
        %v565 = vadd.f32 %v458, %v564
        %566 = vmatprep.mubr.f32.mxu0 0.0
        %v567 = vand.u32 %v349, 4294901760
        %568 = vmatmul.mubr.f32.gmra.mrb[0].mxu0 %v567
        %v569 = vpop.f32.mrb[0].mxu0
        %v570 = vadd.f32 %v467, %v569
        %v571 = vpop.f32.mrb[0].mxu0
        %v572 = vadd.f32 %v469, %v571
        %573 = vdwg.mxu0
        %v574 = vand.u32 %v354, 4294901760
        %v575 = vsub.f32 %v354, %v574
        %576 = vmatprep.subr.mxu0 %v575
        %v577 = vand.u32 %v352, 4294901760
        %v578 = vsub.f32 %v352, %v577
        %579 = vmatpush1.msra.mxu0 %v578
        %580 = vmatprep.subr.mxu0 0.0
        %581 = vmatpush1.msra.mxu0 0.0
        %582 = vmatprep.subr.mxu0 0.0
        %583 = vmatpush1.msra.mxu0 0.0
        %584 = vmatprep.subr.mxu0 0.0
        %585 = vmatpush1.msra.mxu0 0.0
        %586 = vmatprep.subr.mxu0 0.0
        %587 = vmatpush1.msra.mxu0 0.0
        %588 = vmatprep.subr.mxu0 0.0
        %589 = vmatpush1.msra.mxu0 0.0
        %590 = vmatprep.subr.mxu0 0.0
        %591 = vmatpush1.msra.mxu0 0.0
        %592 = vmatprep.subr.mxu0 0.0
        %593 = vmatpush1.msra.mxu0 0.0
        %594 = vmatprep.subr.mxu0 0.0
        %595 = vmatpush1.msra.mxu0 0.0
        %596 = vmatprep.subr.mxu0 0.0
        %597 = vmatpush1.msra.mxu0 0.0
        %598 = vmatprep.subr.mxu0 0.0
        %599 = vmatpush1.msra.mxu0 0.0
        %600 = vmatprep.subr.mxu0 0.0
        %601 = vmatpush1.msra.mxu0 0.0
        %602 = vmatprep.subr.mxu0 0.0
        %603 = vmatpush1.msra.mxu0 0.0
        %604 = vmatprep.subr.mxu0 0.0
        %605 = vmatpush1.msra.mxu0 0.0
        %606 = vmatprep.subr.mxu0 0.0
        %607 = vmatpush1.msra.mxu0 0.0
        %608 = vmatprep.subr.mxu0 0.0
        %609 = vmatpush1.msra.mxu0 0.0
        %610 = vmatprep.subr.mxu0 0.0
        %611 = vmatpush1.msra.mxu0 0.0
        %612 = vmatprep.subr.mxu0 0.0
        %613 = vmatpush1.msra.mxu0 0.0
        %614 = vmatprep.subr.mxu0 0.0
        %615 = vmatpush1.msra.mxu0 0.0
        %616 = vmatprep.subr.mxu0 0.0
        %617 = vmatpush1.msra.mxu0 0.0
        %618 = vmatprep.subr.mxu0 0.0
        %619 = vmatpush1.msra.mxu0 0.0
        %620 = vmatprep.subr.mxu0 0.0
        %621 = vmatpush1.msra.mxu0 0.0
        %622 = vmatprep.subr.mxu0 0.0
        %623 = vmatpush1.msra.mxu0 0.0
        %624 = vmatprep.subr.mxu0 0.0
        %625 = vmatpush1.msra.mxu0 0.0
        %626 = vmatprep.subr.mxu0 0.0
        %627 = vmatpush1.msra.mxu0 0.0
        %628 = vmatprep.subr.mxu0 0.0
        %629 = vmatpush1.msra.mxu0 0.0
        %630 = vmatprep.subr.mxu0 0.0
        %631 = vmatpush1.msra.mxu0 0.0
        %632 = vmatprep.subr.mxu0 0.0
        %633 = vmatpush1.msra.mxu0 0.0
        %634 = vmatprep.subr.mxu0 0.0
        %635 = vmatpush1.msra.mxu0 0.0
        %636 = vmatprep.subr.mxu0 0.0
        %637 = vmatpush1.msra.mxu0 0.0
        %638 = vmatprep.subr.mxu0 0.0
        %639 = vmatpush1.msra.mxu0 0.0
        %640 = vmatprep.subr.mxu0 0.0
        %641 = vmatpush1.msra.mxu0 0.0
        %642 = vmatprep.mubr.f32.mxu0 0.0
        %v643 = vand.u32 %v340, 4294901760
        %v644 = vsub.f32 %v340, %v643
        %645 = vmatmul.mubr.f32.gmra.mrb[0].mxu0 %v644
        %v646 = vpop.f32.mrb[0].mxu0
        %v647 = vadd.f32 %v549, %v646
        %v648 = vpop.f32.mrb[0].mxu0
        %v649 = vadd.f32 %v551, %v648
        %650 = vmatprep.mubr.f32.mxu0 0.0
        %v651 = vand.u32 %v343, 4294901760
        %v652 = vsub.f32 %v343, %v651
        %653 = vmatmul.mubr.f32.gmra.mrb[0].mxu0 %v652
        %v654 = vpop.f32.mrb[0].mxu0
        %v655 = vadd.f32 %v556, %v654
        %v656 = vpop.f32.mrb[0].mxu0
        %v657 = vadd.f32 %v558, %v656
        %658 = vmatprep.mubr.f32.mxu0 0.0
        %v659 = vand.u32 %v346, 4294901760
        %v660 = vsub.f32 %v346, %v659
        %661 = vmatmul.mubr.f32.gmra.mrb[0].mxu0 %v660
        %v662 = vpop.f32.mrb[0].mxu0
        %v663 = vadd.f32 %v563, %v662
        %v664 = vpop.f32.mrb[0].mxu0
        %v665 = vadd.f32 %v565, %v664
        %666 = vmatprep.mubr.f32.mxu0 0.0
        %v667 = vand.u32 %v349, 4294901760
        %v668 = vsub.f32 %v349, %v667
        %669 = vmatmul.mubr.f32.gmra.mrb[0].mxu0 %v668
        %v670 = vpop.f32.mrb[0].mxu0
        %v671 = vadd.f32 %v570, %v670
        %v672 = vpop.f32.mrb[0].mxu0
        %v673 = vadd.f32 %v572, %v672
        %674 = vdwg.mxu0
        %v675 = vand.u32 %v354, 4294901760
        %676 = vmatprep.subr.mxu0 %v675
        %v677 = vand.u32 %v352, 4294901760
        %678 = vmatpush1.msra.mxu0 %v677
        %679 = vmatprep.subr.mxu0 0.0
        %680 = vmatpush1.msra.mxu0 0.0
        %681 = vmatprep.subr.mxu0 0.0
        %682 = vmatpush1.msra.mxu0 0.0
        %683 = vmatprep.subr.mxu0 0.0
        %684 = vmatpush1.msra.mxu0 0.0
        %685 = vmatprep.subr.mxu0 0.0
        %686 = vmatpush1.msra.mxu0 0.0
        %687 = vmatprep.subr.mxu0 0.0
        %688 = vmatpush1.msra.mxu0 0.0
        %689 = vmatprep.subr.mxu0 0.0
        %690 = vmatpush1.msra.mxu0 0.0
        %691 = vmatprep.subr.mxu0 0.0
        %692 = vmatpush1.msra.mxu0 0.0
        %693 = vmatprep.subr.mxu0 0.0
        %694 = vmatpush1.msra.mxu0 0.0
        %695 = vmatprep.subr.mxu0 0.0
        %696 = vmatpush1.msra.mxu0 0.0
        %697 = vmatprep.subr.mxu0 0.0
        %698 = vmatpush1.msra.mxu0 0.0
        %699 = vmatprep.subr.mxu0 0.0
        %700 = vmatpush1.msra.mxu0 0.0
        %701 = vmatprep.subr.mxu0 0.0
        %702 = vmatpush1.msra.mxu0 0.0
        %703 = vmatprep.subr.mxu0 0.0
        %704 = vmatpush1.msra.mxu0 0.0
        %705 = vmatprep.subr.mxu0 0.0
        %706 = vmatpush1.msra.mxu0 0.0
        %707 = vmatprep.subr.mxu0 0.0
        %708 = vmatpush1.msra.mxu0 0.0
        %709 = vmatprep.subr.mxu0 0.0
        %710 = vmatpush1.msra.mxu0 0.0
        %711 = vmatprep.subr.mxu0 0.0
        %712 = vmatpush1.msra.mxu0 0.0
        %713 = vmatprep.subr.mxu0 0.0
        %714 = vmatpush1.msra.mxu0 0.0
        %715 = vmatprep.subr.mxu0 0.0
        %716 = vmatpush1.msra.mxu0 0.0
        %717 = vmatprep.subr.mxu0 0.0
        %718 = vmatpush1.msra.mxu0 0.0
        %719 = vmatprep.subr.mxu0 0.0
        %720 = vmatpush1.msra.mxu0 0.0
        %721 = vmatprep.subr.mxu0 0.0
        %722 = vmatpush1.msra.mxu0 0.0
        %723 = vmatprep.subr.mxu0 0.0
        %724 = vmatpush1.msra.mxu0 0.0
        %725 = vmatprep.subr.mxu0 0.0
        %726 = vmatpush1.msra.mxu0 0.0
        %727 = vmatprep.subr.mxu0 0.0
        %728 = vmatpush1.msra.mxu0 0.0
        %729 = vmatprep.subr.mxu0 0.0
        %730 = vmatpush1.msra.mxu0 0.0
        %731 = vmatprep.subr.mxu0 0.0
        %732 = vmatpush1.msra.mxu0 0.0
        %733 = vmatprep.subr.mxu0 0.0
        %734 = vmatpush1.msra.mxu0 0.0
        %735 = vmatprep.subr.mxu0 0.0
        %736 = vmatpush1.msra.mxu0 0.0
        %737 = vmatprep.subr.mxu0 0.0
        %738 = vmatpush1.msra.mxu0 0.0
        %739 = vmatprep.subr.mxu0 0.0
        %740 = vmatpush1.msra.mxu0 0.0
        %741 = vmatprep.mubr.f32.mxu0 0.0
        %v742 = vand.u32 %v340, 4294901760
        %v743 = vsub.f32 %v340, %v742
        %v744 = vand.u32 %v743, 4294901760
        %745 = vmatmul.mubr.f32.gmra.mrb[0].mxu0 %v744
        %v746 = vpop.f32.mrb[0].mxu0
        %v747 = vadd.f32 %v647, %v746
        %v748 = vpop.f32.mrb[0].mxu0
        %v749 = vadd.f32 %v649, %v748
        %750 = vmatprep.mubr.f32.mxu0 0.0
        %v751 = vand.u32 %v343, 4294901760
        %v752 = vsub.f32 %v343, %v751
        %v753 = vand.u32 %v752, 4294901760
        %754 = vmatmul.mubr.f32.gmra.mrb[0].mxu0 %v753
        %v755 = vpop.f32.mrb[0].mxu0
        %v756 = vadd.f32 %v655, %v755
        %v757 = vpop.f32.mrb[0].mxu0
        %v758 = vadd.f32 %v657, %v757
        %759 = vmatprep.mubr.f32.mxu0 0.0
        %v760 = vand.u32 %v346, 4294901760
        %v761 = vsub.f32 %v346, %v760
        %v762 = vand.u32 %v761, 4294901760
        %763 = vmatmul.mubr.f32.gmra.mrb[0].mxu0 %v762
        %v764 = vpop.f32.mrb[0].mxu0
        %v765 = vadd.f32 %v663, %v764
        %v766 = vpop.f32.mrb[0].mxu0
        %v767 = vadd.f32 %v665, %v766
        %768 = vmatprep.mubr.f32.mxu0 0.0
        %v769 = vand.u32 %v349, 4294901760
        %v770 = vsub.f32 %v349, %v769
        %v771 = vand.u32 %v770, 4294901760
        %772 = vmatmul.mubr.f32.gmra.mrb[0].mxu0 %v771
        %v773 = vpop.f32.mrb[0].mxu0
        %v774 = vadd.f32 %v671, %v773
        %v775 = vpop.f32.mrb[0].mxu0
        %v776 = vadd.f32 %v673, %v775
        %777 = vdwg.mxu0
        %v778 = vand.u32 %v354, 4294901760
        %v779 = vsub.f32 %v354, %v778
        %v780 = vand.u32 %v779, 4294901760
        %781 = vmatprep.subr.mxu0 %v780
        %v782 = vand.u32 %v352, 4294901760
        %v783 = vsub.f32 %v352, %v782
        %v784 = vand.u32 %v783, 4294901760
        %785 = vmatpush1.msra.mxu0 %v784
        %786 = vmatprep.subr.mxu0 0.0
        %787 = vmatpush1.msra.mxu0 0.0
        %788 = vmatprep.subr.mxu0 0.0
        %789 = vmatpush1.msra.mxu0 0.0
        %790 = vmatprep.subr.mxu0 0.0
        %791 = vmatpush1.msra.mxu0 0.0
        %792 = vmatprep.subr.mxu0 0.0
        %793 = vmatpush1.msra.mxu0 0.0
        %794 = vmatprep.subr.mxu0 0.0
        %795 = vmatpush1.msra.mxu0 0.0
        %796 = vmatprep.subr.mxu0 0.0
        %797 = vmatpush1.msra.mxu0 0.0
        %798 = vmatprep.subr.mxu0 0.0
        %799 = vmatpush1.msra.mxu0 0.0
        %800 = vmatprep.subr.mxu0 0.0
        %801 = vmatpush1.msra.mxu0 0.0
        %802 = vmatprep.subr.mxu0 0.0
        %803 = vmatpush1.msra.mxu0 0.0
        %804 = vmatprep.subr.mxu0 0.0
        %805 = vmatpush1.msra.mxu0 0.0
        %806 = vmatprep.subr.mxu0 0.0
        %807 = vmatpush1.msra.mxu0 0.0
        %808 = vmatprep.subr.mxu0 0.0
        %809 = vmatpush1.msra.mxu0 0.0
        %810 = vmatprep.subr.mxu0 0.0
        %811 = vmatpush1.msra.mxu0 0.0
        %812 = vmatprep.subr.mxu0 0.0
        %813 = vmatpush1.msra.mxu0 0.0
        %814 = vmatprep.subr.mxu0 0.0
        %815 = vmatpush1.msra.mxu0 0.0
        %816 = vmatprep.subr.mxu0 0.0
        %817 = vmatpush1.msra.mxu0 0.0
        %818 = vmatprep.subr.mxu0 0.0
        %819 = vmatpush1.msra.mxu0 0.0
        %820 = vmatprep.subr.mxu0 0.0
        %821 = vmatpush1.msra.mxu0 0.0
        %822 = vmatprep.subr.mxu0 0.0
        %823 = vmatpush1.msra.mxu0 0.0
        %824 = vmatprep.subr.mxu0 0.0
        %825 = vmatpush1.msra.mxu0 0.0
        %826 = vmatprep.subr.mxu0 0.0
        %827 = vmatpush1.msra.mxu0 0.0
        %828 = vmatprep.subr.mxu0 0.0
        %829 = vmatpush1.msra.mxu0 0.0
        %830 = vmatprep.subr.mxu0 0.0
        %831 = vmatpush1.msra.mxu0 0.0
        %832 = vmatprep.subr.mxu0 0.0
        %833 = vmatpush1.msra.mxu0 0.0
        %834 = vmatprep.subr.mxu0 0.0
        %835 = vmatpush1.msra.mxu0 0.0
        %836 = vmatprep.subr.mxu0 0.0
        %837 = vmatpush1.msra.mxu0 0.0
        %838 = vmatprep.subr.mxu0 0.0
        %839 = vmatpush1.msra.mxu0 0.0
        %840 = vmatprep.subr.mxu0 0.0
        %841 = vmatpush1.msra.mxu0 0.0
        %842 = vmatprep.subr.mxu0 0.0
        %843 = vmatpush1.msra.mxu0 0.0
        %844 = vmatprep.subr.mxu0 0.0
        %845 = vmatpush1.msra.mxu0 0.0
        %846 = vmatprep.subr.mxu0 0.0
        %847 = vmatpush1.msra.mxu0 0.0
        %848 = vmatprep.mubr.f32.mxu0 0.0
        %v849 = vand.u32 %v340, 4294901760
        %850 = vmatmul.mubr.f32.gmra.mrb[0].mxu0 %v849
        %v851 = vpop.f32.mrb[0].mxu0
        %v852 = vadd.f32 %v747, %v851
        %v853 = vpop.f32.mrb[0].mxu0
        %v854 = vadd.f32 %v749, %v853
        %855 = vmatprep.mubr.f32.mxu0 0.0
        %v856 = vand.u32 %v343, 4294901760
        %857 = vmatmul.mubr.f32.gmra.mrb[0].mxu0 %v856
        %v858 = vpop.f32.mrb[0].mxu0
        %v859 = vadd.f32 %v756, %v858
        %v860 = vpop.f32.mrb[0].mxu0
        %v861 = vadd.f32 %v758, %v860
        %862 = vmatprep.mubr.f32.mxu0 0.0
        %v863 = vand.u32 %v346, 4294901760
        %864 = vmatmul.mubr.f32.gmra.mrb[0].mxu0 %v863
        %v865 = vpop.f32.mrb[0].mxu0
        %v866 = vadd.f32 %v765, %v865
        %v867 = vpop.f32.mrb[0].mxu0
        %v868 = vadd.f32 %v767, %v867
        %869 = vmatprep.mubr.f32.mxu0 0.0
        %v870 = vand.u32 %v349, 4294901760
        %871 = vmatmul.mubr.f32.gmra.mrb[0].mxu0 %v870
        %v872 = vpop.f32.mrb[0].mxu0
        %v873 = vadd.f32 %v774, %v872
        %v874 = vpop.f32.mrb[0].mxu0
        %v875 = vadd.f32 %v776, %v874
        %876 = vdwg.mxu0
        %v877 = vand.u32 %v354, 4294901760
        %878 = vmatprep.subr.mxu0 %v877
        %v879 = vand.u32 %v352, 4294901760
        %880 = vmatpush1.msra.mxu0 %v879
        %881 = vmatprep.subr.mxu0 0.0
        %882 = vmatpush1.msra.mxu0 0.0
        %883 = vmatprep.subr.mxu0 0.0
        %884 = vmatpush1.msra.mxu0 0.0
        %885 = vmatprep.subr.mxu0 0.0
        %886 = vmatpush1.msra.mxu0 0.0
        %887 = vmatprep.subr.mxu0 0.0
        %888 = vmatpush1.msra.mxu0 0.0
        %889 = vmatprep.subr.mxu0 0.0
        %890 = vmatpush1.msra.mxu0 0.0
        %891 = vmatprep.subr.mxu0 0.0
        %892 = vmatpush1.msra.mxu0 0.0
        %893 = vmatprep.subr.mxu0 0.0
        %894 = vmatpush1.msra.mxu0 0.0
        %895 = vmatprep.subr.mxu0 0.0
        %896 = vmatpush1.msra.mxu0 0.0
        %897 = vmatprep.subr.mxu0 0.0
        %898 = vmatpush1.msra.mxu0 0.0
        %899 = vmatprep.subr.mxu0 0.0
        %900 = vmatpush1.msra.mxu0 0.0
        %901 = vmatprep.subr.mxu0 0.0
        %902 = vmatpush1.msra.mxu0 0.0
        %903 = vmatprep.subr.mxu0 0.0
        %904 = vmatpush1.msra.mxu0 0.0
        %905 = vmatprep.subr.mxu0 0.0
        %906 = vmatpush1.msra.mxu0 0.0
        %907 = vmatprep.subr.mxu0 0.0
        %908 = vmatpush1.msra.mxu0 0.0
        %909 = vmatprep.subr.mxu0 0.0
        %910 = vmatpush1.msra.mxu0 0.0
        %911 = vmatprep.subr.mxu0 0.0
        %912 = vmatpush1.msra.mxu0 0.0
        %913 = vmatprep.subr.mxu0 0.0
        %914 = vmatpush1.msra.mxu0 0.0
        %915 = vmatprep.subr.mxu0 0.0
        %916 = vmatpush1.msra.mxu0 0.0
        %917 = vmatprep.subr.mxu0 0.0
        %918 = vmatpush1.msra.mxu0 0.0
        %919 = vmatprep.subr.mxu0 0.0
        %920 = vmatpush1.msra.mxu0 0.0
        %921 = vmatprep.subr.mxu0 0.0
        %922 = vmatpush1.msra.mxu0 0.0
        %923 = vmatprep.subr.mxu0 0.0
        %924 = vmatpush1.msra.mxu0 0.0
        %925 = vmatprep.subr.mxu0 0.0
        %926 = vmatpush1.msra.mxu0 0.0
        %927 = vmatprep.subr.mxu0 0.0
        %928 = vmatpush1.msra.mxu0 0.0
        %929 = vmatprep.subr.mxu0 0.0
        %930 = vmatpush1.msra.mxu0 0.0
        %931 = vmatprep.subr.mxu0 0.0
        %932 = vmatpush1.msra.mxu0 0.0
        %933 = vmatprep.subr.mxu0 0.0
        %934 = vmatpush1.msra.mxu0 0.0
        %935 = vmatprep.subr.mxu0 0.0
        %936 = vmatpush1.msra.mxu0 0.0
        %937 = vmatprep.subr.mxu0 0.0
        %938 = vmatpush1.msra.mxu0 0.0
        %939 = vmatprep.subr.mxu0 0.0
        %940 = vmatpush1.msra.mxu0 0.0
        %941 = vmatprep.subr.mxu0 0.0
        %942 = vmatpush1.msra.mxu0 0.0
        %943 = vmatprep.mubr.f32.mxu0 0.0
        %v944 = vand.u32 %v340, 4294901760
        %945 = vmatmul.mubr.f32.gmra.mrb[0].mxu0 %v944
        %v946 = vpop.f32.mrb[0].mxu0
        %v947 = vadd.f32 %v852, %v946
        %v948 = vpop.f32.mrb[0].mxu0
        %v949 = vadd.f32 %v854, %v948
        %950 = vmatprep.mubr.f32.mxu0 0.0
        %v951 = vand.u32 %v343, 4294901760
        %952 = vmatmul.mubr.f32.gmra.mrb[0].mxu0 %v951
        %v953 = vpop.f32.mrb[0].mxu0
        %v954 = vadd.f32 %v859, %v953
        %v955 = vpop.f32.mrb[0].mxu0
        %v956 = vadd.f32 %v861, %v955
        %957 = vmatprep.mubr.f32.mxu0 0.0
        %v958 = vand.u32 %v346, 4294901760
        %959 = vmatmul.mubr.f32.gmra.mrb[0].mxu0 %v958
        %v960 = vpop.f32.mrb[0].mxu0
        %v961 = vadd.f32 %v866, %v960
        %v962 = vpop.f32.mrb[0].mxu0
        %v963 = vadd.f32 %v868, %v962
        %964 = vmatprep.mubr.f32.mxu0 0.0
        %v965 = vand.u32 %v349, 4294901760
        %966 = vmatmul.mubr.f32.gmra.mrb[0].mxu0 %v965
        %v967 = vpop.f32.mrb[0].mxu0
        %v968 = vadd.f32 %v873, %v967
        %v969 = vpop.f32.mrb[0].mxu0
        %v970 = vadd.f32 %v875, %v969
        %971 = vdwg.mxu0
        %v972 = vand.u32 %v358, 4294901760
        %973 = vmatprep.subr.mxu0 %v972
        %v974 = vand.u32 %v356, 4294901760
        %975 = vmatpush1.msra.mxu0 %v974
        %976 = vmatprep.subr.mxu0 0.0
        %977 = vmatpush1.msra.mxu0 0.0
        %978 = vmatprep.subr.mxu0 0.0
        %979 = vmatpush1.msra.mxu0 0.0
        %980 = vmatprep.subr.mxu0 0.0
        %981 = vmatpush1.msra.mxu0 0.0
        %982 = vmatprep.subr.mxu0 0.0
        %983 = vmatpush1.msra.mxu0 0.0
        %984 = vmatprep.subr.mxu0 0.0
        %985 = vmatpush1.msra.mxu0 0.0
        %986 = vmatprep.subr.mxu0 0.0
        %987 = vmatpush1.msra.mxu0 0.0
        %988 = vmatprep.subr.mxu0 0.0
        %989 = vmatpush1.msra.mxu0 0.0
        %990 = vmatprep.subr.mxu0 0.0
        %991 = vmatpush1.msra.mxu0 0.0
        %992 = vmatprep.subr.mxu0 0.0
        %993 = vmatpush1.msra.mxu0 0.0
        %994 = vmatprep.subr.mxu0 0.0
        %995 = vmatpush1.msra.mxu0 0.0
        %996 = vmatprep.subr.mxu0 0.0
        %997 = vmatpush1.msra.mxu0 0.0
        %998 = vmatprep.subr.mxu0 0.0
        %999 = vmatpush1.msra.mxu0 0.0
        %1000 = vmatprep.subr.mxu0 0.0
        %1001 = vmatpush1.msra.mxu0 0.0
        %1002 = vmatprep.subr.mxu0 0.0
        %1003 = vmatpush1.msra.mxu0 0.0
        %1004 = vmatprep.subr.mxu0 0.0
        %1005 = vmatpush1.msra.mxu0 0.0
        %1006 = vmatprep.subr.mxu0 0.0
        %1007 = vmatpush1.msra.mxu0 0.0
        %1008 = vmatprep.subr.mxu0 0.0
        %1009 = vmatpush1.msra.mxu0 0.0
        %1010 = vmatprep.subr.mxu0 0.0
        %1011 = vmatpush1.msra.mxu0 0.0
        %1012 = vmatprep.subr.mxu0 0.0
        %1013 = vmatpush1.msra.mxu0 0.0
        %1014 = vmatprep.subr.mxu0 0.0
        %1015 = vmatpush1.msra.mxu0 0.0
        %1016 = vmatprep.subr.mxu0 0.0
        %1017 = vmatpush1.msra.mxu0 0.0
        %1018 = vmatprep.subr.mxu0 0.0
        %1019 = vmatpush1.msra.mxu0 0.0
        %1020 = vmatprep.subr.mxu0 0.0
        %1021 = vmatpush1.msra.mxu0 0.0
        %1022 = vmatprep.subr.mxu0 0.0
        %1023 = vmatpush1.msra.mxu0 0.0
        %1024 = vmatprep.subr.mxu0 0.0
        %1025 = vmatpush1.msra.mxu0 0.0
        %1026 = vmatprep.subr.mxu0 0.0
        %1027 = vmatpush1.msra.mxu0 0.0
        %1028 = vmatprep.subr.mxu0 0.0
        %1029 = vmatpush1.msra.mxu0 0.0
        %1030 = vmatprep.subr.mxu0 0.0
        %1031 = vmatpush1.msra.mxu0 0.0
        %1032 = vmatprep.subr.mxu0 0.0
        %1033 = vmatpush1.msra.mxu0 0.0
        %1034 = vmatprep.subr.mxu0 0.0
        %1035 = vmatpush1.msra.mxu0 0.0
        %1036 = vmatprep.subr.mxu0 0.0
        %1037 = vmatpush1.msra.mxu0 0.0
        %1038 = vmatprep.mubr.f32.mxu0 0.0
        %v1039 = vand.u32 %v340, 4294901760
        %v1040 = vsub.f32 %v340, %v1039
        %v1041 = vand.u32 %v1040, 4294901760
        %v1042 = vsub.f32 %v1040, %v1041
        %v1043 = vand.u32 %v1042, 4294901760
        %1044 = vmatmul.mubr.f32.gmra.mrb[0].mxu0 %v1043
        %v1045 = vpop.f32.mrb[0].mxu0
        %v1046 = vadd.f32 %v317, %v1045
        %v1047 = vpop.f32.mrb[0].mxu0
        %v1048 = vadd.f32 %v317, %v1047
        %1049 = vmatprep.mubr.f32.mxu0 0.0
        %v1050 = vand.u32 %v343, 4294901760
        %v1051 = vsub.f32 %v343, %v1050
        %v1052 = vand.u32 %v1051, 4294901760
        %v1053 = vsub.f32 %v1051, %v1052
        %v1054 = vand.u32 %v1053, 4294901760
        %1055 = vmatmul.mubr.f32.gmra.mrb[0].mxu0 %v1054
        %v1056 = vpop.f32.mrb[0].mxu0
        %v1057 = vadd.f32 %v322, %v1056
        %v1058 = vpop.f32.mrb[0].mxu0
        %v1059 = vadd.f32 %v322, %v1058
        %1060 = vmatprep.mubr.f32.mxu0 0.0
        %v1061 = vand.u32 %v346, 4294901760
        %v1062 = vsub.f32 %v346, %v1061
        %v1063 = vand.u32 %v1062, 4294901760
        %v1064 = vsub.f32 %v1062, %v1063
        %v1065 = vand.u32 %v1064, 4294901760
        %1066 = vmatmul.mubr.f32.gmra.mrb[0].mxu0 %v1065
        %v1067 = vpop.f32.mrb[0].mxu0
        %v1068 = vadd.f32 %v327, %v1067
        %v1069 = vpop.f32.mrb[0].mxu0
        %v1070 = vadd.f32 %v327, %v1069
        %1071 = vmatprep.mubr.f32.mxu0 0.0
        %v1072 = vand.u32 %v349, 4294901760
        %v1073 = vsub.f32 %v349, %v1072
        %v1074 = vand.u32 %v1073, 4294901760
        %v1075 = vsub.f32 %v1073, %v1074
        %v1076 = vand.u32 %v1075, 4294901760
        %1077 = vmatmul.mubr.f32.gmra.mrb[0].mxu0 %v1076
        %v1078 = vpop.f32.mrb[0].mxu0
        %v1079 = vadd.f32 %v332, %v1078
        %v1080 = vpop.f32.mrb[0].mxu0
        %v1081 = vadd.f32 %v332, %v1080
        %1082 = vdwg.mxu0
        %v1083 = vand.u32 %v358, 4294901760
        %v1084 = vsub.f32 %v358, %v1083
        %v1085 = vand.u32 %v1084, 4294901760
        %v1086 = vsub.f32 %v1084, %v1085
        %v1087 = vand.u32 %v1086, 4294901760
        %1088 = vmatprep.subr.mxu0 %v1087
        %v1089 = vand.u32 %v356, 4294901760
        %v1090 = vsub.f32 %v356, %v1089
        %v1091 = vand.u32 %v1090, 4294901760
        %v1092 = vsub.f32 %v1090, %v1091
        %v1093 = vand.u32 %v1092, 4294901760
        %1094 = vmatpush1.msra.mxu0 %v1093
        %1095 = vmatprep.subr.mxu0 0.0
        %1096 = vmatpush1.msra.mxu0 0.0
        %1097 = vmatprep.subr.mxu0 0.0
        %1098 = vmatpush1.msra.mxu0 0.0
        %1099 = vmatprep.subr.mxu0 0.0
        %1100 = vmatpush1.msra.mxu0 0.0
        %1101 = vmatprep.subr.mxu0 0.0
        %1102 = vmatpush1.msra.mxu0 0.0
        %1103 = vmatprep.subr.mxu0 0.0
        %1104 = vmatpush1.msra.mxu0 0.0
        %1105 = vmatprep.subr.mxu0 0.0
        %1106 = vmatpush1.msra.mxu0 0.0
        %1107 = vmatprep.subr.mxu0 0.0
        %1108 = vmatpush1.msra.mxu0 0.0
        %1109 = vmatprep.subr.mxu0 0.0
        %1110 = vmatpush1.msra.mxu0 0.0
        %1111 = vmatprep.subr.mxu0 0.0
        %1112 = vmatpush1.msra.mxu0 0.0
        %1113 = vmatprep.subr.mxu0 0.0
        %1114 = vmatpush1.msra.mxu0 0.0
        %1115 = vmatprep.subr.mxu0 0.0
        %1116 = vmatpush1.msra.mxu0 0.0
        %1117 = vmatprep.subr.mxu0 0.0
        %1118 = vmatpush1.msra.mxu0 0.0
        %1119 = vmatprep.subr.mxu0 0.0
        %1120 = vmatpush1.msra.mxu0 0.0
        %1121 = vmatprep.subr.mxu0 0.0
        %1122 = vmatpush1.msra.mxu0 0.0
        %1123 = vmatprep.subr.mxu0 0.0
        %1124 = vmatpush1.msra.mxu0 0.0
        %1125 = vmatprep.subr.mxu0 0.0
        %1126 = vmatpush1.msra.mxu0 0.0
        %1127 = vmatprep.subr.mxu0 0.0
        %1128 = vmatpush1.msra.mxu0 0.0
        %1129 = vmatprep.subr.mxu0 0.0
        %1130 = vmatpush1.msra.mxu0 0.0
        %1131 = vmatprep.subr.mxu0 0.0
        %1132 = vmatpush1.msra.mxu0 0.0
        %1133 = vmatprep.subr.mxu0 0.0
        %1134 = vmatpush1.msra.mxu0 0.0
        %1135 = vmatprep.subr.mxu0 0.0
        %1136 = vmatpush1.msra.mxu0 0.0
        %1137 = vmatprep.subr.mxu0 0.0
        %1138 = vmatpush1.msra.mxu0 0.0
        %1139 = vmatprep.subr.mxu0 0.0
        %1140 = vmatpush1.msra.mxu0 0.0
        %1141 = vmatprep.subr.mxu0 0.0
        %1142 = vmatpush1.msra.mxu0 0.0
        %1143 = vmatprep.subr.mxu0 0.0
        %1144 = vmatpush1.msra.mxu0 0.0
        %1145 = vmatprep.subr.mxu0 0.0
        %1146 = vmatpush1.msra.mxu0 0.0
        %1147 = vmatprep.subr.mxu0 0.0
        %1148 = vmatpush1.msra.mxu0 0.0
        %1149 = vmatprep.subr.mxu0 0.0
        %1150 = vmatpush1.msra.mxu0 0.0
        %1151 = vmatprep.subr.mxu0 0.0
        %1152 = vmatpush1.msra.mxu0 0.0
        %1153 = vmatprep.subr.mxu0 0.0
        %1154 = vmatpush1.msra.mxu0 0.0
        %1155 = vmatprep.subr.mxu0 0.0
        %1156 = vmatpush1.msra.mxu0 0.0
        %1157 = vmatprep.mubr.f32.mxu0 0.0
        %v1158 = vand.u32 %v340, 4294901760
        %1159 = vmatmul.mubr.f32.gmra.mrb[0].mxu0 %v1158
        %v1160 = vpop.f32.mrb[0].mxu0
        %v1161 = vadd.f32 %v1046, %v1160
        %v1162 = vpop.f32.mrb[0].mxu0
        %v1163 = vadd.f32 %v1048, %v1162
        %1164 = vmatprep.mubr.f32.mxu0 0.0
        %v1165 = vand.u32 %v343, 4294901760
        %1166 = vmatmul.mubr.f32.gmra.mrb[0].mxu0 %v1165
        %v1167 = vpop.f32.mrb[0].mxu0
        %v1168 = vadd.f32 %v1057, %v1167
        %v1169 = vpop.f32.mrb[0].mxu0
        %v1170 = vadd.f32 %v1059, %v1169
        %1171 = vmatprep.mubr.f32.mxu0 0.0
        %v1172 = vand.u32 %v346, 4294901760
        %1173 = vmatmul.mubr.f32.gmra.mrb[0].mxu0 %v1172
        %v1174 = vpop.f32.mrb[0].mxu0
        %v1175 = vadd.f32 %v1068, %v1174
        %v1176 = vpop.f32.mrb[0].mxu0
        %v1177 = vadd.f32 %v1070, %v1176
        %1178 = vmatprep.mubr.f32.mxu0 0.0
        %v1179 = vand.u32 %v349, 4294901760
        %1180 = vmatmul.mubr.f32.gmra.mrb[0].mxu0 %v1179
        %v1181 = vpop.f32.mrb[0].mxu0
        %v1182 = vadd.f32 %v1079, %v1181
        %v1183 = vpop.f32.mrb[0].mxu0
        %v1184 = vadd.f32 %v1081, %v1183
        %1185 = vdwg.mxu0
        %v1186 = vand.u32 %v358, 4294901760
        %v1187 = vsub.f32 %v358, %v1186
        %1188 = vmatprep.subr.mxu0 %v1187
        %v1189 = vand.u32 %v356, 4294901760
        %v1190 = vsub.f32 %v356, %v1189
        %1191 = vmatpush1.msra.mxu0 %v1190
        %1192 = vmatprep.subr.mxu0 0.0
        %1193 = vmatpush1.msra.mxu0 0.0
        %1194 = vmatprep.subr.mxu0 0.0
        %1195 = vmatpush1.msra.mxu0 0.0
        %1196 = vmatprep.subr.mxu0 0.0
        %1197 = vmatpush1.msra.mxu0 0.0
        %1198 = vmatprep.subr.mxu0 0.0
        %1199 = vmatpush1.msra.mxu0 0.0
        %1200 = vmatprep.subr.mxu0 0.0
        %1201 = vmatpush1.msra.mxu0 0.0
        %1202 = vmatprep.subr.mxu0 0.0
        %1203 = vmatpush1.msra.mxu0 0.0
        %1204 = vmatprep.subr.mxu0 0.0
        %1205 = vmatpush1.msra.mxu0 0.0
        %1206 = vmatprep.subr.mxu0 0.0
        %1207 = vmatpush1.msra.mxu0 0.0
        %1208 = vmatprep.subr.mxu0 0.0
        %1209 = vmatpush1.msra.mxu0 0.0
        %1210 = vmatprep.subr.mxu0 0.0
        %1211 = vmatpush1.msra.mxu0 0.0
        %1212 = vmatprep.subr.mxu0 0.0
        %1213 = vmatpush1.msra.mxu0 0.0
        %1214 = vmatprep.subr.mxu0 0.0
        %1215 = vmatpush1.msra.mxu0 0.0
        %1216 = vmatprep.subr.mxu0 0.0
        %1217 = vmatpush1.msra.mxu0 0.0
        %1218 = vmatprep.subr.mxu0 0.0
        %1219 = vmatpush1.msra.mxu0 0.0
        %1220 = vmatprep.subr.mxu0 0.0
        %1221 = vmatpush1.msra.mxu0 0.0
        %1222 = vmatprep.subr.mxu0 0.0
        %1223 = vmatpush1.msra.mxu0 0.0
        %1224 = vmatprep.subr.mxu0 0.0
        %1225 = vmatpush1.msra.mxu0 0.0
        %1226 = vmatprep.subr.mxu0 0.0
        %1227 = vmatpush1.msra.mxu0 0.0
        %1228 = vmatprep.subr.mxu0 0.0
        %1229 = vmatpush1.msra.mxu0 0.0
        %1230 = vmatprep.subr.mxu0 0.0
        %1231 = vmatpush1.msra.mxu0 0.0
        %1232 = vmatprep.subr.mxu0 0.0
        %1233 = vmatpush1.msra.mxu0 0.0
        %1234 = vmatprep.subr.mxu0 0.0
        %1235 = vmatpush1.msra.mxu0 0.0
        %1236 = vmatprep.subr.mxu0 0.0
        %1237 = vmatpush1.msra.mxu0 0.0
        %1238 = vmatprep.subr.mxu0 0.0
        %1239 = vmatpush1.msra.mxu0 0.0
        %1240 = vmatprep.subr.mxu0 0.0
        %1241 = vmatpush1.msra.mxu0 0.0
        %1242 = vmatprep.subr.mxu0 0.0
        %1243 = vmatpush1.msra.mxu0 0.0
        %1244 = vmatprep.subr.mxu0 0.0
        %1245 = vmatpush1.msra.mxu0 0.0
        %1246 = vmatprep.subr.mxu0 0.0
        %1247 = vmatpush1.msra.mxu0 0.0
        %1248 = vmatprep.subr.mxu0 0.0
        %1249 = vmatpush1.msra.mxu0 0.0
        %1250 = vmatprep.subr.mxu0 0.0
        %1251 = vmatpush1.msra.mxu0 0.0
        %1252 = vmatprep.subr.mxu0 0.0
        %1253 = vmatpush1.msra.mxu0 0.0
        %1254 = vmatprep.mubr.f32.mxu0 0.0
        %v1255 = vand.u32 %v340, 4294901760
        %v1256 = vsub.f32 %v340, %v1255
        %1257 = vmatmul.mubr.f32.gmra.mrb[0].mxu0 %v1256
        %v1258 = vpop.f32.mrb[0].mxu0
        %v1259 = vadd.f32 %v1161, %v1258
        %v1260 = vpop.f32.mrb[0].mxu0
        %v1261 = vadd.f32 %v1163, %v1260
        %1262 = vmatprep.mubr.f32.mxu0 0.0
        %v1263 = vand.u32 %v343, 4294901760
        %v1264 = vsub.f32 %v343, %v1263
        %1265 = vmatmul.mubr.f32.gmra.mrb[0].mxu0 %v1264
        %v1266 = vpop.f32.mrb[0].mxu0
        %v1267 = vadd.f32 %v1168, %v1266
        %v1268 = vpop.f32.mrb[0].mxu0
        %v1269 = vadd.f32 %v1170, %v1268
        %1270 = vmatprep.mubr.f32.mxu0 0.0
        %v1271 = vand.u32 %v346, 4294901760
        %v1272 = vsub.f32 %v346, %v1271
        %1273 = vmatmul.mubr.f32.gmra.mrb[0].mxu0 %v1272
        %v1274 = vpop.f32.mrb[0].mxu0
        %v1275 = vadd.f32 %v1175, %v1274
        %v1276 = vpop.f32.mrb[0].mxu0
        %v1277 = vadd.f32 %v1177, %v1276
        %1278 = vmatprep.mubr.f32.mxu0 0.0
        %v1279 = vand.u32 %v349, 4294901760
        %v1280 = vsub.f32 %v349, %v1279
        %1281 = vmatmul.mubr.f32.gmra.mrb[0].mxu0 %v1280
        %v1282 = vpop.f32.mrb[0].mxu0
        %v1283 = vadd.f32 %v1182, %v1282
        %v1284 = vpop.f32.mrb[0].mxu0
        %v1285 = vadd.f32 %v1184, %v1284
        %1286 = vdwg.mxu0
        %v1287 = vand.u32 %v358, 4294901760
        %1288 = vmatprep.subr.mxu0 %v1287
        %v1289 = vand.u32 %v356, 4294901760
        %1290 = vmatpush1.msra.mxu0 %v1289
        %1291 = vmatprep.subr.mxu0 0.0
        %1292 = vmatpush1.msra.mxu0 0.0
        %1293 = vmatprep.subr.mxu0 0.0
        %1294 = vmatpush1.msra.mxu0 0.0
        %1295 = vmatprep.subr.mxu0 0.0
        %1296 = vmatpush1.msra.mxu0 0.0
        %1297 = vmatprep.subr.mxu0 0.0
        %1298 = vmatpush1.msra.mxu0 0.0
        %1299 = vmatprep.subr.mxu0 0.0
        %1300 = vmatpush1.msra.mxu0 0.0
        %1301 = vmatprep.subr.mxu0 0.0
        %1302 = vmatpush1.msra.mxu0 0.0
        %1303 = vmatprep.subr.mxu0 0.0
        %1304 = vmatpush1.msra.mxu0 0.0
        %1305 = vmatprep.subr.mxu0 0.0
        %1306 = vmatpush1.msra.mxu0 0.0
        %1307 = vmatprep.subr.mxu0 0.0
        %1308 = vmatpush1.msra.mxu0 0.0
        %1309 = vmatprep.subr.mxu0 0.0
        %1310 = vmatpush1.msra.mxu0 0.0
        %1311 = vmatprep.subr.mxu0 0.0
        %1312 = vmatpush1.msra.mxu0 0.0
        %1313 = vmatprep.subr.mxu0 0.0
        %1314 = vmatpush1.msra.mxu0 0.0
        %1315 = vmatprep.subr.mxu0 0.0
        %1316 = vmatpush1.msra.mxu0 0.0
        %1317 = vmatprep.subr.mxu0 0.0
        %1318 = vmatpush1.msra.mxu0 0.0
        %1319 = vmatprep.subr.mxu0 0.0
        %1320 = vmatpush1.msra.mxu0 0.0
        %1321 = vmatprep.subr.mxu0 0.0
        %1322 = vmatpush1.msra.mxu0 0.0
        %1323 = vmatprep.subr.mxu0 0.0
        %1324 = vmatpush1.msra.mxu0 0.0
        %1325 = vmatprep.subr.mxu0 0.0
        %1326 = vmatpush1.msra.mxu0 0.0
        %1327 = vmatprep.subr.mxu0 0.0
        %1328 = vmatpush1.msra.mxu0 0.0
        %1329 = vmatprep.subr.mxu0 0.0
        %1330 = vmatpush1.msra.mxu0 0.0
        %1331 = vmatprep.subr.mxu0 0.0
        %1332 = vmatpush1.msra.mxu0 0.0
        %1333 = vmatprep.subr.mxu0 0.0
        %1334 = vmatpush1.msra.mxu0 0.0
        %1335 = vmatprep.subr.mxu0 0.0
        %1336 = vmatpush1.msra.mxu0 0.0
        %1337 = vmatprep.subr.mxu0 0.0
        %1338 = vmatpush1.msra.mxu0 0.0
        %1339 = vmatprep.subr.mxu0 0.0
        %1340 = vmatpush1.msra.mxu0 0.0
        %1341 = vmatprep.subr.mxu0 0.0
        %1342 = vmatpush1.msra.mxu0 0.0
        %1343 = vmatprep.subr.mxu0 0.0
        %1344 = vmatpush1.msra.mxu0 0.0
        %1345 = vmatprep.subr.mxu0 0.0
        %1346 = vmatpush1.msra.mxu0 0.0
        %1347 = vmatprep.subr.mxu0 0.0
        %1348 = vmatpush1.msra.mxu0 0.0
        %1349 = vmatprep.subr.mxu0 0.0
        %1350 = vmatpush1.msra.mxu0 0.0
        %1351 = vmatprep.subr.mxu0 0.0
        %1352 = vmatpush1.msra.mxu0 0.0
        %1353 = vmatprep.mubr.f32.mxu0 0.0
        %v1354 = vand.u32 %v340, 4294901760
        %v1355 = vsub.f32 %v340, %v1354
        %v1356 = vand.u32 %v1355, 4294901760
        %1357 = vmatmul.mubr.f32.gmra.mrb[0].mxu0 %v1356
        %v1358 = vpop.f32.mrb[0].mxu0
        %v1359 = vadd.f32 %v1259, %v1358
        %v1360 = vpop.f32.mrb[0].mxu0
        %v1361 = vadd.f32 %v1261, %v1360
        %1362 = vmatprep.mubr.f32.mxu0 0.0
        %v1363 = vand.u32 %v343, 4294901760
        %v1364 = vsub.f32 %v343, %v1363
        %v1365 = vand.u32 %v1364, 4294901760
        %1366 = vmatmul.mubr.f32.gmra.mrb[0].mxu0 %v1365
        %v1367 = vpop.f32.mrb[0].mxu0
        %v1368 = vadd.f32 %v1267, %v1367
        %v1369 = vpop.f32.mrb[0].mxu0
        %v1370 = vadd.f32 %v1269, %v1369
        %1371 = vmatprep.mubr.f32.mxu0 0.0
        %v1372 = vand.u32 %v346, 4294901760
        %v1373 = vsub.f32 %v346, %v1372
        %v1374 = vand.u32 %v1373, 4294901760
        %1375 = vmatmul.mubr.f32.gmra.mrb[0].mxu0 %v1374
        %v1376 = vpop.f32.mrb[0].mxu0
        %v1377 = vadd.f32 %v1275, %v1376
        %v1378 = vpop.f32.mrb[0].mxu0
        %v1379 = vadd.f32 %v1277, %v1378
        %1380 = vmatprep.mubr.f32.mxu0 0.0
        %v1381 = vand.u32 %v349, 4294901760
        %v1382 = vsub.f32 %v349, %v1381
        %v1383 = vand.u32 %v1382, 4294901760
        %1384 = vmatmul.mubr.f32.gmra.mrb[0].mxu0 %v1383
        %v1385 = vpop.f32.mrb[0].mxu0
        %v1386 = vadd.f32 %v1283, %v1385
        %v1387 = vpop.f32.mrb[0].mxu0
        %v1388 = vadd.f32 %v1285, %v1387
        %1389 = vdwg.mxu0
        %v1390 = vand.u32 %v358, 4294901760
        %v1391 = vsub.f32 %v358, %v1390
        %v1392 = vand.u32 %v1391, 4294901760
        %1393 = vmatprep.subr.mxu0 %v1392
        %v1394 = vand.u32 %v356, 4294901760
        %v1395 = vsub.f32 %v356, %v1394
        %v1396 = vand.u32 %v1395, 4294901760
        %1397 = vmatpush1.msra.mxu0 %v1396
        %1398 = vmatprep.subr.mxu0 0.0
        %1399 = vmatpush1.msra.mxu0 0.0
        %1400 = vmatprep.subr.mxu0 0.0
        %1401 = vmatpush1.msra.mxu0 0.0
        %1402 = vmatprep.subr.mxu0 0.0
        %1403 = vmatpush1.msra.mxu0 0.0
        %1404 = vmatprep.subr.mxu0 0.0
        %1405 = vmatpush1.msra.mxu0 0.0
        %1406 = vmatprep.subr.mxu0 0.0
        %1407 = vmatpush1.msra.mxu0 0.0
        %1408 = vmatprep.subr.mxu0 0.0
        %1409 = vmatpush1.msra.mxu0 0.0
        %1410 = vmatprep.subr.mxu0 0.0
        %1411 = vmatpush1.msra.mxu0 0.0
        %1412 = vmatprep.subr.mxu0 0.0
        %1413 = vmatpush1.msra.mxu0 0.0
        %1414 = vmatprep.subr.mxu0 0.0
        %1415 = vmatpush1.msra.mxu0 0.0
        %1416 = vmatprep.subr.mxu0 0.0
        %1417 = vmatpush1.msra.mxu0 0.0
        %1418 = vmatprep.subr.mxu0 0.0
        %1419 = vmatpush1.msra.mxu0 0.0
        %1420 = vmatprep.subr.mxu0 0.0
        %1421 = vmatpush1.msra.mxu0 0.0
        %1422 = vmatprep.subr.mxu0 0.0
        %1423 = vmatpush1.msra.mxu0 0.0
        %1424 = vmatprep.subr.mxu0 0.0
        %1425 = vmatpush1.msra.mxu0 0.0
        %1426 = vmatprep.subr.mxu0 0.0
        %1427 = vmatpush1.msra.mxu0 0.0
        %1428 = vmatprep.subr.mxu0 0.0
        %1429 = vmatpush1.msra.mxu0 0.0
        %1430 = vmatprep.subr.mxu0 0.0
        %1431 = vmatpush1.msra.mxu0 0.0
        %1432 = vmatprep.subr.mxu0 0.0
        %1433 = vmatpush1.msra.mxu0 0.0
        %1434 = vmatprep.subr.mxu0 0.0
        %1435 = vmatpush1.msra.mxu0 0.0
        %1436 = vmatprep.subr.mxu0 0.0
        %1437 = vmatpush1.msra.mxu0 0.0
        %1438 = vmatprep.subr.mxu0 0.0
        %1439 = vmatpush1.msra.mxu0 0.0
        %1440 = vmatprep.subr.mxu0 0.0
        %1441 = vmatpush1.msra.mxu0 0.0
        %1442 = vmatprep.subr.mxu0 0.0
        %1443 = vmatpush1.msra.mxu0 0.0
        %1444 = vmatprep.subr.mxu0 0.0
        %1445 = vmatpush1.msra.mxu0 0.0
        %1446 = vmatprep.subr.mxu0 0.0
        %1447 = vmatpush1.msra.mxu0 0.0
        %1448 = vmatprep.subr.mxu0 0.0
        %1449 = vmatpush1.msra.mxu0 0.0
        %1450 = vmatprep.subr.mxu0 0.0
        %1451 = vmatpush1.msra.mxu0 0.0
        %1452 = vmatprep.subr.mxu0 0.0
        %1453 = vmatpush1.msra.mxu0 0.0
        %1454 = vmatprep.subr.mxu0 0.0
        %1455 = vmatpush1.msra.mxu0 0.0
        %1456 = vmatprep.subr.mxu0 0.0
        %1457 = vmatpush1.msra.mxu0 0.0
        %1458 = vmatprep.subr.mxu0 0.0
        %1459 = vmatpush1.msra.mxu0 0.0
        %1460 = vmatprep.mubr.f32.mxu0 0.0
        %v1461 = vand.u32 %v340, 4294901760
        %1462 = vmatmul.mubr.f32.gmra.mrb[0].mxu0 %v1461
        %v1463 = vpop.f32.mrb[0].mxu0
        %v1464 = vadd.f32 %v1359, %v1463
        %v1465 = vpop.f32.mrb[0].mxu0
        %v1466 = vadd.f32 %v1361, %v1465
        %1467 = vmatprep.mubr.f32.mxu0 0.0
        %v1468 = vand.u32 %v343, 4294901760
        %1469 = vmatmul.mubr.f32.gmra.mrb[0].mxu0 %v1468
        %v1470 = vpop.f32.mrb[0].mxu0
        %v1471 = vadd.f32 %v1368, %v1470
        %v1472 = vpop.f32.mrb[0].mxu0
        %v1473 = vadd.f32 %v1370, %v1472
        %1474 = vmatprep.mubr.f32.mxu0 0.0
        %v1475 = vand.u32 %v346, 4294901760
        %1476 = vmatmul.mubr.f32.gmra.mrb[0].mxu0 %v1475
        %v1477 = vpop.f32.mrb[0].mxu0
        %v1478 = vadd.f32 %v1377, %v1477
        %v1479 = vpop.f32.mrb[0].mxu0
        %v1480 = vadd.f32 %v1379, %v1479
        %1481 = vmatprep.mubr.f32.mxu0 0.0
        %v1482 = vand.u32 %v349, 4294901760
        %1483 = vmatmul.mubr.f32.gmra.mrb[0].mxu0 %v1482
        %v1484 = vpop.f32.mrb[0].mxu0
        %v1485 = vadd.f32 %v1386, %v1484
        %v1486 = vpop.f32.mrb[0].mxu0
        %v1487 = vadd.f32 %v1388, %v1486
        %1488 = vdwg.mxu0
        %v1489 = vand.u32 %v358, 4294901760
        %1490 = vmatprep.subr.mxu0 %v1489
        %v1491 = vand.u32 %v356, 4294901760
        %1492 = vmatpush1.msra.mxu0 %v1491
        %1493 = vmatprep.subr.mxu0 0.0
        %1494 = vmatpush1.msra.mxu0 0.0
        %1495 = vmatprep.subr.mxu0 0.0
        %1496 = vmatpush1.msra.mxu0 0.0
        %1497 = vmatprep.subr.mxu0 0.0
        %1498 = vmatpush1.msra.mxu0 0.0
        %1499 = vmatprep.subr.mxu0 0.0
        %1500 = vmatpush1.msra.mxu0 0.0
        %1501 = vmatprep.subr.mxu0 0.0
        %1502 = vmatpush1.msra.mxu0 0.0
        %1503 = vmatprep.subr.mxu0 0.0
        %1504 = vmatpush1.msra.mxu0 0.0
        %1505 = vmatprep.subr.mxu0 0.0
        %1506 = vmatpush1.msra.mxu0 0.0
        %1507 = vmatprep.subr.mxu0 0.0
        %1508 = vmatpush1.msra.mxu0 0.0
        %1509 = vmatprep.subr.mxu0 0.0
        %1510 = vmatpush1.msra.mxu0 0.0
        %1511 = vmatprep.subr.mxu0 0.0
        %1512 = vmatpush1.msra.mxu0 0.0
        %1513 = vmatprep.subr.mxu0 0.0
        %1514 = vmatpush1.msra.mxu0 0.0
        %1515 = vmatprep.subr.mxu0 0.0
        %1516 = vmatpush1.msra.mxu0 0.0
        %1517 = vmatprep.subr.mxu0 0.0
        %1518 = vmatpush1.msra.mxu0 0.0
        %1519 = vmatprep.subr.mxu0 0.0
        %1520 = vmatpush1.msra.mxu0 0.0
        %1521 = vmatprep.subr.mxu0 0.0
        %1522 = vmatpush1.msra.mxu0 0.0
        %1523 = vmatprep.subr.mxu0 0.0
        %1524 = vmatpush1.msra.mxu0 0.0
        %1525 = vmatprep.subr.mxu0 0.0
        %1526 = vmatpush1.msra.mxu0 0.0
        %1527 = vmatprep.subr.mxu0 0.0
        %1528 = vmatpush1.msra.mxu0 0.0
        %1529 = vmatprep.subr.mxu0 0.0
        %1530 = vmatpush1.msra.mxu0 0.0
        %1531 = vmatprep.subr.mxu0 0.0
        %1532 = vmatpush1.msra.mxu0 0.0
        %1533 = vmatprep.subr.mxu0 0.0
        %1534 = vmatpush1.msra.mxu0 0.0
        %1535 = vmatprep.subr.mxu0 0.0
        %1536 = vmatpush1.msra.mxu0 0.0
        %1537 = vmatprep.subr.mxu0 0.0
        %1538 = vmatpush1.msra.mxu0 0.0
        %1539 = vmatprep.subr.mxu0 0.0
        %1540 = vmatpush1.msra.mxu0 0.0
        %1541 = vmatprep.subr.mxu0 0.0
        %1542 = vmatpush1.msra.mxu0 0.0
        %1543 = vmatprep.subr.mxu0 0.0
        %1544 = vmatpush1.msra.mxu0 0.0
        %1545 = vmatprep.subr.mxu0 0.0
        %1546 = vmatpush1.msra.mxu0 0.0
        %1547 = vmatprep.subr.mxu0 0.0
        %1548 = vmatpush1.msra.mxu0 0.0
        %1549 = vmatprep.subr.mxu0 0.0
        %1550 = vmatpush1.msra.mxu0 0.0
        %1551 = vmatprep.subr.mxu0 0.0
        %1552 = vmatpush1.msra.mxu0 0.0
        %1553 = vmatprep.subr.mxu0 0.0
        %1554 = vmatpush1.msra.mxu0 0.0
        %1555 = vmatprep.mubr.f32.mxu0 0.0
        %v1556 = vand.u32 %v340, 4294901760
        %1557 = vmatmul.mubr.f32.gmra.mrb[0].mxu0 %v1556
        %v1558 = vpop.f32.mrb[0].mxu0
        %v1559 = vadd.f32 %v1464, %v1558
        %v1560 = vpop.f32.mrb[0].mxu0
        %v1561 = vadd.f32 %v1466, %v1560
        %1562 = vmatprep.mubr.f32.mxu0 0.0
        %v1563 = vand.u32 %v343, 4294901760
        %1564 = vmatmul.mubr.f32.gmra.mrb[0].mxu0 %v1563
        %v1565 = vpop.f32.mrb[0].mxu0
        %v1566 = vadd.f32 %v1471, %v1565
        %v1567 = vpop.f32.mrb[0].mxu0
        %v1568 = vadd.f32 %v1473, %v1567
        %1569 = vmatprep.mubr.f32.mxu0 0.0
        %v1570 = vand.u32 %v346, 4294901760
        %1571 = vmatmul.mubr.f32.gmra.mrb[0].mxu0 %v1570
        %v1572 = vpop.f32.mrb[0].mxu0
        %v1573 = vadd.f32 %v1478, %v1572
        %v1574 = vpop.f32.mrb[0].mxu0
        %v1575 = vadd.f32 %v1480, %v1574
        %1576 = vmatprep.mubr.f32.mxu0 0.0
        %v1577 = vand.u32 %v349, 4294901760
        %1578 = vmatmul.mubr.f32.gmra.mrb[0].mxu0 %v1577
        %v1579 = vpop.f32.mrb[0].mxu0
        %v1580 = vadd.f32 %v1485, %v1579
        %v1581 = vpop.f32.mrb[0].mxu0
        %v1582 = vadd.f32 %v1487, %v1581
        %1583 = vdwg.mxu0
        %v1584 = vtanh.pop %v947
        %v1585 = vtanh.pop %v949
        %v1586 = vtanh.pop %v1559
        %v1587 = vtanh.pop %v1561
        %v1588 = vtanh.pop %v954
        %v1589 = vtanh.pop %v956
        %v1590 = vtanh.pop %v1566
        %v1591 = vtanh.pop %v1568
        %v1592 = vtanh.pop %v961
        %v1593 = vtanh.pop %v963
        %v1594 = vtanh.pop %v1573
        %v1595 = vtanh.pop %v1575
        %v1596 = vtanh.pop %v968
        %v1597 = vtanh.pop %v970
        %v1598 = vtanh.pop %v1580
        %v1599 = vtanh.pop %v1582
        %v1600 = vld [vmem:[%s3] sm:$0xff]
        %v1601 = vld [vmem:[%s3 + $0x8] sm:$0xff]
        %v1602 = vld [vmem:[%s3 + $0x10] sm:$0xff]
        %v1603 = vld [vmem:[%s3 + $0x18] sm:$0xff]
        %v1604 = vld [vmem:[%s4] sm:$0xff]
        %v1605 = vld [vmem:[%s4 + $0x8] sm:$0xff]
        %v1606 = vld [vmem:[%s4 + $0x10] sm:$0xff]
        %v1607 = vld [vmem:[%s4 + $0x18] sm:$0xff]
        %1609 = vset.pattern.permute.xlu0 0
        %1610 = vperm.xlu0 %1609, %v1604
        %v1611 = vpop.permute.xlu0 %1610
        %1614 = vset.pattern.permute.xlu0 0
        %1615 = vperm.xlu0 %1614, %v1605
        %v1616 = vpop.permute.xlu0 %1615
        %1619 = vset.pattern.permute.xlu0 0
        %1620 = vperm.xlu0 %1619, %v1606
        %v1621 = vpop.permute.xlu0 %1620
        %1624 = vset.pattern.permute.xlu0 0
        %1625 = vperm.xlu0 %1624, %v1607
        %v1626 = vpop.permute.xlu0 %1625
        %vm1628 = vcmask 261120
        %v1630 = vsel %vm1628, %v1600, 0
        %v1633 = vsel %vm1628, %v1601, 0
        %v1636 = vsel %vm1628, %v1602, 0
        %v1639 = vsel %vm1628, %v1603, 0
        %v1641 = vand.u32 %v1585, 4294901760
        %1642 = vmatprep.subr.mxu0 %v1641
        %v1643 = vand.u32 %v1584, 4294901760
        %1644 = vmatpush1.msra.mxu0 %v1643
        %v1645 = vand.u32 %v1589, 4294901760
        %1646 = vmatprep.subr.mxu0 %v1645
        %v1647 = vand.u32 %v1588, 4294901760
        %1648 = vmatpush1.msra.mxu0 %v1647
        %v1649 = vand.u32 %v1593, 4294901760
        %1650 = vmatprep.subr.mxu0 %v1649
        %v1651 = vand.u32 %v1592, 4294901760
        %1652 = vmatpush1.msra.mxu0 %v1651
        %v1653 = vand.u32 %v1597, 4294901760
        %1654 = vmatprep.subr.mxu0 %v1653
        %v1655 = vand.u32 %v1596, 4294901760
        %1656 = vmatpush1.msra.mxu0 %v1655
        %1657 = vmatprep.subr.mxu0 0.0
        %1658 = vmatpush1.msra.mxu0 0.0
        %1659 = vmatprep.subr.mxu0 0.0
        %1660 = vmatpush1.msra.mxu0 0.0
        %1661 = vmatprep.subr.mxu0 0.0
        %1662 = vmatpush1.msra.mxu0 0.0
        %1663 = vmatprep.subr.mxu0 0.0
        %1664 = vmatpush1.msra.mxu0 0.0
        %1665 = vmatprep.subr.mxu0 0.0
        %1666 = vmatpush1.msra.mxu0 0.0
        %1667 = vmatprep.subr.mxu0 0.0
        %1668 = vmatpush1.msra.mxu0 0.0
        %1669 = vmatprep.subr.mxu0 0.0
        %1670 = vmatpush1.msra.mxu0 0.0
        %1671 = vmatprep.subr.mxu0 0.0
        %1672 = vmatpush1.msra.mxu0 0.0
        %1673 = vmatprep.subr.mxu0 0.0
        %1674 = vmatpush1.msra.mxu0 0.0
        %1675 = vmatprep.subr.mxu0 0.0
        %1676 = vmatpush1.msra.mxu0 0.0
        %1677 = vmatprep.subr.mxu0 0.0
        %1678 = vmatpush1.msra.mxu0 0.0
        %1679 = vmatprep.subr.mxu0 0.0
        %1680 = vmatpush1.msra.mxu0 0.0
        %1681 = vmatprep.subr.mxu0 0.0
        %1682 = vmatpush1.msra.mxu0 0.0
        %1683 = vmatprep.subr.mxu0 0.0
        %1684 = vmatpush1.msra.mxu0 0.0
        %1685 = vmatprep.subr.mxu0 0.0
        %1686 = vmatpush1.msra.mxu0 0.0
        %1687 = vmatprep.subr.mxu0 0.0
        %1688 = vmatpush1.msra.mxu0 0.0
        %1689 = vmatprep.subr.mxu0 0.0
        %1690 = vmatpush1.msra.mxu0 0.0
        %1691 = vmatprep.subr.mxu0 0.0
        %1692 = vmatpush1.msra.mxu0 0.0
        %1693 = vmatprep.subr.mxu0 0.0
        %1694 = vmatpush1.msra.mxu0 0.0
        %1695 = vmatprep.subr.mxu0 0.0
        %1696 = vmatpush1.msra.mxu0 0.0
        %1697 = vmatprep.subr.mxu0 0.0
        %1698 = vmatpush1.msra.mxu0 0.0
        %1699 = vmatprep.subr.mxu0 0.0
        %1700 = vmatpush1.msra.mxu0 0.0
        %1701 = vmatprep.subr.mxu0 0.0
        %1702 = vmatpush1.msra.mxu0 0.0
        %1703 = vmatprep.subr.mxu0 0.0
        %1704 = vmatpush1.msra.mxu0 0.0
        %1705 = vmatprep.subr.mxu0 0.0
        %1706 = vmatpush1.msra.mxu0 0.0
        %1707 = vmatprep.subr.mxu0 0.0
        %1708 = vmatpush1.msra.mxu0 0.0
        %1709 = vmatprep.subr.mxu0 0.0
        %1710 = vmatpush1.msra.mxu0 0.0
        %1711 = vmatprep.subr.mxu0 0.0
        %1712 = vmatpush1.msra.mxu0 0.0
        %1713 = vmatprep.mubr.f32.mxu0 0.0
        %v1714 = vand.u32 %v1630, 4294901760
        %v1715 = vsub.f32 %v1630, %v1714
        %v1716 = vand.u32 %v1715, 4294901760
        %v1717 = vsub.f32 %v1715, %v1716
        %v1718 = vand.u32 %v1717, 4294901760
        %1719 = vmatmul.mubr.f32.gmra.mrb[0].mxu0 %v1718
        %v1720 = vpop.f32.mrb[0].mxu0
        %v1721 = vadd.f32 %v1611, %v1720
        %v1722 = vpop.f32.mrb[0].mxu0
        %v1723 = vadd.f32 %v1611, %v1722
        %1724 = vmatprep.mubr.f32.mxu0 0.0
        %v1725 = vand.u32 %v1633, 4294901760
        %v1726 = vsub.f32 %v1633, %v1725
        %v1727 = vand.u32 %v1726, 4294901760
        %v1728 = vsub.f32 %v1726, %v1727
        %v1729 = vand.u32 %v1728, 4294901760
        %1730 = vmatmul.mubr.f32.gmra.mrb[0].mxu0 %v1729
        %v1731 = vpop.f32.mrb[0].mxu0
        %v1732 = vadd.f32 %v1616, %v1731
        %v1733 = vpop.f32.mrb[0].mxu0
        %v1734 = vadd.f32 %v1616, %v1733
        %1735 = vmatprep.mubr.f32.mxu0 0.0
        %v1736 = vand.u32 %v1636, 4294901760
        %v1737 = vsub.f32 %v1636, %v1736
        %v1738 = vand.u32 %v1737, 4294901760
        %v1739 = vsub.f32 %v1737, %v1738
        %v1740 = vand.u32 %v1739, 4294901760
        %1741 = vmatmul.mubr.f32.gmra.mrb[0].mxu0 %v1740
        %v1742 = vpop.f32.mrb[0].mxu0
        %v1743 = vadd.f32 %v1621, %v1742
        %v1744 = vpop.f32.mrb[0].mxu0
        %v1745 = vadd.f32 %v1621, %v1744
        %1746 = vmatprep.mubr.f32.mxu0 0.0
        %v1747 = vand.u32 %v1639, 4294901760
        %v1748 = vsub.f32 %v1639, %v1747
        %v1749 = vand.u32 %v1748, 4294901760
        %v1750 = vsub.f32 %v1748, %v1749
        %v1751 = vand.u32 %v1750, 4294901760
        %1752 = vmatmul.mubr.f32.gmra.mrb[0].mxu0 %v1751
        %v1753 = vpop.f32.mrb[0].mxu0
        %v1754 = vadd.f32 %v1626, %v1753
        %v1755 = vpop.f32.mrb[0].mxu0
        %v1756 = vadd.f32 %v1626, %v1755
        %1757 = vdwg.mxu0
        %v1758 = vand.u32 %v1585, 4294901760
        %v1759 = vsub.f32 %v1585, %v1758
        %v1760 = vand.u32 %v1759, 4294901760
        %v1761 = vsub.f32 %v1759, %v1760
        %v1762 = vand.u32 %v1761, 4294901760
        %1763 = vmatprep.subr.mxu0 %v1762
        %v1764 = vand.u32 %v1584, 4294901760
        %v1765 = vsub.f32 %v1584, %v1764
        %v1766 = vand.u32 %v1765, 4294901760
        %v1767 = vsub.f32 %v1765, %v1766
        %v1768 = vand.u32 %v1767, 4294901760
        %1769 = vmatpush1.msra.mxu0 %v1768
        %v1770 = vand.u32 %v1589, 4294901760
        %v1771 = vsub.f32 %v1589, %v1770
        %v1772 = vand.u32 %v1771, 4294901760
        %v1773 = vsub.f32 %v1771, %v1772
        %v1774 = vand.u32 %v1773, 4294901760
        %1775 = vmatprep.subr.mxu0 %v1774
        %v1776 = vand.u32 %v1588, 4294901760
        %v1777 = vsub.f32 %v1588, %v1776
        %v1778 = vand.u32 %v1777, 4294901760
        %v1779 = vsub.f32 %v1777, %v1778
        %v1780 = vand.u32 %v1779, 4294901760
        %1781 = vmatpush1.msra.mxu0 %v1780
        %v1782 = vand.u32 %v1593, 4294901760
        %v1783 = vsub.f32 %v1593, %v1782
        %v1784 = vand.u32 %v1783, 4294901760
        %v1785 = vsub.f32 %v1783, %v1784
        %v1786 = vand.u32 %v1785, 4294901760
        %1787 = vmatprep.subr.mxu0 %v1786
        %v1788 = vand.u32 %v1592, 4294901760
        %v1789 = vsub.f32 %v1592, %v1788
        %v1790 = vand.u32 %v1789, 4294901760
        %v1791 = vsub.f32 %v1789, %v1790
        %v1792 = vand.u32 %v1791, 4294901760
        %1793 = vmatpush1.msra.mxu0 %v1792
        %v1794 = vand.u32 %v1597, 4294901760
        %v1795 = vsub.f32 %v1597, %v1794
        %v1796 = vand.u32 %v1795, 4294901760
        %v1797 = vsub.f32 %v1795, %v1796
        %v1798 = vand.u32 %v1797, 4294901760
        %1799 = vmatprep.subr.mxu0 %v1798
        %v1800 = vand.u32 %v1596, 4294901760
        %v1801 = vsub.f32 %v1596, %v1800
        %v1802 = vand.u32 %v1801, 4294901760
        %v1803 = vsub.f32 %v1801, %v1802
        %v1804 = vand.u32 %v1803, 4294901760
        %1805 = vmatpush1.msra.mxu0 %v1804
        %1806 = vmatprep.subr.mxu0 0.0
        %1807 = vmatpush1.msra.mxu0 0.0
        %1808 = vmatprep.subr.mxu0 0.0
        %1809 = vmatpush1.msra.mxu0 0.0
        %1810 = vmatprep.subr.mxu0 0.0
        %1811 = vmatpush1.msra.mxu0 0.0
        %1812 = vmatprep.subr.mxu0 0.0
        %1813 = vmatpush1.msra.mxu0 0.0
        %1814 = vmatprep.subr.mxu0 0.0
        %1815 = vmatpush1.msra.mxu0 0.0
        %1816 = vmatprep.subr.mxu0 0.0
        %1817 = vmatpush1.msra.mxu0 0.0
        %1818 = vmatprep.subr.mxu0 0.0
        %1819 = vmatpush1.msra.mxu0 0.0
        %1820 = vmatprep.subr.mxu0 0.0
        %1821 = vmatpush1.msra.mxu0 0.0
        %1822 = vmatprep.subr.mxu0 0.0
        %1823 = vmatpush1.msra.mxu0 0.0
        %1824 = vmatprep.subr.mxu0 0.0
        %1825 = vmatpush1.msra.mxu0 0.0
        %1826 = vmatprep.subr.mxu0 0.0
        %1827 = vmatpush1.msra.mxu0 0.0
        %1828 = vmatprep.subr.mxu0 0.0
        %1829 = vmatpush1.msra.mxu0 0.0
        %1830 = vmatprep.subr.mxu0 0.0
        %1831 = vmatpush1.msra.mxu0 0.0
        %1832 = vmatprep.subr.mxu0 0.0
        %1833 = vmatpush1.msra.mxu0 0.0
        %1834 = vmatprep.subr.mxu0 0.0
        %1835 = vmatpush1.msra.mxu0 0.0
        %1836 = vmatprep.subr.mxu0 0.0
        %1837 = vmatpush1.msra.mxu0 0.0
        %1838 = vmatprep.subr.mxu0 0.0
        %1839 = vmatpush1.msra.mxu0 0.0
        %1840 = vmatprep.subr.mxu0 0.0
        %1841 = vmatpush1.msra.mxu0 0.0
        %1842 = vmatprep.subr.mxu0 0.0
        %1843 = vmatpush1.msra.mxu0 0.0
        %1844 = vmatprep.subr.mxu0 0.0
        %1845 = vmatpush1.msra.mxu0 0.0
        %1846 = vmatprep.subr.mxu0 0.0
        %1847 = vmatpush1.msra.mxu0 0.0
        %1848 = vmatprep.subr.mxu0 0.0
        %1849 = vmatpush1.msra.mxu0 0.0
        %1850 = vmatprep.subr.mxu0 0.0
        %1851 = vmatpush1.msra.mxu0 0.0
        %1852 = vmatprep.subr.mxu0 0.0
        %1853 = vmatpush1.msra.mxu0 0.0
        %1854 = vmatprep.subr.mxu0 0.0
        %1855 = vmatpush1.msra.mxu0 0.0
        %1856 = vmatprep.subr.mxu0 0.0
        %1857 = vmatpush1.msra.mxu0 0.0
        %1858 = vmatprep.subr.mxu0 0.0
        %1859 = vmatpush1.msra.mxu0 0.0
        %1860 = vmatprep.subr.mxu0 0.0
        %1861 = vmatpush1.msra.mxu0 0.0
        %1862 = vmatprep.mubr.f32.mxu0 0.0
        %v1863 = vand.u32 %v1630, 4294901760
        %1864 = vmatmul.mubr.f32.gmra.mrb[0].mxu0 %v1863
        %v1865 = vpop.f32.mrb[0].mxu0
        %v1866 = vadd.f32 %v1721, %v1865
        %v1867 = vpop.f32.mrb[0].mxu0
        %v1868 = vadd.f32 %v1723, %v1867
        %1869 = vmatprep.mubr.f32.mxu0 0.0
        %v1870 = vand.u32 %v1633, 4294901760
        %1871 = vmatmul.mubr.f32.gmra.mrb[0].mxu0 %v1870
        %v1872 = vpop.f32.mrb[0].mxu0
        %v1873 = vadd.f32 %v1732, %v1872
        %v1874 = vpop.f32.mrb[0].mxu0
        %v1875 = vadd.f32 %v1734, %v1874
        %1876 = vmatprep.mubr.f32.mxu0 0.0
        %v1877 = vand.u32 %v1636, 4294901760
        %1878 = vmatmul.mubr.f32.gmra.mrb[0].mxu0 %v1877
        %v1879 = vpop.f32.mrb[0].mxu0
        %v1880 = vadd.f32 %v1743, %v1879
        %v1881 = vpop.f32.mrb[0].mxu0
        %v1882 = vadd.f32 %v1745, %v1881
        %1883 = vmatprep.mubr.f32.mxu0 0.0
        %v1884 = vand.u32 %v1639, 4294901760
        %1885 = vmatmul.mubr.f32.gmra.mrb[0].mxu0 %v1884
        %v1886 = vpop.f32.mrb[0].mxu0
        %v1887 = vadd.f32 %v1754, %v1886
        %v1888 = vpop.f32.mrb[0].mxu0
        %v1889 = vadd.f32 %v1756, %v1888
        %1890 = vdwg.mxu0
        %v1891 = vand.u32 %v1585, 4294901760
        %v1892 = vsub.f32 %v1585, %v1891
        %1893 = vmatprep.subr.mxu0 %v1892
        %v1894 = vand.u32 %v1584, 4294901760
        %v1895 = vsub.f32 %v1584, %v1894
        %1896 = vmatpush1.msra.mxu0 %v1895
        %v1897 = vand.u32 %v1589, 4294901760
        %v1898 = vsub.f32 %v1589, %v1897
        %1899 = vmatprep.subr.mxu0 %v1898
        %v1900 = vand.u32 %v1588, 4294901760
        %v1901 = vsub.f32 %v1588, %v1900
        %1902 = vmatpush1.msra.mxu0 %v1901
        %v1903 = vand.u32 %v1593, 4294901760
        %v1904 = vsub.f32 %v1593, %v1903
        %1905 = vmatprep.subr.mxu0 %v1904
        %v1906 = vand.u32 %v1592, 4294901760
        %v1907 = vsub.f32 %v1592, %v1906
        %1908 = vmatpush1.msra.mxu0 %v1907
        %v1909 = vand.u32 %v1597, 4294901760
        %v1910 = vsub.f32 %v1597, %v1909
        %1911 = vmatprep.subr.mxu0 %v1910
        %v1912 = vand.u32 %v1596, 4294901760
        %v1913 = vsub.f32 %v1596, %v1912
        %1914 = vmatpush1.msra.mxu0 %v1913
        %1915 = vmatprep.subr.mxu0 0.0
        %1916 = vmatpush1.msra.mxu0 0.0
        %1917 = vmatprep.subr.mxu0 0.0
        %1918 = vmatpush1.msra.mxu0 0.0
        %1919 = vmatprep.subr.mxu0 0.0
        %1920 = vmatpush1.msra.mxu0 0.0
        %1921 = vmatprep.subr.mxu0 0.0
        %1922 = vmatpush1.msra.mxu0 0.0
        %1923 = vmatprep.subr.mxu0 0.0
        %1924 = vmatpush1.msra.mxu0 0.0
        %1925 = vmatprep.subr.mxu0 0.0
        %1926 = vmatpush1.msra.mxu0 0.0
        %1927 = vmatprep.subr.mxu0 0.0
        %1928 = vmatpush1.msra.mxu0 0.0
        %1929 = vmatprep.subr.mxu0 0.0
        %1930 = vmatpush1.msra.mxu0 0.0
        %1931 = vmatprep.subr.mxu0 0.0
        %1932 = vmatpush1.msra.mxu0 0.0
        %1933 = vmatprep.subr.mxu0 0.0
        %1934 = vmatpush1.msra.mxu0 0.0
        %1935 = vmatprep.subr.mxu0 0.0
        %1936 = vmatpush1.msra.mxu0 0.0
        %1937 = vmatprep.subr.mxu0 0.0
        %1938 = vmatpush1.msra.mxu0 0.0
        %1939 = vmatprep.subr.mxu0 0.0
        %1940 = vmatpush1.msra.mxu0 0.0
        %1941 = vmatprep.subr.mxu0 0.0
        %1942 = vmatpush1.msra.mxu0 0.0
        %1943 = vmatprep.subr.mxu0 0.0
        %1944 = vmatpush1.msra.mxu0 0.0
        %1945 = vmatprep.subr.mxu0 0.0
        %1946 = vmatpush1.msra.mxu0 0.0
        %1947 = vmatprep.subr.mxu0 0.0
        %1948 = vmatpush1.msra.mxu0 0.0
        %1949 = vmatprep.subr.mxu0 0.0
        %1950 = vmatpush1.msra.mxu0 0.0
        %1951 = vmatprep.subr.mxu0 0.0
        %1952 = vmatpush1.msra.mxu0 0.0
        %1953 = vmatprep.subr.mxu0 0.0
        %1954 = vmatpush1.msra.mxu0 0.0
        %1955 = vmatprep.subr.mxu0 0.0
        %1956 = vmatpush1.msra.mxu0 0.0
        %1957 = vmatprep.subr.mxu0 0.0
        %1958 = vmatpush1.msra.mxu0 0.0
        %1959 = vmatprep.subr.mxu0 0.0
        %1960 = vmatpush1.msra.mxu0 0.0
        %1961 = vmatprep.subr.mxu0 0.0
        %1962 = vmatpush1.msra.mxu0 0.0
        %1963 = vmatprep.subr.mxu0 0.0
        %1964 = vmatpush1.msra.mxu0 0.0
        %1965 = vmatprep.subr.mxu0 0.0
        %1966 = vmatpush1.msra.mxu0 0.0
        %1967 = vmatprep.subr.mxu0 0.0
        %1968 = vmatpush1.msra.mxu0 0.0
        %1969 = vmatprep.subr.mxu0 0.0
        %1970 = vmatpush1.msra.mxu0 0.0
        %1971 = vmatprep.mubr.f32.mxu0 0.0
        %v1972 = vand.u32 %v1630, 4294901760
        %v1973 = vsub.f32 %v1630, %v1972
        %1974 = vmatmul.mubr.f32.gmra.mrb[0].mxu0 %v1973
        %v1975 = vpop.f32.mrb[0].mxu0
        %v1976 = vadd.f32 %v1866, %v1975
        %v1977 = vpop.f32.mrb[0].mxu0
        %v1978 = vadd.f32 %v1868, %v1977
        %1979 = vmatprep.mubr.f32.mxu0 0.0
        %v1980 = vand.u32 %v1633, 4294901760
        %v1981 = vsub.f32 %v1633, %v1980
        %1982 = vmatmul.mubr.f32.gmra.mrb[0].mxu0 %v1981
        %v1983 = vpop.f32.mrb[0].mxu0
        %v1984 = vadd.f32 %v1873, %v1983
        %v1985 = vpop.f32.mrb[0].mxu0
        %v1986 = vadd.f32 %v1875, %v1985
        %1987 = vmatprep.mubr.f32.mxu0 0.0
        %v1988 = vand.u32 %v1636, 4294901760
        %v1989 = vsub.f32 %v1636, %v1988
        %1990 = vmatmul.mubr.f32.gmra.mrb[0].mxu0 %v1989
        %v1991 = vpop.f32.mrb[0].mxu0
        %v1992 = vadd.f32 %v1880, %v1991
        %v1993 = vpop.f32.mrb[0].mxu0
        %v1994 = vadd.f32 %v1882, %v1993
        %1995 = vmatprep.mubr.f32.mxu0 0.0
        %v1996 = vand.u32 %v1639, 4294901760
        %v1997 = vsub.f32 %v1639, %v1996
        %1998 = vmatmul.mubr.f32.gmra.mrb[0].mxu0 %v1997
        %v1999 = vpop.f32.mrb[0].mxu0
        %v2000 = vadd.f32 %v1887, %v1999
        %v2001 = vpop.f32.mrb[0].mxu0
        %v2002 = vadd.f32 %v1889, %v2001
        %2003 = vdwg.mxu0
        %v2004 = vand.u32 %v1585, 4294901760
        %2005 = vmatprep.subr.mxu0 %v2004
        %v2006 = vand.u32 %v1584, 4294901760
        %2007 = vmatpush1.msra.mxu0 %v2006
        %v2008 = vand.u32 %v1589, 4294901760
        %2009 = vmatprep.subr.mxu0 %v2008
        %v2010 = vand.u32 %v1588, 4294901760
        %2011 = vmatpush1.msra.mxu0 %v2010
        %v2012 = vand.u32 %v1593, 4294901760
        %2013 = vmatprep.subr.mxu0 %v2012
        %v2014 = vand.u32 %v1592, 4294901760
        %2015 = vmatpush1.msra.mxu0 %v2014
        %v2016 = vand.u32 %v1597, 4294901760
        %2017 = vmatprep.subr.mxu0 %v2016
        %v2018 = vand.u32 %v1596, 4294901760
        %2019 = vmatpush1.msra.mxu0 %v2018
        %2020 = vmatprep.subr.mxu0 0.0
        %2021 = vmatpush1.msra.mxu0 0.0
        %2022 = vmatprep.subr.mxu0 0.0
        %2023 = vmatpush1.msra.mxu0 0.0
        %2024 = vmatprep.subr.mxu0 0.0
        %2025 = vmatpush1.msra.mxu0 0.0
        %2026 = vmatprep.subr.mxu0 0.0
        %2027 = vmatpush1.msra.mxu0 0.0
        %2028 = vmatprep.subr.mxu0 0.0
        %2029 = vmatpush1.msra.mxu0 0.0
        %2030 = vmatprep.subr.mxu0 0.0
        %2031 = vmatpush1.msra.mxu0 0.0
        %2032 = vmatprep.subr.mxu0 0.0
        %2033 = vmatpush1.msra.mxu0 0.0
        %2034 = vmatprep.subr.mxu0 0.0
        %2035 = vmatpush1.msra.mxu0 0.0
        %2036 = vmatprep.subr.mxu0 0.0
        %2037 = vmatpush1.msra.mxu0 0.0
        %2038 = vmatprep.subr.mxu0 0.0
        %2039 = vmatpush1.msra.mxu0 0.0
        %2040 = vmatprep.subr.mxu0 0.0
        %2041 = vmatpush1.msra.mxu0 0.0
        %2042 = vmatprep.subr.mxu0 0.0
        %2043 = vmatpush1.msra.mxu0 0.0
        %2044 = vmatprep.subr.mxu0 0.0
        %2045 = vmatpush1.msra.mxu0 0.0
        %2046 = vmatprep.subr.mxu0 0.0
        %2047 = vmatpush1.msra.mxu0 0.0
        %2048 = vmatprep.subr.mxu0 0.0
        %2049 = vmatpush1.msra.mxu0 0.0
        %2050 = vmatprep.subr.mxu0 0.0
        %2051 = vmatpush1.msra.mxu0 0.0
        %2052 = vmatprep.subr.mxu0 0.0
        %2053 = vmatpush1.msra.mxu0 0.0
        %2054 = vmatprep.subr.mxu0 0.0
        %2055 = vmatpush1.msra.mxu0 0.0
        %2056 = vmatprep.subr.mxu0 0.0
        %2057 = vmatpush1.msra.mxu0 0.0
        %2058 = vmatprep.subr.mxu0 0.0
        %2059 = vmatpush1.msra.mxu0 0.0
        %2060 = vmatprep.subr.mxu0 0.0
        %2061 = vmatpush1.msra.mxu0 0.0
        %2062 = vmatprep.subr.mxu0 0.0
        %2063 = vmatpush1.msra.mxu0 0.0
        %2064 = vmatprep.subr.mxu0 0.0
        %2065 = vmatpush1.msra.mxu0 0.0
        %2066 = vmatprep.subr.mxu0 0.0
        %2067 = vmatpush1.msra.mxu0 0.0
        %2068 = vmatprep.subr.mxu0 0.0
        %2069 = vmatpush1.msra.mxu0 0.0
        %2070 = vmatprep.subr.mxu0 0.0
        %2071 = vmatpush1.msra.mxu0 0.0
        %2072 = vmatprep.subr.mxu0 0.0
        %2073 = vmatpush1.msra.mxu0 0.0
        %2074 = vmatprep.subr.mxu0 0.0
        %2075 = vmatpush1.msra.mxu0 0.0
        %2076 = vmatprep.mubr.f32.mxu0 0.0
        %v2077 = vand.u32 %v1630, 4294901760
        %v2078 = vsub.f32 %v1630, %v2077
        %v2079 = vand.u32 %v2078, 4294901760
        %2080 = vmatmul.mubr.f32.gmra.mrb[0].mxu0 %v2079
        %v2081 = vpop.f32.mrb[0].mxu0
        %v2082 = vadd.f32 %v1976, %v2081
        %v2083 = vpop.f32.mrb[0].mxu0
        %v2084 = vadd.f32 %v1978, %v2083
        %2085 = vmatprep.mubr.f32.mxu0 0.0
        %v2086 = vand.u32 %v1633, 4294901760
        %v2087 = vsub.f32 %v1633, %v2086
        %v2088 = vand.u32 %v2087, 4294901760
        %2089 = vmatmul.mubr.f32.gmra.mrb[0].mxu0 %v2088
        %v2090 = vpop.f32.mrb[0].mxu0
        %v2091 = vadd.f32 %v1984, %v2090
        %v2092 = vpop.f32.mrb[0].mxu0
        %v2093 = vadd.f32 %v1986, %v2092
        %2094 = vmatprep.mubr.f32.mxu0 0.0
        %v2095 = vand.u32 %v1636, 4294901760
        %v2096 = vsub.f32 %v1636, %v2095
        %v2097 = vand.u32 %v2096, 4294901760
        %2098 = vmatmul.mubr.f32.gmra.mrb[0].mxu0 %v2097
        %v2099 = vpop.f32.mrb[0].mxu0
        %v2100 = vadd.f32 %v1992, %v2099
        %v2101 = vpop.f32.mrb[0].mxu0
        %v2102 = vadd.f32 %v1994, %v2101
        %2103 = vmatprep.mubr.f32.mxu0 0.0
        %v2104 = vand.u32 %v1639, 4294901760
        %v2105 = vsub.f32 %v1639, %v2104
        %v2106 = vand.u32 %v2105, 4294901760
        %2107 = vmatmul.mubr.f32.gmra.mrb[0].mxu0 %v2106
        %v2108 = vpop.f32.mrb[0].mxu0
        %v2109 = vadd.f32 %v2000, %v2108
        %v2110 = vpop.f32.mrb[0].mxu0
        %v2111 = vadd.f32 %v2002, %v2110
        %2112 = vdwg.mxu0
        %v2113 = vand.u32 %v1585, 4294901760
        %v2114 = vsub.f32 %v1585, %v2113
        %v2115 = vand.u32 %v2114, 4294901760
        %2116 = vmatprep.subr.mxu0 %v2115
        %v2117 = vand.u32 %v1584, 4294901760
        %v2118 = vsub.f32 %v1584, %v2117
        %v2119 = vand.u32 %v2118, 4294901760
        %2120 = vmatpush1.msra.mxu0 %v2119
        %v2121 = vand.u32 %v1589, 4294901760
        %v2122 = vsub.f32 %v1589, %v2121
        %v2123 = vand.u32 %v2122, 4294901760
        %2124 = vmatprep.subr.mxu0 %v2123
        %v2125 = vand.u32 %v1588, 4294901760
        %v2126 = vsub.f32 %v1588, %v2125
        %v2127 = vand.u32 %v2126, 4294901760
        %2128 = vmatpush1.msra.mxu0 %v2127
        %v2129 = vand.u32 %v1593, 4294901760
        %v2130 = vsub.f32 %v1593, %v2129
        %v2131 = vand.u32 %v2130, 4294901760
        %2132 = vmatprep.subr.mxu0 %v2131
        %v2133 = vand.u32 %v1592, 4294901760
        %v2134 = vsub.f32 %v1592, %v2133
        %v2135 = vand.u32 %v2134, 4294901760
        %2136 = vmatpush1.msra.mxu0 %v2135
        %v2137 = vand.u32 %v1597, 4294901760
        %v2138 = vsub.f32 %v1597, %v2137
        %v2139 = vand.u32 %v2138, 4294901760
        %2140 = vmatprep.subr.mxu0 %v2139
        %v2141 = vand.u32 %v1596, 4294901760
        %v2142 = vsub.f32 %v1596, %v2141
        %v2143 = vand.u32 %v2142, 4294901760
        %2144 = vmatpush1.msra.mxu0 %v2143
        %2145 = vmatprep.subr.mxu0 0.0
        %2146 = vmatpush1.msra.mxu0 0.0
        %2147 = vmatprep.subr.mxu0 0.0
        %2148 = vmatpush1.msra.mxu0 0.0
        %2149 = vmatprep.subr.mxu0 0.0
        %2150 = vmatpush1.msra.mxu0 0.0
        %2151 = vmatprep.subr.mxu0 0.0
        %2152 = vmatpush1.msra.mxu0 0.0
        %2153 = vmatprep.subr.mxu0 0.0
        %2154 = vmatpush1.msra.mxu0 0.0
        %2155 = vmatprep.subr.mxu0 0.0
        %2156 = vmatpush1.msra.mxu0 0.0
        %2157 = vmatprep.subr.mxu0 0.0
        %2158 = vmatpush1.msra.mxu0 0.0
        %2159 = vmatprep.subr.mxu0 0.0
        %2160 = vmatpush1.msra.mxu0 0.0
        %2161 = vmatprep.subr.mxu0 0.0
        %2162 = vmatpush1.msra.mxu0 0.0
        %2163 = vmatprep.subr.mxu0 0.0
        %2164 = vmatpush1.msra.mxu0 0.0
        %2165 = vmatprep.subr.mxu0 0.0
        %2166 = vmatpush1.msra.mxu0 0.0
        %2167 = vmatprep.subr.mxu0 0.0
        %2168 = vmatpush1.msra.mxu0 0.0
        %2169 = vmatprep.subr.mxu0 0.0
        %2170 = vmatpush1.msra.mxu0 0.0
        %2171 = vmatprep.subr.mxu0 0.0
        %2172 = vmatpush1.msra.mxu0 0.0
        %2173 = vmatprep.subr.mxu0 0.0
        %2174 = vmatpush1.msra.mxu0 0.0
        %2175 = vmatprep.subr.mxu0 0.0
        %2176 = vmatpush1.msra.mxu0 0.0
        %2177 = vmatprep.subr.mxu0 0.0
        %2178 = vmatpush1.msra.mxu0 0.0
        %2179 = vmatprep.subr.mxu0 0.0
        %2180 = vmatpush1.msra.mxu0 0.0
        %2181 = vmatprep.subr.mxu0 0.0
        %2182 = vmatpush1.msra.mxu0 0.0
        %2183 = vmatprep.subr.mxu0 0.0
        %2184 = vmatpush1.msra.mxu0 0.0
        %2185 = vmatprep.subr.mxu0 0.0
        %2186 = vmatpush1.msra.mxu0 0.0
        %2187 = vmatprep.subr.mxu0 0.0
        %2188 = vmatpush1.msra.mxu0 0.0
        %2189 = vmatprep.subr.mxu0 0.0
        %2190 = vmatpush1.msra.mxu0 0.0
        %2191 = vmatprep.subr.mxu0 0.0
        %2192 = vmatpush1.msra.mxu0 0.0
        %2193 = vmatprep.subr.mxu0 0.0
        %2194 = vmatpush1.msra.mxu0 0.0
        %2195 = vmatprep.subr.mxu0 0.0
        %2196 = vmatpush1.msra.mxu0 0.0
        %2197 = vmatprep.subr.mxu0 0.0
        %2198 = vmatpush1.msra.mxu0 0.0
        %2199 = vmatprep.subr.mxu0 0.0
        %2200 = vmatpush1.msra.mxu0 0.0
        %2201 = vmatprep.mubr.f32.mxu0 0.0
        %v2202 = vand.u32 %v1630, 4294901760
        %2203 = vmatmul.mubr.f32.gmra.mrb[0].mxu0 %v2202
        %v2204 = vpop.f32.mrb[0].mxu0
        %v2205 = vadd.f32 %v2082, %v2204
        %v2206 = vpop.f32.mrb[0].mxu0
        %v2207 = vadd.f32 %v2084, %v2206
        %2208 = vmatprep.mubr.f32.mxu0 0.0
        %v2209 = vand.u32 %v1633, 4294901760
        %2210 = vmatmul.mubr.f32.gmra.mrb[0].mxu0 %v2209
        %v2211 = vpop.f32.mrb[0].mxu0
        %v2212 = vadd.f32 %v2091, %v2211
        %v2213 = vpop.f32.mrb[0].mxu0
        %v2214 = vadd.f32 %v2093, %v2213
        %2215 = vmatprep.mubr.f32.mxu0 0.0
        %v2216 = vand.u32 %v1636, 4294901760
        %2217 = vmatmul.mubr.f32.gmra.mrb[0].mxu0 %v2216
        %v2218 = vpop.f32.mrb[0].mxu0
        %v2219 = vadd.f32 %v2100, %v2218
        %v2220 = vpop.f32.mrb[0].mxu0
        %v2221 = vadd.f32 %v2102, %v2220
        %2222 = vmatprep.mubr.f32.mxu0 0.0
        %v2223 = vand.u32 %v1639, 4294901760
        %2224 = vmatmul.mubr.f32.gmra.mrb[0].mxu0 %v2223
        %v2225 = vpop.f32.mrb[0].mxu0
        %v2226 = vadd.f32 %v2109, %v2225
        %v2227 = vpop.f32.mrb[0].mxu0
        %v2228 = vadd.f32 %v2111, %v2227
        %2229 = vdwg.mxu0
        %v2230 = vand.u32 %v1585, 4294901760
        %2231 = vmatprep.subr.mxu0 %v2230
        %v2232 = vand.u32 %v1584, 4294901760
        %2233 = vmatpush1.msra.mxu0 %v2232
        %v2234 = vand.u32 %v1589, 4294901760
        %2235 = vmatprep.subr.mxu0 %v2234
        %v2236 = vand.u32 %v1588, 4294901760
        %2237 = vmatpush1.msra.mxu0 %v2236
        %v2238 = vand.u32 %v1593, 4294901760
        %2239 = vmatprep.subr.mxu0 %v2238
        %v2240 = vand.u32 %v1592, 4294901760
        %2241 = vmatpush1.msra.mxu0 %v2240
        %v2242 = vand.u32 %v1597, 4294901760
        %2243 = vmatprep.subr.mxu0 %v2242
        %v2244 = vand.u32 %v1596, 4294901760
        %2245 = vmatpush1.msra.mxu0 %v2244
        %2246 = vmatprep.subr.mxu0 0.0
        %2247 = vmatpush1.msra.mxu0 0.0
        %2248 = vmatprep.subr.mxu0 0.0
        %2249 = vmatpush1.msra.mxu0 0.0
        %2250 = vmatprep.subr.mxu0 0.0
        %2251 = vmatpush1.msra.mxu0 0.0
        %2252 = vmatprep.subr.mxu0 0.0
        %2253 = vmatpush1.msra.mxu0 0.0
        %2254 = vmatprep.subr.mxu0 0.0
        %2255 = vmatpush1.msra.mxu0 0.0
        %2256 = vmatprep.subr.mxu0 0.0
        %2257 = vmatpush1.msra.mxu0 0.0
        %2258 = vmatprep.subr.mxu0 0.0
        %2259 = vmatpush1.msra.mxu0 0.0
        %2260 = vmatprep.subr.mxu0 0.0
        %2261 = vmatpush1.msra.mxu0 0.0
        %2262 = vmatprep.subr.mxu0 0.0
        %2263 = vmatpush1.msra.mxu0 0.0
        %2264 = vmatprep.subr.mxu0 0.0
        %2265 = vmatpush1.msra.mxu0 0.0
        %2266 = vmatprep.subr.mxu0 0.0
        %2267 = vmatpush1.msra.mxu0 0.0
        %2268 = vmatprep.subr.mxu0 0.0
        %2269 = vmatpush1.msra.mxu0 0.0
        %2270 = vmatprep.subr.mxu0 0.0
        %2271 = vmatpush1.msra.mxu0 0.0
        %2272 = vmatprep.subr.mxu0 0.0
        %2273 = vmatpush1.msra.mxu0 0.0
        %2274 = vmatprep.subr.mxu0 0.0
        %2275 = vmatpush1.msra.mxu0 0.0
        %2276 = vmatprep.subr.mxu0 0.0
        %2277 = vmatpush1.msra.mxu0 0.0
        %2278 = vmatprep.subr.mxu0 0.0
        %2279 = vmatpush1.msra.mxu0 0.0
        %2280 = vmatprep.subr.mxu0 0.0
        %2281 = vmatpush1.msra.mxu0 0.0
        %2282 = vmatprep.subr.mxu0 0.0
        %2283 = vmatpush1.msra.mxu0 0.0
        %2284 = vmatprep.subr.mxu0 0.0
        %2285 = vmatpush1.msra.mxu0 0.0
        %2286 = vmatprep.subr.mxu0 0.0
        %2287 = vmatpush1.msra.mxu0 0.0
        %2288 = vmatprep.subr.mxu0 0.0
        %2289 = vmatpush1.msra.mxu0 0.0
        %2290 = vmatprep.subr.mxu0 0.0
        %2291 = vmatpush1.msra.mxu0 0.0
        %2292 = vmatprep.subr.mxu0 0.0
        %2293 = vmatpush1.msra.mxu0 0.0
        %2294 = vmatprep.subr.mxu0 0.0
        %2295 = vmatpush1.msra.mxu0 0.0
        %2296 = vmatprep.subr.mxu0 0.0
        %2297 = vmatpush1.msra.mxu0 0.0
        %2298 = vmatprep.subr.mxu0 0.0
        %2299 = vmatpush1.msra.mxu0 0.0
        %2300 = vmatprep.subr.mxu0 0.0
        %2301 = vmatpush1.msra.mxu0 0.0
        %2302 = vmatprep.mubr.f32.mxu0 0.0
        %v2303 = vand.u32 %v1630, 4294901760
        %2304 = vmatmul.mubr.f32.gmra.mrb[0].mxu0 %v2303
        %v2305 = vpop.f32.mrb[0].mxu0
        %v2306 = vadd.f32 %v2205, %v2305
        %v2307 = vpop.f32.mrb[0].mxu0
        %v2308 = vadd.f32 %v2207, %v2307
        %2309 = vmatprep.mubr.f32.mxu0 0.0
        %v2310 = vand.u32 %v1633, 4294901760
        %2311 = vmatmul.mubr.f32.gmra.mrb[0].mxu0 %v2310
        %v2312 = vpop.f32.mrb[0].mxu0
        %v2313 = vadd.f32 %v2212, %v2312
        %v2314 = vpop.f32.mrb[0].mxu0
        %v2315 = vadd.f32 %v2214, %v2314
        %2316 = vmatprep.mubr.f32.mxu0 0.0
        %v2317 = vand.u32 %v1636, 4294901760
        %2318 = vmatmul.mubr.f32.gmra.mrb[0].mxu0 %v2317
        %v2319 = vpop.f32.mrb[0].mxu0
        %v2320 = vadd.f32 %v2219, %v2319
        %v2321 = vpop.f32.mrb[0].mxu0
        %v2322 = vadd.f32 %v2221, %v2321
        %2323 = vmatprep.mubr.f32.mxu0 0.0
        %v2324 = vand.u32 %v1639, 4294901760
        %2325 = vmatmul.mubr.f32.gmra.mrb[0].mxu0 %v2324
        %v2326 = vpop.f32.mrb[0].mxu0
        %v2327 = vadd.f32 %v2226, %v2326
        %v2328 = vpop.f32.mrb[0].mxu0
        %v2329 = vadd.f32 %v2228, %v2328
        %2330 = vdwg.mxu0
        %v2331 = vand.u32 %v1587, 4294901760
        %2332 = vmatprep.subr.mxu0 %v2331
        %v2333 = vand.u32 %v1586, 4294901760
        %2334 = vmatpush1.msra.mxu0 %v2333
        %v2335 = vand.u32 %v1591, 4294901760
        %2336 = vmatprep.subr.mxu0 %v2335
        %v2337 = vand.u32 %v1590, 4294901760
        %2338 = vmatpush1.msra.mxu0 %v2337
        %v2339 = vand.u32 %v1595, 4294901760
        %2340 = vmatprep.subr.mxu0 %v2339
        %v2341 = vand.u32 %v1594, 4294901760
        %2342 = vmatpush1.msra.mxu0 %v2341
        %v2343 = vand.u32 %v1599, 4294901760
        %2344 = vmatprep.subr.mxu0 %v2343
        %v2345 = vand.u32 %v1598, 4294901760
        %2346 = vmatpush1.msra.mxu0 %v2345
        %2347 = vmatprep.subr.mxu0 0.0
        %2348 = vmatpush1.msra.mxu0 0.0
        %2349 = vmatprep.subr.mxu0 0.0
        %2350 = vmatpush1.msra.mxu0 0.0
        %2351 = vmatprep.subr.mxu0 0.0
        %2352 = vmatpush1.msra.mxu0 0.0
        %2353 = vmatprep.subr.mxu0 0.0
        %2354 = vmatpush1.msra.mxu0 0.0
        %2355 = vmatprep.subr.mxu0 0.0
        %2356 = vmatpush1.msra.mxu0 0.0
        %2357 = vmatprep.subr.mxu0 0.0
        %2358 = vmatpush1.msra.mxu0 0.0
        %2359 = vmatprep.subr.mxu0 0.0
        %2360 = vmatpush1.msra.mxu0 0.0
        %2361 = vmatprep.subr.mxu0 0.0
        %2362 = vmatpush1.msra.mxu0 0.0
        %2363 = vmatprep.subr.mxu0 0.0
        %2364 = vmatpush1.msra.mxu0 0.0
        %2365 = vmatprep.subr.mxu0 0.0
        %2366 = vmatpush1.msra.mxu0 0.0
        %2367 = vmatprep.subr.mxu0 0.0
        %2368 = vmatpush1.msra.mxu0 0.0
        %2369 = vmatprep.subr.mxu0 0.0
        %2370 = vmatpush1.msra.mxu0 0.0
        %2371 = vmatprep.subr.mxu0 0.0
        %2372 = vmatpush1.msra.mxu0 0.0
        %2373 = vmatprep.subr.mxu0 0.0
        %2374 = vmatpush1.msra.mxu0 0.0
        %2375 = vmatprep.subr.mxu0 0.0
        %2376 = vmatpush1.msra.mxu0 0.0
        %2377 = vmatprep.subr.mxu0 0.0
        %2378 = vmatpush1.msra.mxu0 0.0
        %2379 = vmatprep.subr.mxu0 0.0
        %2380 = vmatpush1.msra.mxu0 0.0
        %2381 = vmatprep.subr.mxu0 0.0
        %2382 = vmatpush1.msra.mxu0 0.0
        %2383 = vmatprep.subr.mxu0 0.0
        %2384 = vmatpush1.msra.mxu0 0.0
        %2385 = vmatprep.subr.mxu0 0.0
        %2386 = vmatpush1.msra.mxu0 0.0
        %2387 = vmatprep.subr.mxu0 0.0
        %2388 = vmatpush1.msra.mxu0 0.0
        %2389 = vmatprep.subr.mxu0 0.0
        %2390 = vmatpush1.msra.mxu0 0.0
        %2391 = vmatprep.subr.mxu0 0.0
        %2392 = vmatpush1.msra.mxu0 0.0
        %2393 = vmatprep.subr.mxu0 0.0
        %2394 = vmatpush1.msra.mxu0 0.0
        %2395 = vmatprep.subr.mxu0 0.0
        %2396 = vmatpush1.msra.mxu0 0.0
        %2397 = vmatprep.subr.mxu0 0.0
        %2398 = vmatpush1.msra.mxu0 0.0
        %2399 = vmatprep.subr.mxu0 0.0
        %2400 = vmatpush1.msra.mxu0 0.0
        %2401 = vmatprep.subr.mxu0 0.0
        %2402 = vmatpush1.msra.mxu0 0.0
        %2403 = vmatprep.mubr.f32.mxu0 0.0
        %v2404 = vand.u32 %v1630, 4294901760
        %v2405 = vsub.f32 %v1630, %v2404
        %v2406 = vand.u32 %v2405, 4294901760
        %v2407 = vsub.f32 %v2405, %v2406
        %v2408 = vand.u32 %v2407, 4294901760
        %2409 = vmatmul.mubr.f32.gmra.mrb[0].mxu0 %v2408
        %v2410 = vpop.f32.mrb[0].mxu0
        %v2411 = vadd.f32 %v1611, %v2410
        %v2412 = vpop.f32.mrb[0].mxu0
        %v2413 = vadd.f32 %v1611, %v2412
        %2414 = vmatprep.mubr.f32.mxu0 0.0
        %v2415 = vand.u32 %v1633, 4294901760
        %v2416 = vsub.f32 %v1633, %v2415
        %v2417 = vand.u32 %v2416, 4294901760
        %v2418 = vsub.f32 %v2416, %v2417
        %v2419 = vand.u32 %v2418, 4294901760
        %2420 = vmatmul.mubr.f32.gmra.mrb[0].mxu0 %v2419
        %v2421 = vpop.f32.mrb[0].mxu0
        %v2422 = vadd.f32 %v1616, %v2421
        %v2423 = vpop.f32.mrb[0].mxu0
        %v2424 = vadd.f32 %v1616, %v2423
        %2425 = vmatprep.mubr.f32.mxu0 0.0
        %v2426 = vand.u32 %v1636, 4294901760
        %v2427 = vsub.f32 %v1636, %v2426
        %v2428 = vand.u32 %v2427, 4294901760
        %v2429 = vsub.f32 %v2427, %v2428
        %v2430 = vand.u32 %v2429, 4294901760
        %2431 = vmatmul.mubr.f32.gmra.mrb[0].mxu0 %v2430
        %v2432 = vpop.f32.mrb[0].mxu0
        %v2433 = vadd.f32 %v1621, %v2432
        %v2434 = vpop.f32.mrb[0].mxu0
        %v2435 = vadd.f32 %v1621, %v2434
        %2436 = vmatprep.mubr.f32.mxu0 0.0
        %v2437 = vand.u32 %v1639, 4294901760
        %v2438 = vsub.f32 %v1639, %v2437
        %v2439 = vand.u32 %v2438, 4294901760
        %v2440 = vsub.f32 %v2438, %v2439
        %v2441 = vand.u32 %v2440, 4294901760
        %2442 = vmatmul.mubr.f32.gmra.mrb[0].mxu0 %v2441
        %v2443 = vpop.f32.mrb[0].mxu0
        %v2444 = vadd.f32 %v1626, %v2443
        %v2445 = vpop.f32.mrb[0].mxu0
        %v2446 = vadd.f32 %v1626, %v2445
        %2447 = vdwg.mxu0
        %v2448 = vand.u32 %v1587, 4294901760
        %v2449 = vsub.f32 %v1587, %v2448
        %v2450 = vand.u32 %v2449, 4294901760
        %v2451 = vsub.f32 %v2449, %v2450
        %v2452 = vand.u32 %v2451, 4294901760
        %2453 = vmatprep.subr.mxu0 %v2452
        %v2454 = vand.u32 %v1586, 4294901760
        %v2455 = vsub.f32 %v1586, %v2454
        %v2456 = vand.u32 %v2455, 4294901760
        %v2457 = vsub.f32 %v2455, %v2456
        %v2458 = vand.u32 %v2457, 4294901760
        %2459 = vmatpush1.msra.mxu0 %v2458
        %v2460 = vand.u32 %v1591, 4294901760
        %v2461 = vsub.f32 %v1591, %v2460
        %v2462 = vand.u32 %v2461, 4294901760
        %v2463 = vsub.f32 %v2461, %v2462
        %v2464 = vand.u32 %v2463, 4294901760
        %2465 = vmatprep.subr.mxu0 %v2464
        %v2466 = vand.u32 %v1590, 4294901760
        %v2467 = vsub.f32 %v1590, %v2466
        %v2468 = vand.u32 %v2467, 4294901760
        %v2469 = vsub.f32 %v2467, %v2468
        %v2470 = vand.u32 %v2469, 4294901760
        %2471 = vmatpush1.msra.mxu0 %v2470
        %v2472 = vand.u32 %v1595, 4294901760
        %v2473 = vsub.f32 %v1595, %v2472
        %v2474 = vand.u32 %v2473, 4294901760
        %v2475 = vsub.f32 %v2473, %v2474
        %v2476 = vand.u32 %v2475, 4294901760
        %2477 = vmatprep.subr.mxu0 %v2476
        %v2478 = vand.u32 %v1594, 4294901760
        %v2479 = vsub.f32 %v1594, %v2478
        %v2480 = vand.u32 %v2479, 4294901760
        %v2481 = vsub.f32 %v2479, %v2480
        %v2482 = vand.u32 %v2481, 4294901760
        %2483 = vmatpush1.msra.mxu0 %v2482
        %v2484 = vand.u32 %v1599, 4294901760
        %v2485 = vsub.f32 %v1599, %v2484
        %v2486 = vand.u32 %v2485, 4294901760
        %v2487 = vsub.f32 %v2485, %v2486
        %v2488 = vand.u32 %v2487, 4294901760
        %2489 = vmatprep.subr.mxu0 %v2488
        %v2490 = vand.u32 %v1598, 4294901760
        %v2491 = vsub.f32 %v1598, %v2490
        %v2492 = vand.u32 %v2491, 4294901760
        %v2493 = vsub.f32 %v2491, %v2492
        %v2494 = vand.u32 %v2493, 4294901760
        %2495 = vmatpush1.msra.mxu0 %v2494
        %2496 = vmatprep.subr.mxu0 0.0
        %2497 = vmatpush1.msra.mxu0 0.0
        %2498 = vmatprep.subr.mxu0 0.0
        %2499 = vmatpush1.msra.mxu0 0.0
        %2500 = vmatprep.subr.mxu0 0.0
        %2501 = vmatpush1.msra.mxu0 0.0
        %2502 = vmatprep.subr.mxu0 0.0
        %2503 = vmatpush1.msra.mxu0 0.0
        %2504 = vmatprep.subr.mxu0 0.0
        %2505 = vmatpush1.msra.mxu0 0.0
        %2506 = vmatprep.subr.mxu0 0.0
        %2507 = vmatpush1.msra.mxu0 0.0
        %2508 = vmatprep.subr.mxu0 0.0
        %2509 = vmatpush1.msra.mxu0 0.0
        %2510 = vmatprep.subr.mxu0 0.0
        %2511 = vmatpush1.msra.mxu0 0.0
        %2512 = vmatprep.subr.mxu0 0.0
        %2513 = vmatpush1.msra.mxu0 0.0
        %2514 = vmatprep.subr.mxu0 0.0
        %2515 = vmatpush1.msra.mxu0 0.0
        %2516 = vmatprep.subr.mxu0 0.0
        %2517 = vmatpush1.msra.mxu0 0.0
        %2518 = vmatprep.subr.mxu0 0.0
        %2519 = vmatpush1.msra.mxu0 0.0
        %2520 = vmatprep.subr.mxu0 0.0
        %2521 = vmatpush1.msra.mxu0 0.0
        %2522 = vmatprep.subr.mxu0 0.0
        %2523 = vmatpush1.msra.mxu0 0.0
        %2524 = vmatprep.subr.mxu0 0.0
        %2525 = vmatpush1.msra.mxu0 0.0
        %2526 = vmatprep.subr.mxu0 0.0
        %2527 = vmatpush1.msra.mxu0 0.0
        %2528 = vmatprep.subr.mxu0 0.0
        %2529 = vmatpush1.msra.mxu0 0.0
        %2530 = vmatprep.subr.mxu0 0.0
        %2531 = vmatpush1.msra.mxu0 0.0
        %2532 = vmatprep.subr.mxu0 0.0
        %2533 = vmatpush1.msra.mxu0 0.0
        %2534 = vmatprep.subr.mxu0 0.0
        %2535 = vmatpush1.msra.mxu0 0.0
        %2536 = vmatprep.subr.mxu0 0.0
        %2537 = vmatpush1.msra.mxu0 0.0
        %2538 = vmatprep.subr.mxu0 0.0
        %2539 = vmatpush1.msra.mxu0 0.0
        %2540 = vmatprep.subr.mxu0 0.0
        %2541 = vmatpush1.msra.mxu0 0.0
        %2542 = vmatprep.subr.mxu0 0.0
        %2543 = vmatpush1.msra.mxu0 0.0
        %2544 = vmatprep.subr.mxu0 0.0
        %2545 = vmatpush1.msra.mxu0 0.0
        %2546 = vmatprep.subr.mxu0 0.0
        %2547 = vmatpush1.msra.mxu0 0.0
        %2548 = vmatprep.subr.mxu0 0.0
        %2549 = vmatpush1.msra.mxu0 0.0
        %2550 = vmatprep.subr.mxu0 0.0
        %2551 = vmatpush1.msra.mxu0 0.0
        %2552 = vmatprep.mubr.f32.mxu0 0.0
        %v2553 = vand.u32 %v1630, 4294901760
        %2554 = vmatmul.mubr.f32.gmra.mrb[0].mxu0 %v2553
        %v2555 = vpop.f32.mrb[0].mxu0
        %v2556 = vadd.f32 %v2411, %v2555
        %v2557 = vpop.f32.mrb[0].mxu0
        %v2558 = vadd.f32 %v2413, %v2557
        %2559 = vmatprep.mubr.f32.mxu0 0.0
        %v2560 = vand.u32 %v1633, 4294901760
        %2561 = vmatmul.mubr.f32.gmra.mrb[0].mxu0 %v2560
        %v2562 = vpop.f32.mrb[0].mxu0
        %v2563 = vadd.f32 %v2422, %v2562
        %v2564 = vpop.f32.mrb[0].mxu0
        %v2565 = vadd.f32 %v2424, %v2564
        %2566 = vmatprep.mubr.f32.mxu0 0.0
        %v2567 = vand.u32 %v1636, 4294901760
        %2568 = vmatmul.mubr.f32.gmra.mrb[0].mxu0 %v2567
        %v2569 = vpop.f32.mrb[0].mxu0
        %v2570 = vadd.f32 %v2433, %v2569
        %v2571 = vpop.f32.mrb[0].mxu0
        %v2572 = vadd.f32 %v2435, %v2571
        %2573 = vmatprep.mubr.f32.mxu0 0.0
        %v2574 = vand.u32 %v1639, 4294901760
        %2575 = vmatmul.mubr.f32.gmra.mrb[0].mxu0 %v2574
        %v2576 = vpop.f32.mrb[0].mxu0
        %v2577 = vadd.f32 %v2444, %v2576
        %v2578 = vpop.f32.mrb[0].mxu0
        %v2579 = vadd.f32 %v2446, %v2578
        %2580 = vdwg.mxu0
        %v2581 = vand.u32 %v1587, 4294901760
        %v2582 = vsub.f32 %v1587, %v2581
        %2583 = vmatprep.subr.mxu0 %v2582
        %v2584 = vand.u32 %v1586, 4294901760
        %v2585 = vsub.f32 %v1586, %v2584
        %2586 = vmatpush1.msra.mxu0 %v2585
        %v2587 = vand.u32 %v1591, 4294901760
        %v2588 = vsub.f32 %v1591, %v2587
        %2589 = vmatprep.subr.mxu0 %v2588
        %v2590 = vand.u32 %v1590, 4294901760
        %v2591 = vsub.f32 %v1590, %v2590
        %2592 = vmatpush1.msra.mxu0 %v2591
        %v2593 = vand.u32 %v1595, 4294901760
        %v2594 = vsub.f32 %v1595, %v2593
        %2595 = vmatprep.subr.mxu0 %v2594
        %v2596 = vand.u32 %v1594, 4294901760
        %v2597 = vsub.f32 %v1594, %v2596
        %2598 = vmatpush1.msra.mxu0 %v2597
        %v2599 = vand.u32 %v1599, 4294901760
        %v2600 = vsub.f32 %v1599, %v2599
        %2601 = vmatprep.subr.mxu0 %v2600
        %v2602 = vand.u32 %v1598, 4294901760
        %v2603 = vsub.f32 %v1598, %v2602
        %2604 = vmatpush1.msra.mxu0 %v2603
        %2605 = vmatprep.subr.mxu0 0.0
        %2606 = vmatpush1.msra.mxu0 0.0
        %2607 = vmatprep.subr.mxu0 0.0
        %2608 = vmatpush1.msra.mxu0 0.0
        %2609 = vmatprep.subr.mxu0 0.0
        %2610 = vmatpush1.msra.mxu0 0.0
        %2611 = vmatprep.subr.mxu0 0.0
        %2612 = vmatpush1.msra.mxu0 0.0
        %2613 = vmatprep.subr.mxu0 0.0
        %2614 = vmatpush1.msra.mxu0 0.0
        %2615 = vmatprep.subr.mxu0 0.0
        %2616 = vmatpush1.msra.mxu0 0.0
        %2617 = vmatprep.subr.mxu0 0.0
        %2618 = vmatpush1.msra.mxu0 0.0
        %2619 = vmatprep.subr.mxu0 0.0
        %2620 = vmatpush1.msra.mxu0 0.0
        %2621 = vmatprep.subr.mxu0 0.0
        %2622 = vmatpush1.msra.mxu0 0.0
        %2623 = vmatprep.subr.mxu0 0.0
        %2624 = vmatpush1.msra.mxu0 0.0
        %2625 = vmatprep.subr.mxu0 0.0
        %2626 = vmatpush1.msra.mxu0 0.0
        %2627 = vmatprep.subr.mxu0 0.0
        %2628 = vmatpush1.msra.mxu0 0.0
        %2629 = vmatprep.subr.mxu0 0.0
        %2630 = vmatpush1.msra.mxu0 0.0
        %2631 = vmatprep.subr.mxu0 0.0
        %2632 = vmatpush1.msra.mxu0 0.0
        %2633 = vmatprep.subr.mxu0 0.0
        %2634 = vmatpush1.msra.mxu0 0.0
        %2635 = vmatprep.subr.mxu0 0.0
        %2636 = vmatpush1.msra.mxu0 0.0
        %2637 = vmatprep.subr.mxu0 0.0
        %2638 = vmatpush1.msra.mxu0 0.0
        %2639 = vmatprep.subr.mxu0 0.0
        %2640 = vmatpush1.msra.mxu0 0.0
        %2641 = vmatprep.subr.mxu0 0.0
        %2642 = vmatpush1.msra.mxu0 0.0
        %2643 = vmatprep.subr.mxu0 0.0
        %2644 = vmatpush1.msra.mxu0 0.0
        %2645 = vmatprep.subr.mxu0 0.0
        %2646 = vmatpush1.msra.mxu0 0.0
        %2647 = vmatprep.subr.mxu0 0.0
        %2648 = vmatpush1.msra.mxu0 0.0
        %2649 = vmatprep.subr.mxu0 0.0
        %2650 = vmatpush1.msra.mxu0 0.0
        %2651 = vmatprep.subr.mxu0 0.0
        %2652 = vmatpush1.msra.mxu0 0.0
        %2653 = vmatprep.subr.mxu0 0.0
        %2654 = vmatpush1.msra.mxu0 0.0
        %2655 = vmatprep.subr.mxu0 0.0
        %2656 = vmatpush1.msra.mxu0 0.0
        %2657 = vmatprep.subr.mxu0 0.0
        %2658 = vmatpush1.msra.mxu0 0.0
        %2659 = vmatprep.subr.mxu0 0.0
        %2660 = vmatpush1.msra.mxu0 0.0
        %2661 = vmatprep.mubr.f32.mxu0 0.0
        %v2662 = vand.u32 %v1630, 4294901760
        %v2663 = vsub.f32 %v1630, %v2662
        %2664 = vmatmul.mubr.f32.gmra.mrb[0].mxu0 %v2663
        %v2665 = vpop.f32.mrb[0].mxu0
        %v2666 = vadd.f32 %v2556, %v2665
        %v2667 = vpop.f32.mrb[0].mxu0
        %v2668 = vadd.f32 %v2558, %v2667
        %2669 = vmatprep.mubr.f32.mxu0 0.0
        %v2670 = vand.u32 %v1633, 4294901760
        %v2671 = vsub.f32 %v1633, %v2670
        %2672 = vmatmul.mubr.f32.gmra.mrb[0].mxu0 %v2671
        %v2673 = vpop.f32.mrb[0].mxu0
        %v2674 = vadd.f32 %v2563, %v2673
        %v2675 = vpop.f32.mrb[0].mxu0
        %v2676 = vadd.f32 %v2565, %v2675
        %2677 = vmatprep.mubr.f32.mxu0 0.0
        %v2678 = vand.u32 %v1636, 4294901760
        %v2679 = vsub.f32 %v1636, %v2678
        %2680 = vmatmul.mubr.f32.gmra.mrb[0].mxu0 %v2679
        %v2681 = vpop.f32.mrb[0].mxu0
        %v2682 = vadd.f32 %v2570, %v2681
        %v2683 = vpop.f32.mrb[0].mxu0
        %v2684 = vadd.f32 %v2572, %v2683
        %2685 = vmatprep.mubr.f32.mxu0 0.0
        %v2686 = vand.u32 %v1639, 4294901760
        %v2687 = vsub.f32 %v1639, %v2686
        %2688 = vmatmul.mubr.f32.gmra.mrb[0].mxu0 %v2687
        %v2689 = vpop.f32.mrb[0].mxu0
        %v2690 = vadd.f32 %v2577, %v2689
        %v2691 = vpop.f32.mrb[0].mxu0
        %v2692 = vadd.f32 %v2579, %v2691
        %2693 = vdwg.mxu0
        %v2694 = vand.u32 %v1587, 4294901760
        %2695 = vmatprep.subr.mxu0 %v2694
        %v2696 = vand.u32 %v1586, 4294901760
        %2697 = vmatpush1.msra.mxu0 %v2696
        %v2698 = vand.u32 %v1591, 4294901760
        %2699 = vmatprep.subr.mxu0 %v2698
        %v2700 = vand.u32 %v1590, 4294901760
        %2701 = vmatpush1.msra.mxu0 %v2700
        %v2702 = vand.u32 %v1595, 4294901760
        %2703 = vmatprep.subr.mxu0 %v2702
        %v2704 = vand.u32 %v1594, 4294901760
        %2705 = vmatpush1.msra.mxu0 %v2704
        %v2706 = vand.u32 %v1599, 4294901760
        %2707 = vmatprep.subr.mxu0 %v2706
        %v2708 = vand.u32 %v1598, 4294901760
        %2709 = vmatpush1.msra.mxu0 %v2708
        %2710 = vmatprep.subr.mxu0 0.0
        %2711 = vmatpush1.msra.mxu0 0.0
        %2712 = vmatprep.subr.mxu0 0.0
        %2713 = vmatpush1.msra.mxu0 0.0
        %2714 = vmatprep.subr.mxu0 0.0
        %2715 = vmatpush1.msra.mxu0 0.0
        %2716 = vmatprep.subr.mxu0 0.0
        %2717 = vmatpush1.msra.mxu0 0.0
        %2718 = vmatprep.subr.mxu0 0.0
        %2719 = vmatpush1.msra.mxu0 0.0
        %2720 = vmatprep.subr.mxu0 0.0
        %2721 = vmatpush1.msra.mxu0 0.0
        %2722 = vmatprep.subr.mxu0 0.0
        %2723 = vmatpush1.msra.mxu0 0.0
        %2724 = vmatprep.subr.mxu0 0.0
        %2725 = vmatpush1.msra.mxu0 0.0
        %2726 = vmatprep.subr.mxu0 0.0
        %2727 = vmatpush1.msra.mxu0 0.0
        %2728 = vmatprep.subr.mxu0 0.0
        %2729 = vmatpush1.msra.mxu0 0.0
        %2730 = vmatprep.subr.mxu0 0.0
        %2731 = vmatpush1.msra.mxu0 0.0
        %2732 = vmatprep.subr.mxu0 0.0
        %2733 = vmatpush1.msra.mxu0 0.0
        %2734 = vmatprep.subr.mxu0 0.0
        %2735 = vmatpush1.msra.mxu0 0.0
        %2736 = vmatprep.subr.mxu0 0.0
        %2737 = vmatpush1.msra.mxu0 0.0
        %2738 = vmatprep.subr.mxu0 0.0
        %2739 = vmatpush1.msra.mxu0 0.0
        %2740 = vmatprep.subr.mxu0 0.0
        %2741 = vmatpush1.msra.mxu0 0.0
        %2742 = vmatprep.subr.mxu0 0.0
        %2743 = vmatpush1.msra.mxu0 0.0
        %2744 = vmatprep.subr.mxu0 0.0
        %2745 = vmatpush1.msra.mxu0 0.0
        %2746 = vmatprep.subr.mxu0 0.0
        %2747 = vmatpush1.msra.mxu0 0.0
        %2748 = vmatprep.subr.mxu0 0.0
        %2749 = vmatpush1.msra.mxu0 0.0
        %2750 = vmatprep.subr.mxu0 0.0
        %2751 = vmatpush1.msra.mxu0 0.0
        %2752 = vmatprep.subr.mxu0 0.0
        %2753 = vmatpush1.msra.mxu0 0.0
        %2754 = vmatprep.subr.mxu0 0.0
        %2755 = vmatpush1.msra.mxu0 0.0
        %2756 = vmatprep.subr.mxu0 0.0
        %2757 = vmatpush1.msra.mxu0 0.0
        %2758 = vmatprep.subr.mxu0 0.0
        %2759 = vmatpush1.msra.mxu0 0.0
        %2760 = vmatprep.subr.mxu0 0.0
        %2761 = vmatpush1.msra.mxu0 0.0
        %2762 = vmatprep.subr.mxu0 0.0
        %2763 = vmatpush1.msra.mxu0 0.0
        %2764 = vmatprep.subr.mxu0 0.0
        %2765 = vmatpush1.msra.mxu0 0.0
        %2766 = vmatprep.mubr.f32.mxu0 0.0
        %v2767 = vand.u32 %v1630, 4294901760
        %v2768 = vsub.f32 %v1630, %v2767
        %v2769 = vand.u32 %v2768, 4294901760
        %2770 = vmatmul.mubr.f32.gmra.mrb[0].mxu0 %v2769
        %v2771 = vpop.f32.mrb[0].mxu0
        %v2772 = vadd.f32 %v2666, %v2771
        %v2773 = vpop.f32.mrb[0].mxu0
        %v2774 = vadd.f32 %v2668, %v2773
        %2775 = vmatprep.mubr.f32.mxu0 0.0
        %v2776 = vand.u32 %v1633, 4294901760
        %v2777 = vsub.f32 %v1633, %v2776
        %v2778 = vand.u32 %v2777, 4294901760
        %2779 = vmatmul.mubr.f32.gmra.mrb[0].mxu0 %v2778
        %v2780 = vpop.f32.mrb[0].mxu0
        %v2781 = vadd.f32 %v2674, %v2780
        %v2782 = vpop.f32.mrb[0].mxu0
        %v2783 = vadd.f32 %v2676, %v2782
        %2784 = vmatprep.mubr.f32.mxu0 0.0
        %v2785 = vand.u32 %v1636, 4294901760
        %v2786 = vsub.f32 %v1636, %v2785
        %v2787 = vand.u32 %v2786, 4294901760
        %2788 = vmatmul.mubr.f32.gmra.mrb[0].mxu0 %v2787
        %v2789 = vpop.f32.mrb[0].mxu0
        %v2790 = vadd.f32 %v2682, %v2789
        %v2791 = vpop.f32.mrb[0].mxu0
        %v2792 = vadd.f32 %v2684, %v2791
        %2793 = vmatprep.mubr.f32.mxu0 0.0
        %v2794 = vand.u32 %v1639, 4294901760
        %v2795 = vsub.f32 %v1639, %v2794
        %v2796 = vand.u32 %v2795, 4294901760
        %2797 = vmatmul.mubr.f32.gmra.mrb[0].mxu0 %v2796
        %v2798 = vpop.f32.mrb[0].mxu0
        %v2799 = vadd.f32 %v2690, %v2798
        %v2800 = vpop.f32.mrb[0].mxu0
        %v2801 = vadd.f32 %v2692, %v2800
        %2802 = vdwg.mxu0
        %v2803 = vand.u32 %v1587, 4294901760
        %v2804 = vsub.f32 %v1587, %v2803
        %v2805 = vand.u32 %v2804, 4294901760
        %2806 = vmatprep.subr.mxu0 %v2805
        %v2807 = vand.u32 %v1586, 4294901760
        %v2808 = vsub.f32 %v1586, %v2807
        %v2809 = vand.u32 %v2808, 4294901760
        %2810 = vmatpush1.msra.mxu0 %v2809
        %v2811 = vand.u32 %v1591, 4294901760
        %v2812 = vsub.f32 %v1591, %v2811
        %v2813 = vand.u32 %v2812, 4294901760
        %2814 = vmatprep.subr.mxu0 %v2813
        %v2815 = vand.u32 %v1590, 4294901760
        %v2816 = vsub.f32 %v1590, %v2815
        %v2817 = vand.u32 %v2816, 4294901760
        %2818 = vmatpush1.msra.mxu0 %v2817
        %v2819 = vand.u32 %v1595, 4294901760
        %v2820 = vsub.f32 %v1595, %v2819
        %v2821 = vand.u32 %v2820, 4294901760
        %2822 = vmatprep.subr.mxu0 %v2821
        %v2823 = vand.u32 %v1594, 4294901760
        %v2824 = vsub.f32 %v1594, %v2823
        %v2825 = vand.u32 %v2824, 4294901760
        %2826 = vmatpush1.msra.mxu0 %v2825
        %v2827 = vand.u32 %v1599, 4294901760
        %v2828 = vsub.f32 %v1599, %v2827
        %v2829 = vand.u32 %v2828, 4294901760
        %2830 = vmatprep.subr.mxu0 %v2829
        %v2831 = vand.u32 %v1598, 4294901760
        %v2832 = vsub.f32 %v1598, %v2831
        %v2833 = vand.u32 %v2832, 4294901760
        %2834 = vmatpush1.msra.mxu0 %v2833
        %2835 = vmatprep.subr.mxu0 0.0
        %2836 = vmatpush1.msra.mxu0 0.0
        %2837 = vmatprep.subr.mxu0 0.0
        %2838 = vmatpush1.msra.mxu0 0.0
        %2839 = vmatprep.subr.mxu0 0.0
        %2840 = vmatpush1.msra.mxu0 0.0
        %2841 = vmatprep.subr.mxu0 0.0
        %2842 = vmatpush1.msra.mxu0 0.0
        %2843 = vmatprep.subr.mxu0 0.0
        %2844 = vmatpush1.msra.mxu0 0.0
        %2845 = vmatprep.subr.mxu0 0.0
        %2846 = vmatpush1.msra.mxu0 0.0
        %2847 = vmatprep.subr.mxu0 0.0
        %2848 = vmatpush1.msra.mxu0 0.0
        %2849 = vmatprep.subr.mxu0 0.0
        %2850 = vmatpush1.msra.mxu0 0.0
        %2851 = vmatprep.subr.mxu0 0.0
        %2852 = vmatpush1.msra.mxu0 0.0
        %2853 = vmatprep.subr.mxu0 0.0
        %2854 = vmatpush1.msra.mxu0 0.0
        %2855 = vmatprep.subr.mxu0 0.0
        %2856 = vmatpush1.msra.mxu0 0.0
        %2857 = vmatprep.subr.mxu0 0.0
        %2858 = vmatpush1.msra.mxu0 0.0
        %2859 = vmatprep.subr.mxu0 0.0
        %2860 = vmatpush1.msra.mxu0 0.0
        %2861 = vmatprep.subr.mxu0 0.0
        %2862 = vmatpush1.msra.mxu0 0.0
        %2863 = vmatprep.subr.mxu0 0.0
        %2864 = vmatpush1.msra.mxu0 0.0
        %2865 = vmatprep.subr.mxu0 0.0
        %2866 = vmatpush1.msra.mxu0 0.0
        %2867 = vmatprep.subr.mxu0 0.0
        %2868 = vmatpush1.msra.mxu0 0.0
        %2869 = vmatprep.subr.mxu0 0.0
        %2870 = vmatpush1.msra.mxu0 0.0
        %2871 = vmatprep.subr.mxu0 0.0
        %2872 = vmatpush1.msra.mxu0 0.0
        %2873 = vmatprep.subr.mxu0 0.0
        %2874 = vmatpush1.msra.mxu0 0.0
        %2875 = vmatprep.subr.mxu0 0.0
        %2876 = vmatpush1.msra.mxu0 0.0
        %2877 = vmatprep.subr.mxu0 0.0
        %2878 = vmatpush1.msra.mxu0 0.0
        %2879 = vmatprep.subr.mxu0 0.0
        %2880 = vmatpush1.msra.mxu0 0.0
        %2881 = vmatprep.subr.mxu0 0.0
        %2882 = vmatpush1.msra.mxu0 0.0
        %2883 = vmatprep.subr.mxu0 0.0
        %2884 = vmatpush1.msra.mxu0 0.0
        %2885 = vmatprep.subr.mxu0 0.0
        %2886 = vmatpush1.msra.mxu0 0.0
        %2887 = vmatprep.subr.mxu0 0.0
        %2888 = vmatpush1.msra.mxu0 0.0
        %2889 = vmatprep.subr.mxu0 0.0
        %2890 = vmatpush1.msra.mxu0 0.0
        %2891 = vmatprep.mubr.f32.mxu0 0.0
        %v2892 = vand.u32 %v1630, 4294901760
        %2893 = vmatmul.mubr.f32.gmra.mrb[0].mxu0 %v2892
        %v2894 = vpop.f32.mrb[0].mxu0
        %v2895 = vadd.f32 %v2772, %v2894
        %v2896 = vpop.f32.mrb[0].mxu0
        %v2897 = vadd.f32 %v2774, %v2896
        %2898 = vmatprep.mubr.f32.mxu0 0.0
        %v2899 = vand.u32 %v1633, 4294901760
        %2900 = vmatmul.mubr.f32.gmra.mrb[0].mxu0 %v2899
        %v2901 = vpop.f32.mrb[0].mxu0
        %v2902 = vadd.f32 %v2781, %v2901
        %v2903 = vpop.f32.mrb[0].mxu0
        %v2904 = vadd.f32 %v2783, %v2903
        %2905 = vmatprep.mubr.f32.mxu0 0.0
        %v2906 = vand.u32 %v1636, 4294901760
        %2907 = vmatmul.mubr.f32.gmra.mrb[0].mxu0 %v2906
        %v2908 = vpop.f32.mrb[0].mxu0
        %v2909 = vadd.f32 %v2790, %v2908
        %v2910 = vpop.f32.mrb[0].mxu0
        %v2911 = vadd.f32 %v2792, %v2910
        %2912 = vmatprep.mubr.f32.mxu0 0.0
        %v2913 = vand.u32 %v1639, 4294901760
        %2914 = vmatmul.mubr.f32.gmra.mrb[0].mxu0 %v2913
        %v2915 = vpop.f32.mrb[0].mxu0
        %v2916 = vadd.f32 %v2799, %v2915
        %v2917 = vpop.f32.mrb[0].mxu0
        %v2918 = vadd.f32 %v2801, %v2917
        %2919 = vdwg.mxu0
        %v2920 = vand.u32 %v1587, 4294901760
        %2921 = vmatprep.subr.mxu0 %v2920
        %v2922 = vand.u32 %v1586, 4294901760
        %2923 = vmatpush1.msra.mxu0 %v2922
        %v2924 = vand.u32 %v1591, 4294901760
        %2925 = vmatprep.subr.mxu0 %v2924
        %v2926 = vand.u32 %v1590, 4294901760
        %2927 = vmatpush1.msra.mxu0 %v2926
        %v2928 = vand.u32 %v1595, 4294901760
        %2929 = vmatprep.subr.mxu0 %v2928
        %v2930 = vand.u32 %v1594, 4294901760
        %2931 = vmatpush1.msra.mxu0 %v2930
        %v2932 = vand.u32 %v1599, 4294901760
        %2933 = vmatprep.subr.mxu0 %v2932
        %v2934 = vand.u32 %v1598, 4294901760
        %2935 = vmatpush1.msra.mxu0 %v2934
        %2936 = vmatprep.subr.mxu0 0.0
        %2937 = vmatpush1.msra.mxu0 0.0
        %2938 = vmatprep.subr.mxu0 0.0
        %2939 = vmatpush1.msra.mxu0 0.0
        %2940 = vmatprep.subr.mxu0 0.0
        %2941 = vmatpush1.msra.mxu0 0.0
        %2942 = vmatprep.subr.mxu0 0.0
        %2943 = vmatpush1.msra.mxu0 0.0
        %2944 = vmatprep.subr.mxu0 0.0
        %2945 = vmatpush1.msra.mxu0 0.0
        %2946 = vmatprep.subr.mxu0 0.0
        %2947 = vmatpush1.msra.mxu0 0.0
        %2948 = vmatprep.subr.mxu0 0.0
        %2949 = vmatpush1.msra.mxu0 0.0
        %2950 = vmatprep.subr.mxu0 0.0
        %2951 = vmatpush1.msra.mxu0 0.0
        %2952 = vmatprep.subr.mxu0 0.0
        %2953 = vmatpush1.msra.mxu0 0.0
        %2954 = vmatprep.subr.mxu0 0.0
        %2955 = vmatpush1.msra.mxu0 0.0
        %2956 = vmatprep.subr.mxu0 0.0
        %2957 = vmatpush1.msra.mxu0 0.0
        %2958 = vmatprep.subr.mxu0 0.0
        %2959 = vmatpush1.msra.mxu0 0.0
        %2960 = vmatprep.subr.mxu0 0.0
        %2961 = vmatpush1.msra.mxu0 0.0
        %2962 = vmatprep.subr.mxu0 0.0
        %2963 = vmatpush1.msra.mxu0 0.0
        %2964 = vmatprep.subr.mxu0 0.0
        %2965 = vmatpush1.msra.mxu0 0.0
        %2966 = vmatprep.subr.mxu0 0.0
        %2967 = vmatpush1.msra.mxu0 0.0
        %2968 = vmatprep.subr.mxu0 0.0
        %2969 = vmatpush1.msra.mxu0 0.0
        %2970 = vmatprep.subr.mxu0 0.0
        %2971 = vmatpush1.msra.mxu0 0.0
        %2972 = vmatprep.subr.mxu0 0.0
        %2973 = vmatpush1.msra.mxu0 0.0
        %2974 = vmatprep.subr.mxu0 0.0
        %2975 = vmatpush1.msra.mxu0 0.0
        %2976 = vmatprep.subr.mxu0 0.0
        %2977 = vmatpush1.msra.mxu0 0.0
        %2978 = vmatprep.subr.mxu0 0.0
        %2979 = vmatpush1.msra.mxu0 0.0
        %2980 = vmatprep.subr.mxu0 0.0
        %2981 = vmatpush1.msra.mxu0 0.0
        %2982 = vmatprep.subr.mxu0 0.0
        %2983 = vmatpush1.msra.mxu0 0.0
        %2984 = vmatprep.subr.mxu0 0.0
        %2985 = vmatpush1.msra.mxu0 0.0
        %2986 = vmatprep.subr.mxu0 0.0
        %2987 = vmatpush1.msra.mxu0 0.0
        %2988 = vmatprep.subr.mxu0 0.0
        %2989 = vmatpush1.msra.mxu0 0.0
        %2990 = vmatprep.subr.mxu0 0.0
        %2991 = vmatpush1.msra.mxu0 0.0
        %2992 = vmatprep.mubr.f32.mxu0 0.0
        %v2993 = vand.u32 %v1630, 4294901760
        %2994 = vmatmul.mubr.f32.gmra.mrb[0].mxu0 %v2993
        %v2995 = vpop.f32.mrb[0].mxu0
        %v2996 = vadd.f32 %v2895, %v2995
        %v2997 = vpop.f32.mrb[0].mxu0
        %v2998 = vadd.f32 %v2897, %v2997
        %2999 = vmatprep.mubr.f32.mxu0 0.0
        %v3000 = vand.u32 %v1633, 4294901760
        %3001 = vmatmul.mubr.f32.gmra.mrb[0].mxu0 %v3000
        %v3002 = vpop.f32.mrb[0].mxu0
        %v3003 = vadd.f32 %v2902, %v3002
        %v3004 = vpop.f32.mrb[0].mxu0
        %v3005 = vadd.f32 %v2904, %v3004
        %3006 = vmatprep.mubr.f32.mxu0 0.0
        %v3007 = vand.u32 %v1636, 4294901760
        %3008 = vmatmul.mubr.f32.gmra.mrb[0].mxu0 %v3007
        %v3009 = vpop.f32.mrb[0].mxu0
        %v3010 = vadd.f32 %v2909, %v3009
        %v3011 = vpop.f32.mrb[0].mxu0
        %v3012 = vadd.f32 %v2911, %v3011
        %3013 = vmatprep.mubr.f32.mxu0 0.0
        %v3014 = vand.u32 %v1639, 4294901760
        %3015 = vmatmul.mubr.f32.gmra.mrb[0].mxu0 %v3014
        %v3016 = vpop.f32.mrb[0].mxu0
        %v3017 = vadd.f32 %v2916, %v3016
        %v3018 = vpop.f32.mrb[0].mxu0
        %v3019 = vadd.f32 %v2918, %v3018
        %3020 = vdwg.mxu0
        %v3021 = vmax.f32 %v2306, 0.0
        %v3022 = vmax.f32 %v2308, 0.0
        %v3023 = vmax.f32 %v2996, 0.0
        %v3024 = vmax.f32 %v2998, 0.0
        %v3025 = vmax.f32 %v2313, 0.0
        %v3026 = vmax.f32 %v2315, 0.0
        %v3027 = vmax.f32 %v3003, 0.0
        %v3028 = vmax.f32 %v3005, 0.0
        %v3029 = vmax.f32 %v2320, 0.0
        %v3030 = vmax.f32 %v2322, 0.0
        %v3031 = vmax.f32 %v3010, 0.0
        %v3032 = vmax.f32 %v3012, 0.0
        %v3033 = vmax.f32 %v2327, 0.0
        %v3034 = vmax.f32 %v2329, 0.0
        %v3035 = vmax.f32 %v3017, 0.0
        %v3036 = vmax.f32 %v3019, 0.0
        %v3037 = vld [vmem:[%s5] sm:$0xff]
        %v3038 = vld [vmem:[%s6] sm:$0xff]
        %3040 = vset.pattern.permute.xlu0 0
        %3041 = vperm.xlu0 %3040, %v3038
        %v3042 = vpop.permute.xlu0 %3041
        %v3045 = vsel %vm1628, %v3037, 0
        %v3047 = vand.u32 %v3022, 4294901760
        %3048 = vmatprep.subr.mxu0 %v3047
        %v3049 = vand.u32 %v3021, 4294901760
        %3050 = vmatpush1.msra.mxu0 %v3049
        %v3051 = vand.u32 %v3026, 4294901760
        %3052 = vmatprep.subr.mxu0 %v3051
        %v3053 = vand.u32 %v3025, 4294901760
        %3054 = vmatpush1.msra.mxu0 %v3053
        %v3055 = vand.u32 %v3030, 4294901760
        %3056 = vmatprep.subr.mxu0 %v3055
        %v3057 = vand.u32 %v3029, 4294901760
        %3058 = vmatpush1.msra.mxu0 %v3057
        %v3059 = vand.u32 %v3034, 4294901760
        %3060 = vmatprep.subr.mxu0 %v3059
        %v3061 = vand.u32 %v3033, 4294901760
        %3062 = vmatpush1.msra.mxu0 %v3061
        %3063 = vmatprep.subr.mxu0 0.0
        %3064 = vmatpush1.msra.mxu0 0.0
        %3065 = vmatprep.subr.mxu0 0.0
        %3066 = vmatpush1.msra.mxu0 0.0
        %3067 = vmatprep.subr.mxu0 0.0
        %3068 = vmatpush1.msra.mxu0 0.0
        %3069 = vmatprep.subr.mxu0 0.0
        %3070 = vmatpush1.msra.mxu0 0.0
        %3071 = vmatprep.subr.mxu0 0.0
        %3072 = vmatpush1.msra.mxu0 0.0
        %3073 = vmatprep.subr.mxu0 0.0
        %3074 = vmatpush1.msra.mxu0 0.0
        %3075 = vmatprep.subr.mxu0 0.0
        %3076 = vmatpush1.msra.mxu0 0.0
        %3077 = vmatprep.subr.mxu0 0.0
        %3078 = vmatpush1.msra.mxu0 0.0
        %3079 = vmatprep.subr.mxu0 0.0
        %3080 = vmatpush1.msra.mxu0 0.0
        %3081 = vmatprep.subr.mxu0 0.0
        %3082 = vmatpush1.msra.mxu0 0.0
        %3083 = vmatprep.subr.mxu0 0.0
        %3084 = vmatpush1.msra.mxu0 0.0
        %3085 = vmatprep.subr.mxu0 0.0
        %3086 = vmatpush1.msra.mxu0 0.0
        %3087 = vmatprep.subr.mxu0 0.0
        %3088 = vmatpush1.msra.mxu0 0.0
        %3089 = vmatprep.subr.mxu0 0.0
        %3090 = vmatpush1.msra.mxu0 0.0
        %3091 = vmatprep.subr.mxu0 0.0
        %3092 = vmatpush1.msra.mxu0 0.0
        %3093 = vmatprep.subr.mxu0 0.0
        %3094 = vmatpush1.msra.mxu0 0.0
        %3095 = vmatprep.subr.mxu0 0.0
        %3096 = vmatpush1.msra.mxu0 0.0
        %3097 = vmatprep.subr.mxu0 0.0
        %3098 = vmatpush1.msra.mxu0 0.0
        %3099 = vmatprep.subr.mxu0 0.0
        %3100 = vmatpush1.msra.mxu0 0.0
        %3101 = vmatprep.subr.mxu0 0.0
        %3102 = vmatpush1.msra.mxu0 0.0
        %3103 = vmatprep.subr.mxu0 0.0
        %3104 = vmatpush1.msra.mxu0 0.0
        %3105 = vmatprep.subr.mxu0 0.0
        %3106 = vmatpush1.msra.mxu0 0.0
        %3107 = vmatprep.subr.mxu0 0.0
        %3108 = vmatpush1.msra.mxu0 0.0
        %3109 = vmatprep.subr.mxu0 0.0
        %3110 = vmatpush1.msra.mxu0 0.0
        %3111 = vmatprep.subr.mxu0 0.0
        %3112 = vmatpush1.msra.mxu0 0.0
        %3113 = vmatprep.subr.mxu0 0.0
        %3114 = vmatpush1.msra.mxu0 0.0
        %3115 = vmatprep.subr.mxu0 0.0
        %3116 = vmatpush1.msra.mxu0 0.0
        %3117 = vmatprep.subr.mxu0 0.0
        %3118 = vmatpush1.msra.mxu0 0.0
        %3119 = vmatprep.mubr.f32.mxu0 0.0
        %v3120 = vand.u32 %v3045, 4294901760
        %v3121 = vsub.f32 %v3045, %v3120
        %v3122 = vand.u32 %v3121, 4294901760
        %v3123 = vsub.f32 %v3121, %v3122
        %v3124 = vand.u32 %v3123, 4294901760
        %3125 = vmatmul.mubr.f32.gmra.mrb[0].mxu0 %v3124
        %v3126 = vpop.f32.mrb[0].mxu0
        %v3127 = vadd.f32 %v3042, %v3126
        %v3128 = vpop.f32.mrb[0].mxu0
        %v3129 = vadd.f32 %v3042, %v3128
        %3130 = vdwg.mxu0
        %v3131 = vand.u32 %v3022, 4294901760
        %v3132 = vsub.f32 %v3022, %v3131
        %v3133 = vand.u32 %v3132, 4294901760
        %v3134 = vsub.f32 %v3132, %v3133
        %v3135 = vand.u32 %v3134, 4294901760
        %3136 = vmatprep.subr.mxu0 %v3135
        %v3137 = vand.u32 %v3021, 4294901760
        %v3138 = vsub.f32 %v3021, %v3137
        %v3139 = vand.u32 %v3138, 4294901760
        %v3140 = vsub.f32 %v3138, %v3139
        %v3141 = vand.u32 %v3140, 4294901760
        %3142 = vmatpush1.msra.mxu0 %v3141
        %v3143 = vand.u32 %v3026, 4294901760
        %v3144 = vsub.f32 %v3026, %v3143
        %v3145 = vand.u32 %v3144, 4294901760
        %v3146 = vsub.f32 %v3144, %v3145
        %v3147 = vand.u32 %v3146, 4294901760
        %3148 = vmatprep.subr.mxu0 %v3147
        %v3149 = vand.u32 %v3025, 4294901760
        %v3150 = vsub.f32 %v3025, %v3149
        %v3151 = vand.u32 %v3150, 4294901760
        %v3152 = vsub.f32 %v3150, %v3151
        %v3153 = vand.u32 %v3152, 4294901760
        %3154 = vmatpush1.msra.mxu0 %v3153
        %v3155 = vand.u32 %v3030, 4294901760
        %v3156 = vsub.f32 %v3030, %v3155
        %v3157 = vand.u32 %v3156, 4294901760
        %v3158 = vsub.f32 %v3156, %v3157
        %v3159 = vand.u32 %v3158, 4294901760
        %3160 = vmatprep.subr.mxu0 %v3159
        %v3161 = vand.u32 %v3029, 4294901760
        %v3162 = vsub.f32 %v3029, %v3161
        %v3163 = vand.u32 %v3162, 4294901760
        %v3164 = vsub.f32 %v3162, %v3163
        %v3165 = vand.u32 %v3164, 4294901760
        %3166 = vmatpush1.msra.mxu0 %v3165
        %v3167 = vand.u32 %v3034, 4294901760
        %v3168 = vsub.f32 %v3034, %v3167
        %v3169 = vand.u32 %v3168, 4294901760
        %v3170 = vsub.f32 %v3168, %v3169
        %v3171 = vand.u32 %v3170, 4294901760
        %3172 = vmatprep.subr.mxu0 %v3171
        %v3173 = vand.u32 %v3033, 4294901760
        %v3174 = vsub.f32 %v3033, %v3173
        %v3175 = vand.u32 %v3174, 4294901760
        %v3176 = vsub.f32 %v3174, %v3175
        %v3177 = vand.u32 %v3176, 4294901760
        %3178 = vmatpush1.msra.mxu0 %v3177
        %3179 = vmatprep.subr.mxu0 0.0
        %3180 = vmatpush1.msra.mxu0 0.0
        %3181 = vmatprep.subr.mxu0 0.0
        %3182 = vmatpush1.msra.mxu0 0.0
        %3183 = vmatprep.subr.mxu0 0.0
        %3184 = vmatpush1.msra.mxu0 0.0
        %3185 = vmatprep.subr.mxu0 0.0
        %3186 = vmatpush1.msra.mxu0 0.0
        %3187 = vmatprep.subr.mxu0 0.0
        %3188 = vmatpush1.msra.mxu0 0.0
        %3189 = vmatprep.subr.mxu0 0.0
        %3190 = vmatpush1.msra.mxu0 0.0
        %3191 = vmatprep.subr.mxu0 0.0
        %3192 = vmatpush1.msra.mxu0 0.0
        %3193 = vmatprep.subr.mxu0 0.0
        %3194 = vmatpush1.msra.mxu0 0.0
        %3195 = vmatprep.subr.mxu0 0.0
        %3196 = vmatpush1.msra.mxu0 0.0
        %3197 = vmatprep.subr.mxu0 0.0
        %3198 = vmatpush1.msra.mxu0 0.0
        %3199 = vmatprep.subr.mxu0 0.0
        %3200 = vmatpush1.msra.mxu0 0.0
        %3201 = vmatprep.subr.mxu0 0.0
        %3202 = vmatpush1.msra.mxu0 0.0
        %3203 = vmatprep.subr.mxu0 0.0
        %3204 = vmatpush1.msra.mxu0 0.0
        %3205 = vmatprep.subr.mxu0 0.0
        %3206 = vmatpush1.msra.mxu0 0.0
        %3207 = vmatprep.subr.mxu0 0.0
        %3208 = vmatpush1.msra.mxu0 0.0
        %3209 = vmatprep.subr.mxu0 0.0
        %3210 = vmatpush1.msra.mxu0 0.0
        %3211 = vmatprep.subr.mxu0 0.0
        %3212 = vmatpush1.msra.mxu0 0.0
        %3213 = vmatprep.subr.mxu0 0.0
        %3214 = vmatpush1.msra.mxu0 0.0
        %3215 = vmatprep.subr.mxu0 0.0
        %3216 = vmatpush1.msra.mxu0 0.0
        %3217 = vmatprep.subr.mxu0 0.0
        %3218 = vmatpush1.msra.mxu0 0.0
        %3219 = vmatprep.subr.mxu0 0.0
        %3220 = vmatpush1.msra.mxu0 0.0
        %3221 = vmatprep.subr.mxu0 0.0
        %3222 = vmatpush1.msra.mxu0 0.0
        %3223 = vmatprep.subr.mxu0 0.0
        %3224 = vmatpush1.msra.mxu0 0.0
        %3225 = vmatprep.subr.mxu0 0.0
        %3226 = vmatpush1.msra.mxu0 0.0
        %3227 = vmatprep.subr.mxu0 0.0
        %3228 = vmatpush1.msra.mxu0 0.0
        %3229 = vmatprep.subr.mxu0 0.0
        %3230 = vmatpush1.msra.mxu0 0.0
        %3231 = vmatprep.subr.mxu0 0.0
        %3232 = vmatpush1.msra.mxu0 0.0
        %3233 = vmatprep.subr.mxu0 0.0
        %3234 = vmatpush1.msra.mxu0 0.0
        %3235 = vmatprep.mubr.f32.mxu0 0.0
        %v3236 = vand.u32 %v3045, 4294901760
        %3237 = vmatmul.mubr.f32.gmra.mrb[0].mxu0 %v3236
        %v3238 = vpop.f32.mrb[0].mxu0
        %v3239 = vadd.f32 %v3127, %v3238
        %v3240 = vpop.f32.mrb[0].mxu0
        %v3241 = vadd.f32 %v3129, %v3240
        %3242 = vdwg.mxu0
        %v3243 = vand.u32 %v3022, 4294901760
        %v3244 = vsub.f32 %v3022, %v3243
        %3245 = vmatprep.subr.mxu0 %v3244
        %v3246 = vand.u32 %v3021, 4294901760
        %v3247 = vsub.f32 %v3021, %v3246
        %3248 = vmatpush1.msra.mxu0 %v3247
        %v3249 = vand.u32 %v3026, 4294901760
        %v3250 = vsub.f32 %v3026, %v3249
        %3251 = vmatprep.subr.mxu0 %v3250
        %v3252 = vand.u32 %v3025, 4294901760
        %v3253 = vsub.f32 %v3025, %v3252
        %3254 = vmatpush1.msra.mxu0 %v3253
        %v3255 = vand.u32 %v3030, 4294901760
        %v3256 = vsub.f32 %v3030, %v3255
        %3257 = vmatprep.subr.mxu0 %v3256
        %v3258 = vand.u32 %v3029, 4294901760
        %v3259 = vsub.f32 %v3029, %v3258
        %3260 = vmatpush1.msra.mxu0 %v3259
        %v3261 = vand.u32 %v3034, 4294901760
        %v3262 = vsub.f32 %v3034, %v3261
        %3263 = vmatprep.subr.mxu0 %v3262
        %v3264 = vand.u32 %v3033, 4294901760
        %v3265 = vsub.f32 %v3033, %v3264
        %3266 = vmatpush1.msra.mxu0 %v3265
        %3267 = vmatprep.subr.mxu0 0.0
        %3268 = vmatpush1.msra.mxu0 0.0
        %3269 = vmatprep.subr.mxu0 0.0
        %3270 = vmatpush1.msra.mxu0 0.0
        %3271 = vmatprep.subr.mxu0 0.0
        %3272 = vmatpush1.msra.mxu0 0.0
        %3273 = vmatprep.subr.mxu0 0.0
        %3274 = vmatpush1.msra.mxu0 0.0
        %3275 = vmatprep.subr.mxu0 0.0
        %3276 = vmatpush1.msra.mxu0 0.0
        %3277 = vmatprep.subr.mxu0 0.0
        %3278 = vmatpush1.msra.mxu0 0.0
        %3279 = vmatprep.subr.mxu0 0.0
        %3280 = vmatpush1.msra.mxu0 0.0
        %3281 = vmatprep.subr.mxu0 0.0
        %3282 = vmatpush1.msra.mxu0 0.0
        %3283 = vmatprep.subr.mxu0 0.0
        %3284 = vmatpush1.msra.mxu0 0.0
        %3285 = vmatprep.subr.mxu0 0.0
        %3286 = vmatpush1.msra.mxu0 0.0
        %3287 = vmatprep.subr.mxu0 0.0
        %3288 = vmatpush1.msra.mxu0 0.0
        %3289 = vmatprep.subr.mxu0 0.0
        %3290 = vmatpush1.msra.mxu0 0.0
        %3291 = vmatprep.subr.mxu0 0.0
        %3292 = vmatpush1.msra.mxu0 0.0
        %3293 = vmatprep.subr.mxu0 0.0
        %3294 = vmatpush1.msra.mxu0 0.0
        %3295 = vmatprep.subr.mxu0 0.0
        %3296 = vmatpush1.msra.mxu0 0.0
        %3297 = vmatprep.subr.mxu0 0.0
        %3298 = vmatpush1.msra.mxu0 0.0
        %3299 = vmatprep.subr.mxu0 0.0
        %3300 = vmatpush1.msra.mxu0 0.0
        %3301 = vmatprep.subr.mxu0 0.0
        %3302 = vmatpush1.msra.mxu0 0.0
        %3303 = vmatprep.subr.mxu0 0.0
        %3304 = vmatpush1.msra.mxu0 0.0
        %3305 = vmatprep.subr.mxu0 0.0
        %3306 = vmatpush1.msra.mxu0 0.0
        %3307 = vmatprep.subr.mxu0 0.0
        %3308 = vmatpush1.msra.mxu0 0.0
        %3309 = vmatprep.subr.mxu0 0.0
        %3310 = vmatpush1.msra.mxu0 0.0
        %3311 = vmatprep.subr.mxu0 0.0
        %3312 = vmatpush1.msra.mxu0 0.0
        %3313 = vmatprep.subr.mxu0 0.0
        %3314 = vmatpush1.msra.mxu0 0.0
        %3315 = vmatprep.subr.mxu0 0.0
        %3316 = vmatpush1.msra.mxu0 0.0
        %3317 = vmatprep.subr.mxu0 0.0
        %3318 = vmatpush1.msra.mxu0 0.0
        %3319 = vmatprep.subr.mxu0 0.0
        %3320 = vmatpush1.msra.mxu0 0.0
        %3321 = vmatprep.subr.mxu0 0.0
        %3322 = vmatpush1.msra.mxu0 0.0
        %3323 = vmatprep.mubr.f32.mxu0 0.0
        %v3324 = vand.u32 %v3045, 4294901760
        %v3325 = vsub.f32 %v3045, %v3324
        %3326 = vmatmul.mubr.f32.gmra.mrb[0].mxu0 %v3325
        %v3327 = vpop.f32.mrb[0].mxu0
        %v3328 = vadd.f32 %v3239, %v3327
        %v3329 = vpop.f32.mrb[0].mxu0
        %v3330 = vadd.f32 %v3241, %v3329
        %3331 = vdwg.mxu0
        %v3332 = vand.u32 %v3022, 4294901760
        %3333 = vmatprep.subr.mxu0 %v3332
        %v3334 = vand.u32 %v3021, 4294901760
        %3335 = vmatpush1.msra.mxu0 %v3334
        %v3336 = vand.u32 %v3026, 4294901760
        %3337 = vmatprep.subr.mxu0 %v3336
        %v3338 = vand.u32 %v3025, 4294901760
        %3339 = vmatpush1.msra.mxu0 %v3338
        %v3340 = vand.u32 %v3030, 4294901760
        %3341 = vmatprep.subr.mxu0 %v3340
        %v3342 = vand.u32 %v3029, 4294901760
        %3343 = vmatpush1.msra.mxu0 %v3342
        %v3344 = vand.u32 %v3034, 4294901760
        %3345 = vmatprep.subr.mxu0 %v3344
        %v3346 = vand.u32 %v3033, 4294901760
        %3347 = vmatpush1.msra.mxu0 %v3346
        %3348 = vmatprep.subr.mxu0 0.0
        %3349 = vmatpush1.msra.mxu0 0.0
        %3350 = vmatprep.subr.mxu0 0.0
        %3351 = vmatpush1.msra.mxu0 0.0
        %3352 = vmatprep.subr.mxu0 0.0
        %3353 = vmatpush1.msra.mxu0 0.0
        %3354 = vmatprep.subr.mxu0 0.0
        %3355 = vmatpush1.msra.mxu0 0.0
        %3356 = vmatprep.subr.mxu0 0.0
        %3357 = vmatpush1.msra.mxu0 0.0
        %3358 = vmatprep.subr.mxu0 0.0
        %3359 = vmatpush1.msra.mxu0 0.0
        %3360 = vmatprep.subr.mxu0 0.0
        %3361 = vmatpush1.msra.mxu0 0.0
        %3362 = vmatprep.subr.mxu0 0.0
        %3363 = vmatpush1.msra.mxu0 0.0
        %3364 = vmatprep.subr.mxu0 0.0
        %3365 = vmatpush1.msra.mxu0 0.0
        %3366 = vmatprep.subr.mxu0 0.0
        %3367 = vmatpush1.msra.mxu0 0.0
        %3368 = vmatprep.subr.mxu0 0.0
        %3369 = vmatpush1.msra.mxu0 0.0
        %3370 = vmatprep.subr.mxu0 0.0
        %3371 = vmatpush1.msra.mxu0 0.0
        %3372 = vmatprep.subr.mxu0 0.0
        %3373 = vmatpush1.msra.mxu0 0.0
        %3374 = vmatprep.subr.mxu0 0.0
        %3375 = vmatpush1.msra.mxu0 0.0
        %3376 = vmatprep.subr.mxu0 0.0
        %3377 = vmatpush1.msra.mxu0 0.0
        %3378 = vmatprep.subr.mxu0 0.0
        %3379 = vmatpush1.msra.mxu0 0.0
        %3380 = vmatprep.subr.mxu0 0.0
        %3381 = vmatpush1.msra.mxu0 0.0
        %3382 = vmatprep.subr.mxu0 0.0
        %3383 = vmatpush1.msra.mxu0 0.0
        %3384 = vmatprep.subr.mxu0 0.0
        %3385 = vmatpush1.msra.mxu0 0.0
        %3386 = vmatprep.subr.mxu0 0.0
        %3387 = vmatpush1.msra.mxu0 0.0
        %3388 = vmatprep.subr.mxu0 0.0
        %3389 = vmatpush1.msra.mxu0 0.0
        %3390 = vmatprep.subr.mxu0 0.0
        %3391 = vmatpush1.msra.mxu0 0.0
        %3392 = vmatprep.subr.mxu0 0.0
        %3393 = vmatpush1.msra.mxu0 0.0
        %3394 = vmatprep.subr.mxu0 0.0
        %3395 = vmatpush1.msra.mxu0 0.0
        %3396 = vmatprep.subr.mxu0 0.0
        %3397 = vmatpush1.msra.mxu0 0.0
        %3398 = vmatprep.subr.mxu0 0.0
        %3399 = vmatpush1.msra.mxu0 0.0
        %3400 = vmatprep.subr.mxu0 0.0
        %3401 = vmatpush1.msra.mxu0 0.0
        %3402 = vmatprep.subr.mxu0 0.0
        %3403 = vmatpush1.msra.mxu0 0.0
        %3404 = vmatprep.mubr.f32.mxu0 0.0
        %v3405 = vand.u32 %v3045, 4294901760
        %v3406 = vsub.f32 %v3045, %v3405
        %v3407 = vand.u32 %v3406, 4294901760
        %3408 = vmatmul.mubr.f32.gmra.mrb[0].mxu0 %v3407
        %v3409 = vpop.f32.mrb[0].mxu0
        %v3410 = vadd.f32 %v3328, %v3409
        %v3411 = vpop.f32.mrb[0].mxu0
        %v3412 = vadd.f32 %v3330, %v3411
        %3413 = vdwg.mxu0
        %v3414 = vand.u32 %v3022, 4294901760
        %v3415 = vsub.f32 %v3022, %v3414
        %v3416 = vand.u32 %v3415, 4294901760
        %3417 = vmatprep.subr.mxu0 %v3416
        %v3418 = vand.u32 %v3021, 4294901760
        %v3419 = vsub.f32 %v3021, %v3418
        %v3420 = vand.u32 %v3419, 4294901760
        %3421 = vmatpush1.msra.mxu0 %v3420
        %v3422 = vand.u32 %v3026, 4294901760
        %v3423 = vsub.f32 %v3026, %v3422
        %v3424 = vand.u32 %v3423, 4294901760
        %3425 = vmatprep.subr.mxu0 %v3424
        %v3426 = vand.u32 %v3025, 4294901760
        %v3427 = vsub.f32 %v3025, %v3426
        %v3428 = vand.u32 %v3427, 4294901760
        %3429 = vmatpush1.msra.mxu0 %v3428
        %v3430 = vand.u32 %v3030, 4294901760
        %v3431 = vsub.f32 %v3030, %v3430
        %v3432 = vand.u32 %v3431, 4294901760
        %3433 = vmatprep.subr.mxu0 %v3432
        %v3434 = vand.u32 %v3029, 4294901760
        %v3435 = vsub.f32 %v3029, %v3434
        %v3436 = vand.u32 %v3435, 4294901760
        %3437 = vmatpush1.msra.mxu0 %v3436
        %v3438 = vand.u32 %v3034, 4294901760
        %v3439 = vsub.f32 %v3034, %v3438
        %v3440 = vand.u32 %v3439, 4294901760
        %3441 = vmatprep.subr.mxu0 %v3440
        %v3442 = vand.u32 %v3033, 4294901760
        %v3443 = vsub.f32 %v3033, %v3442
        %v3444 = vand.u32 %v3443, 4294901760
        %3445 = vmatpush1.msra.mxu0 %v3444
        %3446 = vmatprep.subr.mxu0 0.0
        %3447 = vmatpush1.msra.mxu0 0.0
        %3448 = vmatprep.subr.mxu0 0.0
        %3449 = vmatpush1.msra.mxu0 0.0
        %3450 = vmatprep.subr.mxu0 0.0
        %3451 = vmatpush1.msra.mxu0 0.0
        %3452 = vmatprep.subr.mxu0 0.0
        %3453 = vmatpush1.msra.mxu0 0.0
        %3454 = vmatprep.subr.mxu0 0.0
        %3455 = vmatpush1.msra.mxu0 0.0
        %3456 = vmatprep.subr.mxu0 0.0
        %3457 = vmatpush1.msra.mxu0 0.0
        %3458 = vmatprep.subr.mxu0 0.0
        %3459 = vmatpush1.msra.mxu0 0.0
        %3460 = vmatprep.subr.mxu0 0.0
        %3461 = vmatpush1.msra.mxu0 0.0
        %3462 = vmatprep.subr.mxu0 0.0
        %3463 = vmatpush1.msra.mxu0 0.0
        %3464 = vmatprep.subr.mxu0 0.0
        %3465 = vmatpush1.msra.mxu0 0.0
        %3466 = vmatprep.subr.mxu0 0.0
        %3467 = vmatpush1.msra.mxu0 0.0
        %3468 = vmatprep.subr.mxu0 0.0
        %3469 = vmatpush1.msra.mxu0 0.0
        %3470 = vmatprep.subr.mxu0 0.0
        %3471 = vmatpush1.msra.mxu0 0.0
        %3472 = vmatprep.subr.mxu0 0.0
        %3473 = vmatpush1.msra.mxu0 0.0
        %3474 = vmatprep.subr.mxu0 0.0
        %3475 = vmatpush1.msra.mxu0 0.0
        %3476 = vmatprep.subr.mxu0 0.0
        %3477 = vmatpush1.msra.mxu0 0.0
        %3478 = vmatprep.subr.mxu0 0.0
        %3479 = vmatpush1.msra.mxu0 0.0
        %3480 = vmatprep.subr.mxu0 0.0
        %3481 = vmatpush1.msra.mxu0 0.0
        %3482 = vmatprep.subr.mxu0 0.0
        %3483 = vmatpush1.msra.mxu0 0.0
        %3484 = vmatprep.subr.mxu0 0.0
        %3485 = vmatpush1.msra.mxu0 0.0
        %3486 = vmatprep.subr.mxu0 0.0
        %3487 = vmatpush1.msra.mxu0 0.0
        %3488 = vmatprep.subr.mxu0 0.0
        %3489 = vmatpush1.msra.mxu0 0.0
        %3490 = vmatprep.subr.mxu0 0.0
        %3491 = vmatpush1.msra.mxu0 0.0
        %3492 = vmatprep.subr.mxu0 0.0
        %3493 = vmatpush1.msra.mxu0 0.0
        %3494 = vmatprep.subr.mxu0 0.0
        %3495 = vmatpush1.msra.mxu0 0.0
        %3496 = vmatprep.subr.mxu0 0.0
        %3497 = vmatpush1.msra.mxu0 0.0
        %3498 = vmatprep.subr.mxu0 0.0
        %3499 = vmatpush1.msra.mxu0 0.0
        %3500 = vmatprep.subr.mxu0 0.0
        %3501 = vmatpush1.msra.mxu0 0.0
        %3502 = vmatprep.mubr.f32.mxu0 0.0
        %v3503 = vand.u32 %v3045, 4294901760
        %3504 = vmatmul.mubr.f32.gmra.mrb[0].mxu0 %v3503
        %v3505 = vpop.f32.mrb[0].mxu0
        %v3506 = vadd.f32 %v3410, %v3505
        %v3507 = vpop.f32.mrb[0].mxu0
        %v3508 = vadd.f32 %v3412, %v3507
        %3509 = vdwg.mxu0
        %v3510 = vand.u32 %v3022, 4294901760
        %3511 = vmatprep.subr.mxu0 %v3510
        %v3512 = vand.u32 %v3021, 4294901760
        %3513 = vmatpush1.msra.mxu0 %v3512
        %v3514 = vand.u32 %v3026, 4294901760
        %3515 = vmatprep.subr.mxu0 %v3514
        %v3516 = vand.u32 %v3025, 4294901760
        %3517 = vmatpush1.msra.mxu0 %v3516
        %v3518 = vand.u32 %v3030, 4294901760
        %3519 = vmatprep.subr.mxu0 %v3518
        %v3520 = vand.u32 %v3029, 4294901760
        %3521 = vmatpush1.msra.mxu0 %v3520
        %v3522 = vand.u32 %v3034, 4294901760
        %3523 = vmatprep.subr.mxu0 %v3522
        %v3524 = vand.u32 %v3033, 4294901760
        %3525 = vmatpush1.msra.mxu0 %v3524
        %3526 = vmatprep.subr.mxu0 0.0
        %3527 = vmatpush1.msra.mxu0 0.0
        %3528 = vmatprep.subr.mxu0 0.0
        %3529 = vmatpush1.msra.mxu0 0.0
        %3530 = vmatprep.subr.mxu0 0.0
        %3531 = vmatpush1.msra.mxu0 0.0
        %3532 = vmatprep.subr.mxu0 0.0
        %3533 = vmatpush1.msra.mxu0 0.0
        %3534 = vmatprep.subr.mxu0 0.0
        %3535 = vmatpush1.msra.mxu0 0.0
        %3536 = vmatprep.subr.mxu0 0.0
        %3537 = vmatpush1.msra.mxu0 0.0
        %3538 = vmatprep.subr.mxu0 0.0
        %3539 = vmatpush1.msra.mxu0 0.0
        %3540 = vmatprep.subr.mxu0 0.0
        %3541 = vmatpush1.msra.mxu0 0.0
        %3542 = vmatprep.subr.mxu0 0.0
        %3543 = vmatpush1.msra.mxu0 0.0
        %3544 = vmatprep.subr.mxu0 0.0
        %3545 = vmatpush1.msra.mxu0 0.0
        %3546 = vmatprep.subr.mxu0 0.0
        %3547 = vmatpush1.msra.mxu0 0.0
        %3548 = vmatprep.subr.mxu0 0.0
        %3549 = vmatpush1.msra.mxu0 0.0
        %3550 = vmatprep.subr.mxu0 0.0
        %3551 = vmatpush1.msra.mxu0 0.0
        %3552 = vmatprep.subr.mxu0 0.0
        %3553 = vmatpush1.msra.mxu0 0.0
        %3554 = vmatprep.subr.mxu0 0.0
        %3555 = vmatpush1.msra.mxu0 0.0
        %3556 = vmatprep.subr.mxu0 0.0
        %3557 = vmatpush1.msra.mxu0 0.0
        %3558 = vmatprep.subr.mxu0 0.0
        %3559 = vmatpush1.msra.mxu0 0.0
        %3560 = vmatprep.subr.mxu0 0.0
        %3561 = vmatpush1.msra.mxu0 0.0
        %3562 = vmatprep.subr.mxu0 0.0
        %3563 = vmatpush1.msra.mxu0 0.0
        %3564 = vmatprep.subr.mxu0 0.0
        %3565 = vmatpush1.msra.mxu0 0.0
        %3566 = vmatprep.subr.mxu0 0.0
        %3567 = vmatpush1.msra.mxu0 0.0
        %3568 = vmatprep.subr.mxu0 0.0
        %3569 = vmatpush1.msra.mxu0 0.0
        %3570 = vmatprep.subr.mxu0 0.0
        %3571 = vmatpush1.msra.mxu0 0.0
        %3572 = vmatprep.subr.mxu0 0.0
        %3573 = vmatpush1.msra.mxu0 0.0
        %3574 = vmatprep.subr.mxu0 0.0
        %3575 = vmatpush1.msra.mxu0 0.0
        %3576 = vmatprep.subr.mxu0 0.0
        %3577 = vmatpush1.msra.mxu0 0.0
        %3578 = vmatprep.subr.mxu0 0.0
        %3579 = vmatpush1.msra.mxu0 0.0
        %3580 = vmatprep.subr.mxu0 0.0
        %3581 = vmatpush1.msra.mxu0 0.0
        %3582 = vmatprep.mubr.f32.mxu0 0.0
        %v3583 = vand.u32 %v3045, 4294901760
        %3584 = vmatmul.mubr.f32.gmra.mrb[0].mxu0 %v3583
        %v3585 = vpop.f32.mrb[0].mxu0
        %v3586 = vadd.f32 %v3506, %v3585
        %v3587 = vpop.f32.mrb[0].mxu0
        %v3588 = vadd.f32 %v3508, %v3587
        %3589 = vdwg.mxu0
        %v3590 = vand.u32 %v3024, 4294901760
        %3591 = vmatprep.subr.mxu0 %v3590
        %v3592 = vand.u32 %v3023, 4294901760
        %3593 = vmatpush1.msra.mxu0 %v3592
        %v3594 = vand.u32 %v3028, 4294901760
        %3595 = vmatprep.subr.mxu0 %v3594
        %v3596 = vand.u32 %v3027, 4294901760
        %3597 = vmatpush1.msra.mxu0 %v3596
        %v3598 = vand.u32 %v3032, 4294901760
        %3599 = vmatprep.subr.mxu0 %v3598
        %v3600 = vand.u32 %v3031, 4294901760
        %3601 = vmatpush1.msra.mxu0 %v3600
        %v3602 = vand.u32 %v3036, 4294901760
        %3603 = vmatprep.subr.mxu0 %v3602
        %v3604 = vand.u32 %v3035, 4294901760
        %3605 = vmatpush1.msra.mxu0 %v3604
        %3606 = vmatprep.subr.mxu0 0.0
        %3607 = vmatpush1.msra.mxu0 0.0
        %3608 = vmatprep.subr.mxu0 0.0
        %3609 = vmatpush1.msra.mxu0 0.0
        %3610 = vmatprep.subr.mxu0 0.0
        %3611 = vmatpush1.msra.mxu0 0.0
        %3612 = vmatprep.subr.mxu0 0.0
        %3613 = vmatpush1.msra.mxu0 0.0
        %3614 = vmatprep.subr.mxu0 0.0
        %3615 = vmatpush1.msra.mxu0 0.0
        %3616 = vmatprep.subr.mxu0 0.0
        %3617 = vmatpush1.msra.mxu0 0.0
        %3618 = vmatprep.subr.mxu0 0.0
        %3619 = vmatpush1.msra.mxu0 0.0
        %3620 = vmatprep.subr.mxu0 0.0
        %3621 = vmatpush1.msra.mxu0 0.0
        %3622 = vmatprep.subr.mxu0 0.0
        %3623 = vmatpush1.msra.mxu0 0.0
        %3624 = vmatprep.subr.mxu0 0.0
        %3625 = vmatpush1.msra.mxu0 0.0
        %3626 = vmatprep.subr.mxu0 0.0
        %3627 = vmatpush1.msra.mxu0 0.0
        %3628 = vmatprep.subr.mxu0 0.0
        %3629 = vmatpush1.msra.mxu0 0.0
        %3630 = vmatprep.subr.mxu0 0.0
        %3631 = vmatpush1.msra.mxu0 0.0
        %3632 = vmatprep.subr.mxu0 0.0
        %3633 = vmatpush1.msra.mxu0 0.0
        %3634 = vmatprep.subr.mxu0 0.0
        %3635 = vmatpush1.msra.mxu0 0.0
        %3636 = vmatprep.subr.mxu0 0.0
        %3637 = vmatpush1.msra.mxu0 0.0
        %3638 = vmatprep.subr.mxu0 0.0
        %3639 = vmatpush1.msra.mxu0 0.0
        %3640 = vmatprep.subr.mxu0 0.0
        %3641 = vmatpush1.msra.mxu0 0.0
        %3642 = vmatprep.subr.mxu0 0.0
        %3643 = vmatpush1.msra.mxu0 0.0
        %3644 = vmatprep.subr.mxu0 0.0
        %3645 = vmatpush1.msra.mxu0 0.0
        %3646 = vmatprep.subr.mxu0 0.0
        %3647 = vmatpush1.msra.mxu0 0.0
        %3648 = vmatprep.subr.mxu0 0.0
        %3649 = vmatpush1.msra.mxu0 0.0
        %3650 = vmatprep.subr.mxu0 0.0
        %3651 = vmatpush1.msra.mxu0 0.0
        %3652 = vmatprep.subr.mxu0 0.0
        %3653 = vmatpush1.msra.mxu0 0.0
        %3654 = vmatprep.subr.mxu0 0.0
        %3655 = vmatpush1.msra.mxu0 0.0
        %3656 = vmatprep.subr.mxu0 0.0
        %3657 = vmatpush1.msra.mxu0 0.0
        %3658 = vmatprep.subr.mxu0 0.0
        %3659 = vmatpush1.msra.mxu0 0.0
        %3660 = vmatprep.subr.mxu0 0.0
        %3661 = vmatpush1.msra.mxu0 0.0
        %3662 = vmatprep.mubr.f32.mxu0 0.0
        %v3663 = vand.u32 %v3045, 4294901760
        %v3664 = vsub.f32 %v3045, %v3663
        %v3665 = vand.u32 %v3664, 4294901760
        %v3666 = vsub.f32 %v3664, %v3665
        %v3667 = vand.u32 %v3666, 4294901760
        %3668 = vmatmul.mubr.f32.gmra.mrb[0].mxu0 %v3667
        %v3669 = vpop.f32.mrb[0].mxu0
        %v3670 = vadd.f32 %v3042, %v3669
        %v3671 = vpop.f32.mrb[0].mxu0
        %v3672 = vadd.f32 %v3042, %v3671
        %3673 = vdwg.mxu0
        %v3674 = vand.u32 %v3024, 4294901760
        %v3675 = vsub.f32 %v3024, %v3674
        %v3676 = vand.u32 %v3675, 4294901760
        %v3677 = vsub.f32 %v3675, %v3676
        %v3678 = vand.u32 %v3677, 4294901760
        %3679 = vmatprep.subr.mxu0 %v3678
        %v3680 = vand.u32 %v3023, 4294901760
        %v3681 = vsub.f32 %v3023, %v3680
        %v3682 = vand.u32 %v3681, 4294901760
        %v3683 = vsub.f32 %v3681, %v3682
        %v3684 = vand.u32 %v3683, 4294901760
        %3685 = vmatpush1.msra.mxu0 %v3684
        %v3686 = vand.u32 %v3028, 4294901760
        %v3687 = vsub.f32 %v3028, %v3686
        %v3688 = vand.u32 %v3687, 4294901760
        %v3689 = vsub.f32 %v3687, %v3688
        %v3690 = vand.u32 %v3689, 4294901760
        %3691 = vmatprep.subr.mxu0 %v3690
        %v3692 = vand.u32 %v3027, 4294901760
        %v3693 = vsub.f32 %v3027, %v3692
        %v3694 = vand.u32 %v3693, 4294901760
        %v3695 = vsub.f32 %v3693, %v3694
        %v3696 = vand.u32 %v3695, 4294901760
        %3697 = vmatpush1.msra.mxu0 %v3696
        %v3698 = vand.u32 %v3032, 4294901760
        %v3699 = vsub.f32 %v3032, %v3698
        %v3700 = vand.u32 %v3699, 4294901760
        %v3701 = vsub.f32 %v3699, %v3700
        %v3702 = vand.u32 %v3701, 4294901760
        %3703 = vmatprep.subr.mxu0 %v3702
        %v3704 = vand.u32 %v3031, 4294901760
        %v3705 = vsub.f32 %v3031, %v3704
        %v3706 = vand.u32 %v3705, 4294901760
        %v3707 = vsub.f32 %v3705, %v3706
        %v3708 = vand.u32 %v3707, 4294901760
        %3709 = vmatpush1.msra.mxu0 %v3708
        %v3710 = vand.u32 %v3036, 4294901760
        %v3711 = vsub.f32 %v3036, %v3710
        %v3712 = vand.u32 %v3711, 4294901760
        %v3713 = vsub.f32 %v3711, %v3712
        %v3714 = vand.u32 %v3713, 4294901760
        %3715 = vmatprep.subr.mxu0 %v3714
        %v3716 = vand.u32 %v3035, 4294901760
        %v3717 = vsub.f32 %v3035, %v3716
        %v3718 = vand.u32 %v3717, 4294901760
        %v3719 = vsub.f32 %v3717, %v3718
        %v3720 = vand.u32 %v3719, 4294901760
        %3721 = vmatpush1.msra.mxu0 %v3720
        %3722 = vmatprep.subr.mxu0 0.0
        %3723 = vmatpush1.msra.mxu0 0.0
        %3724 = vmatprep.subr.mxu0 0.0
        %3725 = vmatpush1.msra.mxu0 0.0
        %3726 = vmatprep.subr.mxu0 0.0
        %3727 = vmatpush1.msra.mxu0 0.0
        %3728 = vmatprep.subr.mxu0 0.0
        %3729 = vmatpush1.msra.mxu0 0.0
        %3730 = vmatprep.subr.mxu0 0.0
        %3731 = vmatpush1.msra.mxu0 0.0
        %3732 = vmatprep.subr.mxu0 0.0
        %3733 = vmatpush1.msra.mxu0 0.0
        %3734 = vmatprep.subr.mxu0 0.0
        %3735 = vmatpush1.msra.mxu0 0.0
        %3736 = vmatprep.subr.mxu0 0.0
        %3737 = vmatpush1.msra.mxu0 0.0
        %3738 = vmatprep.subr.mxu0 0.0
        %3739 = vmatpush1.msra.mxu0 0.0
        %3740 = vmatprep.subr.mxu0 0.0
        %3741 = vmatpush1.msra.mxu0 0.0
        %3742 = vmatprep.subr.mxu0 0.0
        %3743 = vmatpush1.msra.mxu0 0.0
        %3744 = vmatprep.subr.mxu0 0.0
        %3745 = vmatpush1.msra.mxu0 0.0
        %3746 = vmatprep.subr.mxu0 0.0
        %3747 = vmatpush1.msra.mxu0 0.0
        %3748 = vmatprep.subr.mxu0 0.0
        %3749 = vmatpush1.msra.mxu0 0.0
        %3750 = vmatprep.subr.mxu0 0.0
        %3751 = vmatpush1.msra.mxu0 0.0
        %3752 = vmatprep.subr.mxu0 0.0
        %3753 = vmatpush1.msra.mxu0 0.0
        %3754 = vmatprep.subr.mxu0 0.0
        %3755 = vmatpush1.msra.mxu0 0.0
        %3756 = vmatprep.subr.mxu0 0.0
        %3757 = vmatpush1.msra.mxu0 0.0
        %3758 = vmatprep.subr.mxu0 0.0
        %3759 = vmatpush1.msra.mxu0 0.0
        %3760 = vmatprep.subr.mxu0 0.0
        %3761 = vmatpush1.msra.mxu0 0.0
        %3762 = vmatprep.subr.mxu0 0.0
        %3763 = vmatpush1.msra.mxu0 0.0
        %3764 = vmatprep.subr.mxu0 0.0
        %3765 = vmatpush1.msra.mxu0 0.0
        %3766 = vmatprep.subr.mxu0 0.0
        %3767 = vmatpush1.msra.mxu0 0.0
        %3768 = vmatprep.subr.mxu0 0.0
        %3769 = vmatpush1.msra.mxu0 0.0
        %3770 = vmatprep.subr.mxu0 0.0
        %3771 = vmatpush1.msra.mxu0 0.0
        %3772 = vmatprep.subr.mxu0 0.0
        %3773 = vmatpush1.msra.mxu0 0.0
        %3774 = vmatprep.subr.mxu0 0.0
        %3775 = vmatpush1.msra.mxu0 0.0
        %3776 = vmatprep.subr.mxu0 0.0
        %3777 = vmatpush1.msra.mxu0 0.0
        %3778 = vmatprep.mubr.f32.mxu0 0.0
        %v3779 = vand.u32 %v3045, 4294901760
        %3780 = vmatmul.mubr.f32.gmra.mrb[0].mxu0 %v3779
        %v3781 = vpop.f32.mrb[0].mxu0
        %v3782 = vadd.f32 %v3670, %v3781
        %v3783 = vpop.f32.mrb[0].mxu0
        %v3784 = vadd.f32 %v3672, %v3783
        %3785 = vdwg.mxu0
        %v3786 = vand.u32 %v3024, 4294901760
        %v3787 = vsub.f32 %v3024, %v3786
        %3788 = vmatprep.subr.mxu0 %v3787
        %v3789 = vand.u32 %v3023, 4294901760
        %v3790 = vsub.f32 %v3023, %v3789
        %3791 = vmatpush1.msra.mxu0 %v3790
        %v3792 = vand.u32 %v3028, 4294901760
        %v3793 = vsub.f32 %v3028, %v3792
        %3794 = vmatprep.subr.mxu0 %v3793
        %v3795 = vand.u32 %v3027, 4294901760
        %v3796 = vsub.f32 %v3027, %v3795
        %3797 = vmatpush1.msra.mxu0 %v3796
        %v3798 = vand.u32 %v3032, 4294901760
        %v3799 = vsub.f32 %v3032, %v3798
        %3800 = vmatprep.subr.mxu0 %v3799
        %v3801 = vand.u32 %v3031, 4294901760
        %v3802 = vsub.f32 %v3031, %v3801
        %3803 = vmatpush1.msra.mxu0 %v3802
        %v3804 = vand.u32 %v3036, 4294901760
        %v3805 = vsub.f32 %v3036, %v3804
        %3806 = vmatprep.subr.mxu0 %v3805
        %v3807 = vand.u32 %v3035, 4294901760
        %v3808 = vsub.f32 %v3035, %v3807
        %3809 = vmatpush1.msra.mxu0 %v3808
        %3810 = vmatprep.subr.mxu0 0.0
        %3811 = vmatpush1.msra.mxu0 0.0
        %3812 = vmatprep.subr.mxu0 0.0
        %3813 = vmatpush1.msra.mxu0 0.0
        %3814 = vmatprep.subr.mxu0 0.0
        %3815 = vmatpush1.msra.mxu0 0.0
        %3816 = vmatprep.subr.mxu0 0.0
        %3817 = vmatpush1.msra.mxu0 0.0
        %3818 = vmatprep.subr.mxu0 0.0
        %3819 = vmatpush1.msra.mxu0 0.0
        %3820 = vmatprep.subr.mxu0 0.0
        %3821 = vmatpush1.msra.mxu0 0.0
        %3822 = vmatprep.subr.mxu0 0.0
        %3823 = vmatpush1.msra.mxu0 0.0
        %3824 = vmatprep.subr.mxu0 0.0
        %3825 = vmatpush1.msra.mxu0 0.0
        %3826 = vmatprep.subr.mxu0 0.0
        %3827 = vmatpush1.msra.mxu0 0.0
        %3828 = vmatprep.subr.mxu0 0.0
        %3829 = vmatpush1.msra.mxu0 0.0
        %3830 = vmatprep.subr.mxu0 0.0
        %3831 = vmatpush1.msra.mxu0 0.0
        %3832 = vmatprep.subr.mxu0 0.0
        %3833 = vmatpush1.msra.mxu0 0.0
        %3834 = vmatprep.subr.mxu0 0.0
        %3835 = vmatpush1.msra.mxu0 0.0
        %3836 = vmatprep.subr.mxu0 0.0
        %3837 = vmatpush1.msra.mxu0 0.0
        %3838 = vmatprep.subr.mxu0 0.0
        %3839 = vmatpush1.msra.mxu0 0.0
        %3840 = vmatprep.subr.mxu0 0.0
        %3841 = vmatpush1.msra.mxu0 0.0
        %3842 = vmatprep.subr.mxu0 0.0
        %3843 = vmatpush1.msra.mxu0 0.0
        %3844 = vmatprep.subr.mxu0 0.0
        %3845 = vmatpush1.msra.mxu0 0.0
        %3846 = vmatprep.subr.mxu0 0.0
        %3847 = vmatpush1.msra.mxu0 0.0
        %3848 = vmatprep.subr.mxu0 0.0
        %3849 = vmatpush1.msra.mxu0 0.0
        %3850 = vmatprep.subr.mxu0 0.0
        %3851 = vmatpush1.msra.mxu0 0.0
        %3852 = vmatprep.subr.mxu0 0.0
        %3853 = vmatpush1.msra.mxu0 0.0
        %3854 = vmatprep.subr.mxu0 0.0
        %3855 = vmatpush1.msra.mxu0 0.0
        %3856 = vmatprep.subr.mxu0 0.0
        %3857 = vmatpush1.msra.mxu0 0.0
        %3858 = vmatprep.subr.mxu0 0.0
        %3859 = vmatpush1.msra.mxu0 0.0
        %3860 = vmatprep.subr.mxu0 0.0
        %3861 = vmatpush1.msra.mxu0 0.0
        %3862 = vmatprep.subr.mxu0 0.0
        %3863 = vmatpush1.msra.mxu0 0.0
        %3864 = vmatprep.subr.mxu0 0.0
        %3865 = vmatpush1.msra.mxu0 0.0
        %3866 = vmatprep.mubr.f32.mxu0 0.0
        %v3867 = vand.u32 %v3045, 4294901760
        %v3868 = vsub.f32 %v3045, %v3867
        %3869 = vmatmul.mubr.f32.gmra.mrb[0].mxu0 %v3868
        %v3870 = vpop.f32.mrb[0].mxu0
        %v3871 = vadd.f32 %v3782, %v3870
        %v3872 = vpop.f32.mrb[0].mxu0
        %v3873 = vadd.f32 %v3784, %v3872
        %3874 = vdwg.mxu0
        %v3875 = vand.u32 %v3024, 4294901760
        %3876 = vmatprep.subr.mxu0 %v3875
        %v3877 = vand.u32 %v3023, 4294901760
        %3878 = vmatpush1.msra.mxu0 %v3877
        %v3879 = vand.u32 %v3028, 4294901760
        %3880 = vmatprep.subr.mxu0 %v3879
        %v3881 = vand.u32 %v3027, 4294901760
        %3882 = vmatpush1.msra.mxu0 %v3881
        %v3883 = vand.u32 %v3032, 4294901760
        %3884 = vmatprep.subr.mxu0 %v3883
        %v3885 = vand.u32 %v3031, 4294901760
        %3886 = vmatpush1.msra.mxu0 %v3885
        %v3887 = vand.u32 %v3036, 4294901760
        %3888 = vmatprep.subr.mxu0 %v3887
        %v3889 = vand.u32 %v3035, 4294901760
        %3890 = vmatpush1.msra.mxu0 %v3889
        %3891 = vmatprep.subr.mxu0 0.0
        %3892 = vmatpush1.msra.mxu0 0.0
        %3893 = vmatprep.subr.mxu0 0.0
        %3894 = vmatpush1.msra.mxu0 0.0
        %3895 = vmatprep.subr.mxu0 0.0
        %3896 = vmatpush1.msra.mxu0 0.0
        %3897 = vmatprep.subr.mxu0 0.0
        %3898 = vmatpush1.msra.mxu0 0.0
        %3899 = vmatprep.subr.mxu0 0.0
        %3900 = vmatpush1.msra.mxu0 0.0
        %3901 = vmatprep.subr.mxu0 0.0
        %3902 = vmatpush1.msra.mxu0 0.0
        %3903 = vmatprep.subr.mxu0 0.0
        %3904 = vmatpush1.msra.mxu0 0.0
        %3905 = vmatprep.subr.mxu0 0.0
        %3906 = vmatpush1.msra.mxu0 0.0
        %3907 = vmatprep.subr.mxu0 0.0
        %3908 = vmatpush1.msra.mxu0 0.0
        %3909 = vmatprep.subr.mxu0 0.0
        %3910 = vmatpush1.msra.mxu0 0.0
        %3911 = vmatprep.subr.mxu0 0.0
        %3912 = vmatpush1.msra.mxu0 0.0
        %3913 = vmatprep.subr.mxu0 0.0
        %3914 = vmatpush1.msra.mxu0 0.0
        %3915 = vmatprep.subr.mxu0 0.0
        %3916 = vmatpush1.msra.mxu0 0.0
        %3917 = vmatprep.subr.mxu0 0.0
        %3918 = vmatpush1.msra.mxu0 0.0
        %3919 = vmatprep.subr.mxu0 0.0
        %3920 = vmatpush1.msra.mxu0 0.0
        %3921 = vmatprep.subr.mxu0 0.0
        %3922 = vmatpush1.msra.mxu0 0.0
        %3923 = vmatprep.subr.mxu0 0.0
        %3924 = vmatpush1.msra.mxu0 0.0
        %3925 = vmatprep.subr.mxu0 0.0
        %3926 = vmatpush1.msra.mxu0 0.0
        %3927 = vmatprep.subr.mxu0 0.0
        %3928 = vmatpush1.msra.mxu0 0.0
        %3929 = vmatprep.subr.mxu0 0.0
        %3930 = vmatpush1.msra.mxu0 0.0
        %3931 = vmatprep.subr.mxu0 0.0
        %3932 = vmatpush1.msra.mxu0 0.0
        %3933 = vmatprep.subr.mxu0 0.0
        %3934 = vmatpush1.msra.mxu0 0.0
        %3935 = vmatprep.subr.mxu0 0.0
        %3936 = vmatpush1.msra.mxu0 0.0
        %3937 = vmatprep.subr.mxu0 0.0
        %3938 = vmatpush1.msra.mxu0 0.0
        %3939 = vmatprep.subr.mxu0 0.0
        %3940 = vmatpush1.msra.mxu0 0.0
        %3941 = vmatprep.subr.mxu0 0.0
        %3942 = vmatpush1.msra.mxu0 0.0
        %3943 = vmatprep.subr.mxu0 0.0
        %3944 = vmatpush1.msra.mxu0 0.0
        %3945 = vmatprep.subr.mxu0 0.0
        %3946 = vmatpush1.msra.mxu0 0.0
        %3947 = vmatprep.mubr.f32.mxu0 0.0
        %v3948 = vand.u32 %v3045, 4294901760
        %v3949 = vsub.f32 %v3045, %v3948
        %v3950 = vand.u32 %v3949, 4294901760
        %3951 = vmatmul.mubr.f32.gmra.mrb[0].mxu0 %v3950
        %v3952 = vpop.f32.mrb[0].mxu0
        %v3953 = vadd.f32 %v3871, %v3952
        %v3954 = vpop.f32.mrb[0].mxu0
        %v3955 = vadd.f32 %v3873, %v3954
        %3956 = vdwg.mxu0
        %v3957 = vand.u32 %v3024, 4294901760
        %v3958 = vsub.f32 %v3024, %v3957
        %v3959 = vand.u32 %v3958, 4294901760
        %3960 = vmatprep.subr.mxu0 %v3959
        %v3961 = vand.u32 %v3023, 4294901760
        %v3962 = vsub.f32 %v3023, %v3961
        %v3963 = vand.u32 %v3962, 4294901760
        %3964 = vmatpush1.msra.mxu0 %v3963
        %v3965 = vand.u32 %v3028, 4294901760
        %v3966 = vsub.f32 %v3028, %v3965
        %v3967 = vand.u32 %v3966, 4294901760
        %3968 = vmatprep.subr.mxu0 %v3967
        %v3969 = vand.u32 %v3027, 4294901760
        %v3970 = vsub.f32 %v3027, %v3969
        %v3971 = vand.u32 %v3970, 4294901760
        %3972 = vmatpush1.msra.mxu0 %v3971
        %v3973 = vand.u32 %v3032, 4294901760
        %v3974 = vsub.f32 %v3032, %v3973
        %v3975 = vand.u32 %v3974, 4294901760
        %3976 = vmatprep.subr.mxu0 %v3975
        %v3977 = vand.u32 %v3031, 4294901760
        %v3978 = vsub.f32 %v3031, %v3977
        %v3979 = vand.u32 %v3978, 4294901760
        %3980 = vmatpush1.msra.mxu0 %v3979
        %v3981 = vand.u32 %v3036, 4294901760
        %v3982 = vsub.f32 %v3036, %v3981
        %v3983 = vand.u32 %v3982, 4294901760
        %3984 = vmatprep.subr.mxu0 %v3983
        %v3985 = vand.u32 %v3035, 4294901760
        %v3986 = vsub.f32 %v3035, %v3985
        %v3987 = vand.u32 %v3986, 4294901760
        %3988 = vmatpush1.msra.mxu0 %v3987
        %3989 = vmatprep.subr.mxu0 0.0
        %3990 = vmatpush1.msra.mxu0 0.0
        %3991 = vmatprep.subr.mxu0 0.0
        %3992 = vmatpush1.msra.mxu0 0.0
        %3993 = vmatprep.subr.mxu0 0.0
        %3994 = vmatpush1.msra.mxu0 0.0
        %3995 = vmatprep.subr.mxu0 0.0
        %3996 = vmatpush1.msra.mxu0 0.0
        %3997 = vmatprep.subr.mxu0 0.0
        %3998 = vmatpush1.msra.mxu0 0.0
        %3999 = vmatprep.subr.mxu0 0.0
        %4000 = vmatpush1.msra.mxu0 0.0
        %4001 = vmatprep.subr.mxu0 0.0
        %4002 = vmatpush1.msra.mxu0 0.0
        %4003 = vmatprep.subr.mxu0 0.0
        %4004 = vmatpush1.msra.mxu0 0.0
        %4005 = vmatprep.subr.mxu0 0.0
        %4006 = vmatpush1.msra.mxu0 0.0
        %4007 = vmatprep.subr.mxu0 0.0
        %4008 = vmatpush1.msra.mxu0 0.0
        %4009 = vmatprep.subr.mxu0 0.0
        %4010 = vmatpush1.msra.mxu0 0.0
        %4011 = vmatprep.subr.mxu0 0.0
        %4012 = vmatpush1.msra.mxu0 0.0
        %4013 = vmatprep.subr.mxu0 0.0
        %4014 = vmatpush1.msra.mxu0 0.0
        %4015 = vmatprep.subr.mxu0 0.0
        %4016 = vmatpush1.msra.mxu0 0.0
        %4017 = vmatprep.subr.mxu0 0.0
        %4018 = vmatpush1.msra.mxu0 0.0
        %4019 = vmatprep.subr.mxu0 0.0
        %4020 = vmatpush1.msra.mxu0 0.0
        %4021 = vmatprep.subr.mxu0 0.0
        %4022 = vmatpush1.msra.mxu0 0.0
        %4023 = vmatprep.subr.mxu0 0.0
        %4024 = vmatpush1.msra.mxu0 0.0
        %4025 = vmatprep.subr.mxu0 0.0
        %4026 = vmatpush1.msra.mxu0 0.0
        %4027 = vmatprep.subr.mxu0 0.0
        %4028 = vmatpush1.msra.mxu0 0.0
        %4029 = vmatprep.subr.mxu0 0.0
        %4030 = vmatpush1.msra.mxu0 0.0
        %4031 = vmatprep.subr.mxu0 0.0
        %4032 = vmatpush1.msra.mxu0 0.0
        %4033 = vmatprep.subr.mxu0 0.0
        %4034 = vmatpush1.msra.mxu0 0.0
        %4035 = vmatprep.subr.mxu0 0.0
        %4036 = vmatpush1.msra.mxu0 0.0
        %4037 = vmatprep.subr.mxu0 0.0
        %4038 = vmatpush1.msra.mxu0 0.0
        %4039 = vmatprep.subr.mxu0 0.0
        %4040 = vmatpush1.msra.mxu0 0.0
        %4041 = vmatprep.subr.mxu0 0.0
        %4042 = vmatpush1.msra.mxu0 0.0
        %4043 = vmatprep.subr.mxu0 0.0
        %4044 = vmatpush1.msra.mxu0 0.0
        %4045 = vmatprep.mubr.f32.mxu0 0.0
        %v4046 = vand.u32 %v3045, 4294901760
        %4047 = vmatmul.mubr.f32.gmra.mrb[0].mxu0 %v4046
        %v4048 = vpop.f32.mrb[0].mxu0
        %v4049 = vadd.f32 %v3953, %v4048
        %v4050 = vpop.f32.mrb[0].mxu0
        %v4051 = vadd.f32 %v3955, %v4050
        %4052 = vdwg.mxu0
        %v4053 = vand.u32 %v3024, 4294901760
        %4054 = vmatprep.subr.mxu0 %v4053
        %v4055 = vand.u32 %v3023, 4294901760
        %4056 = vmatpush1.msra.mxu0 %v4055
        %v4057 = vand.u32 %v3028, 4294901760
        %4058 = vmatprep.subr.mxu0 %v4057
        %v4059 = vand.u32 %v3027, 4294901760
        %4060 = vmatpush1.msra.mxu0 %v4059
        %v4061 = vand.u32 %v3032, 4294901760
        %4062 = vmatprep.subr.mxu0 %v4061
        %v4063 = vand.u32 %v3031, 4294901760
        %4064 = vmatpush1.msra.mxu0 %v4063
        %v4065 = vand.u32 %v3036, 4294901760
        %4066 = vmatprep.subr.mxu0 %v4065
        %v4067 = vand.u32 %v3035, 4294901760
        %4068 = vmatpush1.msra.mxu0 %v4067
        %4069 = vmatprep.subr.mxu0 0.0
        %4070 = vmatpush1.msra.mxu0 0.0
        %4071 = vmatprep.subr.mxu0 0.0
        %4072 = vmatpush1.msra.mxu0 0.0
        %4073 = vmatprep.subr.mxu0 0.0
        %4074 = vmatpush1.msra.mxu0 0.0
        %4075 = vmatprep.subr.mxu0 0.0
        %4076 = vmatpush1.msra.mxu0 0.0
        %4077 = vmatprep.subr.mxu0 0.0
        %4078 = vmatpush1.msra.mxu0 0.0
        %4079 = vmatprep.subr.mxu0 0.0
        %4080 = vmatpush1.msra.mxu0 0.0
        %4081 = vmatprep.subr.mxu0 0.0
        %4082 = vmatpush1.msra.mxu0 0.0
        %4083 = vmatprep.subr.mxu0 0.0
        %4084 = vmatpush1.msra.mxu0 0.0
        %4085 = vmatprep.subr.mxu0 0.0
        %4086 = vmatpush1.msra.mxu0 0.0
        %4087 = vmatprep.subr.mxu0 0.0
        %4088 = vmatpush1.msra.mxu0 0.0
        %4089 = vmatprep.subr.mxu0 0.0
        %4090 = vmatpush1.msra.mxu0 0.0
        %4091 = vmatprep.subr.mxu0 0.0
        %4092 = vmatpush1.msra.mxu0 0.0
        %4093 = vmatprep.subr.mxu0 0.0
        %4094 = vmatpush1.msra.mxu0 0.0
        %4095 = vmatprep.subr.mxu0 0.0
        %4096 = vmatpush1.msra.mxu0 0.0
        %4097 = vmatprep.subr.mxu0 0.0
        %4098 = vmatpush1.msra.mxu0 0.0
        %4099 = vmatprep.subr.mxu0 0.0
        %4100 = vmatpush1.msra.mxu0 0.0
        %4101 = vmatprep.subr.mxu0 0.0
        %4102 = vmatpush1.msra.mxu0 0.0
        %4103 = vmatprep.subr.mxu0 0.0
        %4104 = vmatpush1.msra.mxu0 0.0
        %4105 = vmatprep.subr.mxu0 0.0
        %4106 = vmatpush1.msra.mxu0 0.0
        %4107 = vmatprep.subr.mxu0 0.0
        %4108 = vmatpush1.msra.mxu0 0.0
        %4109 = vmatprep.subr.mxu0 0.0
        %4110 = vmatpush1.msra.mxu0 0.0
        %4111 = vmatprep.subr.mxu0 0.0
        %4112 = vmatpush1.msra.mxu0 0.0
        %4113 = vmatprep.subr.mxu0 0.0
        %4114 = vmatpush1.msra.mxu0 0.0
        %4115 = vmatprep.subr.mxu0 0.0
        %4116 = vmatpush1.msra.mxu0 0.0
        %4117 = vmatprep.subr.mxu0 0.0
        %4118 = vmatpush1.msra.mxu0 0.0
        %4119 = vmatprep.subr.mxu0 0.0
        %4120 = vmatpush1.msra.mxu0 0.0
        %4121 = vmatprep.subr.mxu0 0.0
        %4122 = vmatpush1.msra.mxu0 0.0
        %4123 = vmatprep.subr.mxu0 0.0
        %4124 = vmatpush1.msra.mxu0 0.0
        %4125 = vmatprep.mubr.f32.mxu0 0.0
        %v4126 = vand.u32 %v3045, 4294901760
        %4127 = vmatmul.mubr.f32.gmra.mrb[0].mxu0 %v4126
        %v4128 = vpop.f32.mrb[0].mxu0
        %v4129 = vadd.f32 %v4049, %v4128
        %v4130 = vpop.f32.mrb[0].mxu0
        %v4131 = vadd.f32 %v4051, %v4130
        %4132 = vdwg.mxu0
        %v4133 = vtanh.pop %v3586
        %v4134 = vtanh.pop %v3588
        %v4135 = vtanh.pop %v4129
        %v4136 = vtanh.pop %v4131
        %4137 = vst [vmem:[%s284] sm:$0xff] %v4133
        %4138 = vst [vmem:[%s284 + $0x8] sm:$0xff] %v4134
        %4139 = vst [vmem:[%s284 + $0x10] sm:$0xff] %v4135
        %4140 = vst [vmem:[%s284 + $0x18] sm:$0xff] %v4136
        %s4141 = sand.u32 %s181, 1
        %s4142 = scalar_lea.sflag [#allocation3], %s4141
        %s4143 = sand.u32 %s181, 1
        %s4144 = smul.addr %s4143, 32
        %s4145 = scalar_lea.vmem [#allocation2], %s4144
        // Predicated region
        $region49: #{tpu_custom_call.1} parent=47 // pred_check
          %p4146 = pneg %p191
        $region50: #{tpu_custom_call.1} parent=47 // pred_check_branch
          %4148 = sbr.rel (%p4146) target = $region52
        $region51: #{tpu_custom_call.1} parent=47 // pred_region
          %s4149 = smul.u32 4, %s21
          %s4150 = ssub.s32 5, %s4149
          %p4151 = scmp.lt.s32.totalorder %s4150, 4
          %s4152 = scalar_select %p4151, %s4150, 4
          %s4153 = smul.u32 128, %s4152
          %s4155 = ssub.s32 512, %s4153
          %4156 = vsyncadd %s4142, %s4155
          %p4157 = scmp.ne.s32.totalorder 0, %s4153
          %s4158 = smul.addr %s4149, 128
          %s4159 = scalar_lea.hbm %s7, %s4158
          %s4160 = smul.u32 %s4152, 8
          %s4161 = sshll.u32 %s4160, 4
          %s4162 = sshll.u32 %s4145, 4
          %s4163 = int_to_ptr.vmem [resolvable:$true] %s4162
          %4165 = dma.vmem_to_hbm [thread:$0]  (%p4157), %s4163, %s4161, %s4159, %s4142
        $region52: #{tpu_custom_call.1} parent=47 // pred_fallthru
          _
      $region48: #{tpu_custom_call.1} parent=5 // pred_fallthru
        _
      %p4166 = scmp.le.s32.totalorder 2, %s16
      // Predicated region
      $region53: #{tpu_custom_call.1} parent=5 // pred_check
        %p4167 = pneg %p4166
      $region54: #{tpu_custom_call.1} parent=5 // pred_check_branch
        %4169 = sbr.rel (%p4167) target = $region56
      $region55: #{tpu_custom_call.1} parent=5 // pred_region
        %s4170 = ssub.s32 %s16, 2
        // Predicated region
        $region57: #{tpu_custom_call.1} parent=55 // pred_check
          %p4171 = pneg %p197
        $region58: #{tpu_custom_call.1} parent=55 // pred_check_branch
          %4173 = sbr.rel (%p4171) target = $region60
        $region59: #{tpu_custom_call.1} parent=55 // pred_region
          %s4174 = sand.u32 %s182, 1
          %s4175 = scalar_lea.sflag [#allocation3], %s4174
          %s4176 = sand.u32 %s182, 1
          %s4177 = smul.addr %s4176, 32
          %s4178 = scalar_lea.vmem [#allocation2], %s4177
          %4179 = dma.done %s4175, 512
        $region60: #{tpu_custom_call.1} parent=55 // pred_fallthru
          _
      $region56: #{tpu_custom_call.1} parent=5 // pred_fallthru
        _
    $region6: #{tpu_custom_call.1} parent=1 // loop_footer
      %s20 = sadd.s32 1, %s16
    $region7: #{tpu_custom_call.1} parent=1 // loop_footer_branch
      %15 = sbr.rel target = $region3
    $region8: #{tpu_custom_call.1} parent=1 // loop_exit
      _
    %4180 = vsyncpa [#allocation3], 1
    %s4181 = scalar_lea.sflag [#allocation3], 1
    %4182 = vsyncpa %s4181, 1

</llo_original>
